<compile_context>
chip_gen: v6e
topology: v6e:2x2x1
jax: 0.10.0
libtpu: 0.0.40
codegen_flags: <defaults>
</compile_context>

<pallas_src>
import functools
import numpy as np
import jax
import jax.numpy as jnp
from jax.experimental import pallas as pl
from jax.experimental.pallas import tpu as pltpu


def _round_up(x, m):
    return ((x + m - 1) // m) * m


# ------------------------------ fused Pallas kernel ------------------------------

def fused_gru_kernel(x_ref, wih0_ref, bg0_ref, whh0_ref, bhhn0_ref,
                     wih1_ref, bg1_ref, whh1_ref, bhhn1_ref,
                     wout_ref, bout_ref,
                     out_ref,
                     gi_ref, seq_ref,
                     *, batch, seq_len, hp, unroll):
    """Whole forward pass.

    Shapes (Hp = padded hidden, K0 = padded input_dim, Dp = padded output_dim):
      x_ref:     (T*B, K0)
      wih0_ref:  (K0, 3*Hp)   whh0_ref: (Hp, 3*Hp)
      bg0_ref:   (1, 3*Hp)    folded bias: [b_ir+b_hr | b_iz+b_hz | b_in]
      bhhn0_ref: (1, Hp)      n-gate hidden bias (must stay inside r*(...))
      wih1_ref / bg1_ref / whh1_ref / bhhn1_ref: same for layer 1 (K = Hp)
      wout_ref:  (Hp, Dp)     bout_ref: (1, Dp)     out_ref: (T*B, Dp)
      gi_ref:    (T*B, 3*Hp)  VMEM scratch, shared by both layers
      seq_ref:   (T*B, Hp)    VMEM scratch, shared by both layers
    """
    B, T, Hp = batch, seq_len, hp

    def run_layer(whh_ref, bhhn_ref):
        # Hoisted (B, Hp) broadcast of the n-gate hidden bias (not replicated by unroll).
        bhh_n = jnp.broadcast_to(bhhn_ref[...], (B, Hp))

        def step(t, h):                                    # h: (B, Hp) f32, lives in vregs
            row0 = pl.multiple_of(t * B, B)                # B multiple of 8 -> aligned
            rows = pl.ds(row0, B)
            gi = gi_ref[rows, :]                           # (B, 3*Hp) contiguous slab
            # ONE fused hidden matmul for all three gates.
            gh = jnp.dot(h, whh_ref[...], preferred_element_type=jnp.float32)  # (B, 3*Hp)
            r = jax.nn.sigmoid(gi[:, 0:Hp] + gh[:, 0:Hp])
            z = jax.nn.sigmoid(gi[:, Hp:2 * Hp] + gh[:, Hp:2 * Hp])
            n = jnp.tanh(gi[:, 2 * Hp:3 * Hp] + r * (gh[:, 2 * Hp:3 * Hp] + bhh_n))
            h_new = (1.0 - z) * n + z * h
            seq_ref[rows, :] = h_new
            return h_new

        jax.lax.fori_loop(0, T, step, jnp.zeros((B, Hp), jnp.float32), unroll=unroll)

    # ---- Layer 0: single batched input projection (all gates), then recurrence ----
    gi_ref[...] = (jnp.dot(x_ref[...], wih0_ref[...], preferred_element_type=jnp.float32)
                   + bg0_ref[...])
    run_layer(whh0_ref, bhhn0_ref)

    # ---- Layer 1: batched projection on the VMEM-resident layer-0 outputs ----
    # gi_ref / seq_ref are reused: layer-0 contents are dead at each overwrite point.
    gi_ref[...] = (jnp.dot(seq_ref[...], wih1_ref[...], preferred_element_type=jnp.float32)
                   + bg1_ref[...])
    run_layer(whh1_ref, bhhn1_ref)

    # ---- Fused Linear head, single lane-dense writeback ----
    out_ref[...] = (jnp.dot(seq_ref[...], wout_ref[...],
                            preferred_element_type=jnp.float32)
                    + bout_ref[...]).astype(out_ref.dtype)


# ------------------------------ forward (Pallas) ------------------------------

def gru_forward_pallas(x_btd, params):
    """x_btd: (B, T, input_dim) -> (B, T, output_dim). Fused single pallas_call."""
    B, T, Din = x_btd.shape
    layers = params["layers"]
    assert len(layers) == 2, "fused kernel is specialized for layer_num=2"
    (wih0, whh0, bih0, bhh0), (wih1, whh1, bih1, bhh1) = layers
    H = whh0.shape[1]
    Dout = params["w_out"].shape[0]

    LANE, SUB = 128, 8
    Hp = _round_up(H, LANE)        # lane-dense hidden
    Bp = _round_up(B, SUB)         # sublane-dense batch
    Din_p = _round_up(Din, SUB)    # avoid sub-(8,128) relayouts on the layer-0 contraction
    Dout_p = _round_up(Dout, LANE)  # lane-dense output -> unmasked stores
    f32 = jnp.float32

    def cat_wih(w, k, k_pad):
        # torch (3H, k) -> (k_pad, 3*Hp): per-gate transpose, zero-pad, concat along lanes.
        parts = []
        for g in range(3):
            wg = w[g * H:(g + 1) * H, :].astype(f32).T          # (k, H)
            parts.append(jnp.pad(wg, ((0, k_pad - k), (0, Hp - H))))
        return jnp.concatenate(parts, axis=1)                   # (k_pad, 3*Hp)

    def cat_bias(bih, bhh):
        # Fold b_hh into the r/z gate biases (exact); keep b_hh_n separate (scaled by r).
        def pad(v):
            return jnp.pad(v.astype(f32), (0, Hp - H))
        b_cat = jnp.concatenate([pad(bih[0:H] + bhh[0:H]),
                                 pad(bih[H:2 * H] + bhh[H:2 * H]),
                                 pad(bih[2 * H:3 * H])])[None, :]     # (1, 3*Hp)
        bhh_n = pad(bhh[2 * H:3 * H])[None, :]                        # (1, Hp)
        return b_cat, bhh_n

    wih0_p = cat_wih(wih0, Din, Din_p)          # (Din_p, 3*Hp)
    whh0_p = cat_wih(whh0, H, Hp)               # (Hp, 3*Hp)
    bg0_p, bhhn0_p = cat_bias(bih0, bhh0)
    wih1_p = cat_wih(wih1, H, Hp)               # (Hp, 3*Hp)
    whh1_p = cat_wih(whh1, H, Hp)
    bg1_p, bhhn1_p = cat_bias(bih1, bhh1)

    wout_p = jnp.pad(params["w_out"].astype(f32).T,
                     ((0, Hp - H), (0, Dout_p - Dout)))               # (Hp, Dout_p)
    bout_p = jnp.pad(params["b_out"].astype(f32), (0, Dout_p - Dout))[None, :]  # (1, Dout_p)

    # time-major, zero-pad batch & input dim, flatten rows (t-major then b)
    x_flat = jnp.pad(jnp.transpose(x_btd, (1, 0, 2)).astype(f32),
                     ((0, 0), (0, Bp - B), (0, Din_p - Din))).reshape(T * Bp, Din_p)

    unroll = True if T <= 16 else 8
    kernel = functools.partial(fused_gru_kernel, batch=Bp, seq_len=T, hp=Hp, unroll=unroll)

    def full(shape):
        nd = len(shape)
        return pl.BlockSpec(shape, lambda i, nd=nd: (0,) * nd)

    out_flat = pl.pallas_call(
        kernel,
        out_shape=jax.ShapeDtypeStruct((T * Bp, Dout_p), f32),
        grid=(1,),
        in_specs=[
            full((T * Bp, Din_p)),
            full((Din_p, 3 * Hp)), full((1, 3 * Hp)), full((Hp, 3 * Hp)), full((1, Hp)),
            full((Hp, 3 * Hp)), full((1, 3 * Hp)), full((Hp, 3 * Hp)), full((1, Hp)),
            full((Hp, Dout_p)), full((1, Dout_p)),
        ],
        out_specs=full((T * Bp, Dout_p)),
        scratch_shapes=[
            pltpu.VMEM((T * Bp, 3 * Hp), f32),   # gi (shared by both layers)
            pltpu.VMEM((T * Bp, Hp), f32),       # layer output sequence (shared)
        ],
        compiler_params=pltpu.CompilerParams(dimension_semantics=("arbitrary",)),
    )(x_flat, wih0_p, bg0_p, whh0_p, bhhn0_p,
      wih1_p, bg1_p, whh1_p, bhhn1_p, wout_p, bout_p)

    out = out_flat.reshape(T, Bp, Dout_p)[:, :B, :Dout]   # drop padded batch rows / lanes
    return jnp.transpose(out, (1, 0, 2))                  # (B, T, Dout)


# ------------------------------ parameter init ------------------------------

def _orthogonal(key, shape, gain):
    """Deterministic orthogonal init (matches torch.nn.init.orthogonal_ semantics)."""
    rows, cols = shape
    n = max(rows, cols)
    a = jax.random.normal(key, (n, n), dtype=jnp.float32)
    q, r = jnp.linalg.qr(a)
    q = q * jnp.sign(jnp.diagonal(r))
    return (gain * q[:rows, :cols]).astype(jnp.float32)


def make_gru_params(key, input_dim, hidden_num, output_dim, layer_num):
    gain = float(np.sqrt(1.0 / hidden_num))
    bscale = float(np.sqrt(1.0 / hidden_num))  # PyTorch default bias range
    params = {"layers": [], "w_out": None, "b_out": None}
    keys = jax.random.split(key, 4 * layer_num + 2)
    for l in range(layer_num):
        din = input_dim if l == 0 else hidden_num
        k0, k1, k2, k3 = keys[4 * l:4 * l + 4]
        wih = _orthogonal(k0, (3 * hidden_num, din), gain)          # (3H, Din)
        whh = _orthogonal(k1, (3 * hidden_num, hidden_num), gain)   # (3H, H)
        bih = jax.random.uniform(k2, (3 * hidden_num,), jnp.float32, -bscale, bscale)
        bhh = jax.random.uniform(k3, (3 * hidden_num,), jnp.float32, -bscale, bscale)
        params["layers"].append((wih, whh, bih, bhh))
    kw, kb = keys[-2], keys[-1]
    lim = float(np.sqrt(1.0 / hidden_num))
    params["w_out"] = jax.random.uniform(kw, (output_dim, hidden_num), jnp.float32, -lim, lim)
    params["b_out"] = jax.random.uniform(kb, (output_dim,), jnp.float32, -lim, lim)
    return params


# ------------------------------ pure-JAX reference ------------------------------

def gru_forward_ref(x_btd, params):
    B = x_btd.shape[0]
    h_all = jnp.transpose(x_btd, (1, 0, 2)).astype(jnp.float32)
    for (wih, whh, bih, bhh) in params["layers"]:
        H = whh.shape[1]

        def step(h, xt, wih=wih, whh=whh, bih=bih, bhh=bhh, H=H):
            gi = xt @ wih.T + bih
            gh = h @ whh.T + bhh
            r = jax.nn.sigmoid(gi[:, :H] + gh[:, :H])
            z = jax.nn.sigmoid(gi[:, H:2 * H] + gh[:, H:2 * H])
            n = jnp.tanh(gi[:, 2 * H:] + r * gh[:, 2 * H:])
            hn = (1.0 - z) * n + z * h
            return hn, hn

        h0 = jnp.zeros((B, H), jnp.float32)
        _, h_all = jax.lax.scan(step, h0, h_all)
    out = h_all @ params["w_out"].T + params["b_out"]
    return jnp.transpose(out, (1, 0, 2))


# ------------------------------ main ------------------------------

if __name__ == "__main__":
    B, T = 2, 8
    input_dim, hidden_num, output_dim, layer_num = 4, 32, 4, 2

    key = jax.random.PRNGKey(0)
    kx, kp = jax.random.split(key)
    x = jax.random.normal(kx, (B, T, input_dim), dtype=jnp.float32)
    params = make_gru_params(kp, input_dim, hidden_num, output_dim, layer_num)

    out = jax.block_until_ready(jax.jit(gru_forward_pallas)(x, params))
    ref = jax.block_until_ready(gru_forward_ref(x, params))

    assert out.shape == (B, T, output_dim), out.shape
    np.testing.assert_allclose(np.asarray(out), np.asarray(ref), rtol=1e-5, atol=1e-5)

    print("KERNEL_OK")
</pallas_src>

<mosaic_0001>
module attributes {stable_mosaic.version = 11 : i64} {
  func.func @fused_gru_kernel(%arg0: i32, %arg1: memref<64x8xf32, #tpu.memory_space<vmem>>, %arg2: memref<8x384xf32, #tpu.memory_space<vmem>>, %arg3: memref<1x384xf32, #tpu.memory_space<vmem>>, %arg4: memref<128x384xf32, #tpu.memory_space<vmem>>, %arg5: memref<1x128xf32, #tpu.memory_space<vmem>>, %arg6: memref<128x384xf32, #tpu.memory_space<vmem>>, %arg7: memref<1x384xf32, #tpu.memory_space<vmem>>, %arg8: memref<128x384xf32, #tpu.memory_space<vmem>>, %arg9: memref<1x128xf32, #tpu.memory_space<vmem>>, %arg10: memref<128x128xf32, #tpu.memory_space<vmem>>, %arg11: memref<1x128xf32, #tpu.memory_space<vmem>>, %arg12: memref<64x128xf32, #tpu.memory_space<vmem>>, %arg13: memref<64x384xf32, #tpu.memory_space<vmem>>, %arg14: memref<64x128xf32, #tpu.memory_space<vmem>>) attributes {dimension_semantics = [#tpu.dimension_semantics<arbitrary>], iteration_bounds = array<i64: 1>, scalar_prefetch = 0 : i64, scratch_operands = 2 : i64, tpu.core_type = #tpu.core_type<tc>, window_params = [{pipeline_mode = #tpu.pipeline_mode<synchronous>, transform_indices = @transform_0, window_bounds = array<i64: 64, 8>}, {pipeline_mode = #tpu.pipeline_mode<synchronous>, transform_indices = @transform_1, window_bounds = array<i64: 8, 384>}, {pipeline_mode = #tpu.pipeline_mode<synchronous>, transform_indices = @transform_2, window_bounds = array<i64: 1, 384>}, {pipeline_mode = #tpu.pipeline_mode<synchronous>, transform_indices = @transform_3, window_bounds = array<i64: 128, 384>}, {pipeline_mode = #tpu.pipeline_mode<synchronous>, transform_indices = @transform_4, window_bounds = array<i64: 1, 128>}, {pipeline_mode = #tpu.pipeline_mode<synchronous>, transform_indices = @transform_5, window_bounds = array<i64: 128, 384>}, {pipeline_mode = #tpu.pipeline_mode<synchronous>, transform_indices = @transform_6, window_bounds = array<i64: 1, 384>}, {pipeline_mode = #tpu.pipeline_mode<synchronous>, transform_indices = @transform_7, window_bounds = array<i64: 128, 384>}, {pipeline_mode = #tpu.pipeline_mode<synchronous>, transform_indices = @transform_8, window_bounds = array<i64: 1, 128>}, {pipeline_mode = #tpu.pipeline_mode<synchronous>, transform_indices = @transform_9, window_bounds = array<i64: 128, 128>}, {pipeline_mode = #tpu.pipeline_mode<synchronous>, transform_indices = @transform_10, window_bounds = array<i64: 1, 128>}, {pipeline_mode = #tpu.pipeline_mode<synchronous>, transform_indices = @transform_11, window_bounds = array<i64: 64, 128>}]} {
    %c0 = arith.constant 0 : index
    %c0_0 = arith.constant 0 : index
    %0 = vector.load %arg1[%c0, %c0_0] : memref<64x8xf32, #tpu.memory_space<vmem>>, vector<64x8xf32>
    %c0_1 = arith.constant 0 : index
    %c0_2 = arith.constant 0 : index
    %1 = vector.load %arg2[%c0_1, %c0_2] : memref<8x384xf32, #tpu.memory_space<vmem>>, vector<8x384xf32>
    %cst = arith.constant dense<0.000000e+00> : vector<64x384xf32>
    %2 = tpu.matmul %0, %1, %cst {dimension_numbers = #tpu.dot_dimension_numbers<[1], [0], [0], [1], [0, 0, 1, 1], [], []>} : vector<64x8xf32>, vector<8x384xf32>, vector<64x384xf32> -> vector<64x384xf32>
    %c0_3 = arith.constant 0 : index
    %c0_4 = arith.constant 0 : index
    %3 = vector.load %arg3[%c0_3, %c0_4] : memref<1x384xf32, #tpu.memory_space<vmem>>, vector<1x384xf32>
    %4 = vector.broadcast %3 : vector<1x384xf32> to vector<64x384xf32>
    %5 = arith.addf %2, %4 : vector<64x384xf32>
    %c0_5 = arith.constant 0 : index
    %c0_6 = arith.constant 0 : index
    %6 = vector.load %arg13[%c0_5, %c0_6] : memref<64x384xf32, #tpu.memory_space<vmem>>, vector<64x384xf32>
    tpu.vector_store %arg13[%c0_5, %c0_6], %5 {strides = array<i32>} : memref<64x384xf32, #tpu.memory_space<vmem>>, vector<64x384xf32>,
    %c0_7 = arith.constant 0 : index
    %c0_8 = arith.constant 0 : index
    %7 = vector.load %arg5[%c0_7, %c0_8] : memref<1x128xf32, #tpu.memory_space<vmem>>, vector<1x128xf32>
    %8 = vector.shape_cast %7 : vector<1x128xf32> to vector<1x128xf32>
    %9 = vector.broadcast %8 : vector<1x128xf32> to vector<8x128xf32>
    %cst_9 = arith.constant 0.000000e+00 : f32
    %10 = vector.broadcast %cst_9 : f32 to vector<8x128xf32>
    %c0_i32 = arith.constant 0 : i32
    %c8_i32 = arith.constant 8 : i32
    %11 = arith.muli %c0_i32, %c8_i32 : i32
    %12 = tpu.assume_multiple %11, 8 : i32
    %13 = arith.index_cast %12 : i32 to index
    %c0_10 = arith.constant 0 : index
    %14 = vector.load %arg13[%13, %c0_10] : memref<64x384xf32, #tpu.memory_space<vmem>>, vector<8x384xf32>
    %c0_11 = arith.constant 0 : index
    %c0_12 = arith.constant 0 : index
    %15 = vector.load %arg4[%c0_11, %c0_12] : memref<128x384xf32, #tpu.memory_space<vmem>>, vector<128x384xf32>
    %cst_13 = arith.constant dense<0.000000e+00> : vector<8x384xf32>
    %16 = tpu.matmul %10, %15, %cst_13 {dimension_numbers = #tpu.dot_dimension_numbers<[1], [0], [0], [1], [0, 0, 1, 1], [], []>} : vector<8x128xf32>, vector<128x384xf32>, vector<8x384xf32> -> vector<8x384xf32>
    %17 = vector.extract_strided_slice %14 {offsets = [0, 0], sizes = [8, 128], strides = [1, 1]} : vector<8x384xf32> to vector<8x128xf32>
    %18 = vector.extract_strided_slice %16 {offsets = [0, 0], sizes = [8, 128], strides = [1, 1]} : vector<8x384xf32> to vector<8x128xf32>
    %19 = arith.addf %17, %18 : vector<8x128xf32>
    %20 = arith.negf %19 : vector<8x128xf32>
    %21 = math.exp %20 : vector<8x128xf32>
    %cst_14 = arith.constant 1.000000e+00 : f32
    %22 = vector.broadcast %cst_14 : f32 to vector<8x128xf32>
    %23 = arith.addf %22, %21 : vector<8x128xf32>
    %24 = arith.divf %22, %23 : vector<8x128xf32>
    %25 = vector.extract_strided_slice %14 {offsets = [0, 128], sizes = [8, 128], strides = [1, 1]} : vector<8x384xf32> to vector<8x128xf32>
    %26 = vector.extract_strided_slice %16 {offsets = [0, 128], sizes = [8, 128], strides = [1, 1]} : vector<8x384xf32> to vector<8x128xf32>
    %27 = arith.addf %25, %26 : vector<8x128xf32>
    %28 = arith.negf %27 : vector<8x128xf32>
    %29 = math.exp %28 : vector<8x128xf32>
    %cst_15 = arith.constant 1.000000e+00 : f32
    %30 = vector.broadcast %cst_15 : f32 to vector<8x128xf32>
    %31 = arith.addf %30, %29 : vector<8x128xf32>
    %32 = arith.divf %30, %31 : vector<8x128xf32>
    %33 = vector.extract_strided_slice %14 {offsets = [0, 256], sizes = [8, 128], strides = [1, 1]} : vector<8x384xf32> to vector<8x128xf32>
    %34 = vector.extract_strided_slice %16 {offsets = [0, 256], sizes = [8, 128], strides = [1, 1]} : vector<8x384xf32> to vector<8x128xf32>
    %35 = arith.addf %34, %9 : vector<8x128xf32>
    %36 = arith.mulf %24, %35 : vector<8x128xf32>
    %37 = arith.addf %33, %36 : vector<8x128xf32>
    %38 = math.tanh %37 : vector<8x128xf32>
    %cst_16 = arith.constant 1.000000e+00 : f32
    %39 = vector.broadcast %cst_16 : f32 to vector<8x128xf32>
    %40 = arith.subf %39, %32 : vector<8x128xf32>
    %41 = arith.mulf %40, %38 : vector<8x128xf32>
    %42 = arith.mulf %32, %10 : vector<8x128xf32>
    %43 = arith.addf %41, %42 : vector<8x128xf32>
    %44 = arith.index_cast %12 : i32 to index
    %c0_17 = arith.constant 0 : index
    %45 = vector.load %arg14[%44, %c0_17] : memref<64x128xf32, #tpu.memory_space<vmem>>, vector<8x128xf32>
    tpu.vector_store %arg14[%44, %c0_17], %43 {strides = array<i32>} : memref<64x128xf32, #tpu.memory_space<vmem>>, vector<8x128xf32>,
    %c1_i32 = arith.constant 1 : i32
    %c8_i32_18 = arith.constant 8 : i32
    %46 = arith.muli %c1_i32, %c8_i32_18 : i32
    %47 = tpu.assume_multiple %46, 8 : i32
    %48 = arith.index_cast %47 : i32 to index
    %c0_19 = arith.constant 0 : index
    %49 = vector.load %arg13[%48, %c0_19] : memref<64x384xf32, #tpu.memory_space<vmem>>, vector<8x384xf32>
    %c0_20 = arith.constant 0 : index
    %c0_21 = arith.constant 0 : index
    %50 = vector.load %arg4[%c0_20, %c0_21] : memref<128x384xf32, #tpu.memory_space<vmem>>, vector<128x384xf32>
    %cst_22 = arith.constant dense<0.000000e+00> : vector<8x384xf32>
    %51 = tpu.matmul %43, %50, %cst_22 {dimension_numbers = #tpu.dot_dimension_numbers<[1], [0], [0], [1], [0, 0, 1, 1], [], []>} : vector<8x128xf32>, vector<128x384xf32>, vector<8x384xf32> -> vector<8x384xf32>
    %52 = vector.extract_strided_slice %49 {offsets = [0, 0], sizes = [8, 128], strides = [1, 1]} : vector<8x384xf32> to vector<8x128xf32>
    %53 = vector.extract_strided_slice %51 {offsets = [0, 0], sizes = [8, 128], strides = [1, 1]} : vector<8x384xf32> to vector<8x128xf32>
    %54 = arith.addf %52, %53 : vector<8x128xf32>
    %55 = arith.negf %54 : vector<8x128xf32>
    %56 = math.exp %55 : vector<8x128xf32>
    %cst_23 = arith.constant 1.000000e+00 : f32
    %57 = vector.broadcast %cst_23 : f32 to vector<8x128xf32>
    %58 = arith.addf %57, %56 : vector<8x128xf32>
    %59 = arith.divf %57, %58 : vector<8x128xf32>
    %60 = vector.extract_strided_slice %49 {offsets = [0, 128], sizes = [8, 128], strides = [1, 1]} : vector<8x384xf32> to vector<8x128xf32>
    %61 = vector.extract_strided_slice %51 {offsets = [0, 128], sizes = [8, 128], strides = [1, 1]} : vector<8x384xf32> to vector<8x128xf32>
    %62 = arith.addf %60, %61 : vector<8x128xf32>
    %63 = arith.negf %62 : vector<8x128xf32>
    %64 = math.exp %63 : vector<8x128xf32>
    %cst_24 = arith.constant 1.000000e+00 : f32
    %65 = vector.broadcast %cst_24 : f32 to vector<8x128xf32>
    %66 = arith.addf %65, %64 : vector<8x128xf32>
    %67 = arith.divf %65, %66 : vector<8x128xf32>
    %68 = vector.extract_strided_slice %49 {offsets = [0, 256], sizes = [8, 128], strides = [1, 1]} : vector<8x384xf32> to vector<8x128xf32>
    %69 = vector.extract_strided_slice %51 {offsets = [0, 256], sizes = [8, 128], strides = [1, 1]} : vector<8x384xf32> to vector<8x128xf32>
    %70 = arith.addf %69, %9 : vector<8x128xf32>
    %71 = arith.mulf %59, %70 : vector<8x128xf32>
    %72 = arith.addf %68, %71 : vector<8x128xf32>
    %73 = math.tanh %72 : vector<8x128xf32>
    %cst_25 = arith.constant 1.000000e+00 : f32
    %74 = vector.broadcast %cst_25 : f32 to vector<8x128xf32>
    %75 = arith.subf %74, %67 : vector<8x128xf32>
    %76 = arith.mulf %75, %73 : vector<8x128xf32>
    %77 = arith.mulf %67, %43 : vector<8x128xf32>
    %78 = arith.addf %76, %77 : vector<8x128xf32>
    %79 = arith.index_cast %47 : i32 to index
    %c0_26 = arith.constant 0 : index
    %80 = vector.load %arg14[%79, %c0_26] : memref<64x128xf32, #tpu.memory_space<vmem>>, vector<8x128xf32>
    tpu.vector_store %arg14[%79, %c0_26], %78 {strides = array<i32>} : memref<64x128xf32, #tpu.memory_space<vmem>>, vector<8x128xf32>,
    %c2_i32 = arith.constant 2 : i32
    %c8_i32_27 = arith.constant 8 : i32
    %81 = arith.muli %c2_i32, %c8_i32_27 : i32
    %82 = tpu.assume_multiple %81, 8 : i32
    %83 = arith.index_cast %82 : i32 to index
    %c0_28 = arith.constant 0 : index
    %84 = vector.load %arg13[%83, %c0_28] : memref<64x384xf32, #tpu.memory_space<vmem>>, vector<8x384xf32>
    %c0_29 = arith.constant 0 : index
    %c0_30 = arith.constant 0 : index
    %85 = vector.load %arg4[%c0_29, %c0_30] : memref<128x384xf32, #tpu.memory_space<vmem>>, vector<128x384xf32>
    %cst_31 = arith.constant dense<0.000000e+00> : vector<8x384xf32>
    %86 = tpu.matmul %78, %85, %cst_31 {dimension_numbers = #tpu.dot_dimension_numbers<[1], [0], [0], [1], [0, 0, 1, 1], [], []>} : vector<8x128xf32>, vector<128x384xf32>, vector<8x384xf32> -> vector<8x384xf32>
    %87 = vector.extract_strided_slice %84 {offsets = [0, 0], sizes = [8, 128], strides = [1, 1]} : vector<8x384xf32> to vector<8x128xf32>
    %88 = vector.extract_strided_slice %86 {offsets = [0, 0], sizes = [8, 128], strides = [1, 1]} : vector<8x384xf32> to vector<8x128xf32>
    %89 = arith.addf %87, %88 : vector<8x128xf32>
    %90 = arith.negf %89 : vector<8x128xf32>
    %91 = math.exp %90 : vector<8x128xf32>
    %cst_32 = arith.constant 1.000000e+00 : f32
    %92 = vector.broadcast %cst_32 : f32 to vector<8x128xf32>
    %93 = arith.addf %92, %91 : vector<8x128xf32>
    %94 = arith.divf %92, %93 : vector<8x128xf32>
    %95 = vector.extract_strided_slice %84 {offsets = [0, 128], sizes = [8, 128], strides = [1, 1]} : vector<8x384xf32> to vector<8x128xf32>
    %96 = vector.extract_strided_slice %86 {offsets = [0, 128], sizes = [8, 128], strides = [1, 1]} : vector<8x384xf32> to vector<8x128xf32>
    %97 = arith.addf %95, %96 : vector<8x128xf32>
    %98 = arith.negf %97 : vector<8x128xf32>
    %99 = math.exp %98 : vector<8x128xf32>
    %cst_33 = arith.constant 1.000000e+00 : f32
    %100 = vector.broadcast %cst_33 : f32 to vector<8x128xf32>
    %101 = arith.addf %100, %99 : vector<8x128xf32>
    %102 = arith.divf %100, %101 : vector<8x128xf32>
    %103 = vector.extract_strided_slice %84 {offsets = [0, 256], sizes = [8, 128], strides = [1, 1]} : vector<8x384xf32> to vector<8x128xf32>
    %104 = vector.extract_strided_slice %86 {offsets = [0, 256], sizes = [8, 128], strides = [1, 1]} : vector<8x384xf32> to vector<8x128xf32>
    %105 = arith.addf %104, %9 : vector<8x128xf32>
    %106 = arith.mulf %94, %105 : vector<8x128xf32>
    %107 = arith.addf %103, %106 : vector<8x128xf32>
    %108 = math.tanh %107 : vector<8x128xf32>
    %cst_34 = arith.constant 1.000000e+00 : f32
    %109 = vector.broadcast %cst_34 : f32 to vector<8x128xf32>
    %110 = arith.subf %109, %102 : vector<8x128xf32>
    %111 = arith.mulf %110, %108 : vector<8x128xf32>
    %112 = arith.mulf %102, %78 : vector<8x128xf32>
    %113 = arith.addf %111, %112 : vector<8x128xf32>
    %114 = arith.index_cast %82 : i32 to index
    %c0_35 = arith.constant 0 : index
    %115 = vector.load %arg14[%114, %c0_35] : memref<64x128xf32, #tpu.memory_space<vmem>>, vector<8x128xf32>
    tpu.vector_store %arg14[%114, %c0_35], %113 {strides = array<i32>} : memref<64x128xf32, #tpu.memory_space<vmem>>, vector<8x128xf32>,
    %c3_i32 = arith.constant 3 : i32
    %c8_i32_36 = arith.constant 8 : i32
    %116 = arith.muli %c3_i32, %c8_i32_36 : i32
    %117 = tpu.assume_multiple %116, 8 : i32
    %118 = arith.index_cast %117 : i32 to index
    %c0_37 = arith.constant 0 : index
    %119 = vector.load %arg13[%118, %c0_37] : memref<64x384xf32, #tpu.memory_space<vmem>>, vector<8x384xf32>
    %c0_38 = arith.constant 0 : index
    %c0_39 = arith.constant 0 : index
    %120 = vector.load %arg4[%c0_38, %c0_39] : memref<128x384xf32, #tpu.memory_space<vmem>>, vector<128x384xf32>
    %cst_40 = arith.constant dense<0.000000e+00> : vector<8x384xf32>
    %121 = tpu.matmul %113, %120, %cst_40 {dimension_numbers = #tpu.dot_dimension_numbers<[1], [0], [0], [1], [0, 0, 1, 1], [], []>} : vector<8x128xf32>, vector<128x384xf32>, vector<8x384xf32> -> vector<8x384xf32>
    %122 = vector.extract_strided_slice %119 {offsets = [0, 0], sizes = [8, 128], strides = [1, 1]} : vector<8x384xf32> to vector<8x128xf32>
    %123 = vector.extract_strided_slice %121 {offsets = [0, 0], sizes = [8, 128], strides = [1, 1]} : vector<8x384xf32> to vector<8x128xf32>
    %124 = arith.addf %122, %123 : vector<8x128xf32>
    %125 = arith.negf %124 : vector<8x128xf32>
    %126 = math.exp %125 : vector<8x128xf32>
    %cst_41 = arith.constant 1.000000e+00 : f32
    %127 = vector.broadcast %cst_41 : f32 to vector<8x128xf32>
    %128 = arith.addf %127, %126 : vector<8x128xf32>
    %129 = arith.divf %127, %128 : vector<8x128xf32>
    %130 = vector.extract_strided_slice %119 {offsets = [0, 128], sizes = [8, 128], strides = [1, 1]} : vector<8x384xf32> to vector<8x128xf32>
    %131 = vector.extract_strided_slice %121 {offsets = [0, 128], sizes = [8, 128], strides = [1, 1]} : vector<8x384xf32> to vector<8x128xf32>
    %132 = arith.addf %130, %131 : vector<8x128xf32>
    %133 = arith.negf %132 : vector<8x128xf32>
    %134 = math.exp %133 : vector<8x128xf32>
    %cst_42 = arith.constant 1.000000e+00 : f32
    %135 = vector.broadcast %cst_42 : f32 to vector<8x128xf32>
    %136 = arith.addf %135, %134 : vector<8x128xf32>
    %137 = arith.divf %135, %136 : vector<8x128xf32>
    %138 = vector.extract_strided_slice %119 {offsets = [0, 256], sizes = [8, 128], strides = [1, 1]} : vector<8x384xf32> to vector<8x128xf32>
    %139 = vector.extract_strided_slice %121 {offsets = [0, 256], sizes = [8, 128], strides = [1, 1]} : vector<8x384xf32> to vector<8x128xf32>
    %140 = arith.addf %139, %9 : vector<8x128xf32>
    %141 = arith.mulf %129, %140 : vector<8x128xf32>
    %142 = arith.addf %138, %141 : vector<8x128xf32>
    %143 = math.tanh %142 : vector<8x128xf32>
    %cst_43 = arith.constant 1.000000e+00 : f32
    %144 = vector.broadcast %cst_43 : f32 to vector<8x128xf32>
    %145 = arith.subf %144, %137 : vector<8x128xf32>
    %146 = arith.mulf %145, %143 : vector<8x128xf32>
    %147 = arith.mulf %137, %113 : vector<8x128xf32>
    %148 = arith.addf %146, %147 : vector<8x128xf32>
    %149 = arith.index_cast %117 : i32 to index
    %c0_44 = arith.constant 0 : index
    %150 = vector.load %arg14[%149, %c0_44] : memref<64x128xf32, #tpu.memory_space<vmem>>, vector<8x128xf32>
    tpu.vector_store %arg14[%149, %c0_44], %148 {strides = array<i32>} : memref<64x128xf32, #tpu.memory_space<vmem>>, vector<8x128xf32>,
    %c4_i32 = arith.constant 4 : i32
    %c8_i32_45 = arith.constant 8 : i32
    %151 = arith.muli %c4_i32, %c8_i32_45 : i32
    %152 = tpu.assume_multiple %151, 8 : i32
    %153 = arith.index_cast %152 : i32 to index
    %c0_46 = arith.constant 0 : index
    %154 = vector.load %arg13[%153, %c0_46] : memref<64x384xf32, #tpu.memory_space<vmem>>, vector<8x384xf32>
    %c0_47 = arith.constant 0 : index
    %c0_48 = arith.constant 0 : index
    %155 = vector.load %arg4[%c0_47, %c0_48] : memref<128x384xf32, #tpu.memory_space<vmem>>, vector<128x384xf32>
    %cst_49 = arith.constant dense<0.000000e+00> : vector<8x384xf32>
    %156 = tpu.matmul %148, %155, %cst_49 {dimension_numbers = #tpu.dot_dimension_numbers<[1], [0], [0], [1], [0, 0, 1, 1], [], []>} : vector<8x128xf32>, vector<128x384xf32>, vector<8x384xf32> -> vector<8x384xf32>
    %157 = vector.extract_strided_slice %154 {offsets = [0, 0], sizes = [8, 128], strides = [1, 1]} : vector<8x384xf32> to vector<8x128xf32>
    %158 = vector.extract_strided_slice %156 {offsets = [0, 0], sizes = [8, 128], strides = [1, 1]} : vector<8x384xf32> to vector<8x128xf32>
    %159 = arith.addf %157, %158 : vector<8x128xf32>
    %160 = arith.negf %159 : vector<8x128xf32>
    %161 = math.exp %160 : vector<8x128xf32>
    %cst_50 = arith.constant 1.000000e+00 : f32
    %162 = vector.broadcast %cst_50 : f32 to vector<8x128xf32>
    %163 = arith.addf %162, %161 : vector<8x128xf32>
    %164 = arith.divf %162, %163 : vector<8x128xf32>
    %165 = vector.extract_strided_slice %154 {offsets = [0, 128], sizes = [8, 128], strides = [1, 1]} : vector<8x384xf32> to vector<8x128xf32>
    %166 = vector.extract_strided_slice %156 {offsets = [0, 128], sizes = [8, 128], strides = [1, 1]} : vector<8x384xf32> to vector<8x128xf32>
    %167 = arith.addf %165, %166 : vector<8x128xf32>
    %168 = arith.negf %167 : vector<8x128xf32>
    %169 = math.exp %168 : vector<8x128xf32>
    %cst_51 = arith.constant 1.000000e+00 : f32
    %170 = vector.broadcast %cst_51 : f32 to vector<8x128xf32>
    %171 = arith.addf %170, %169 : vector<8x128xf32>
    %172 = arith.divf %170, %171 : vector<8x128xf32>
    %173 = vector.extract_strided_slice %154 {offsets = [0, 256], sizes = [8, 128], strides = [1, 1]} : vector<8x384xf32> to vector<8x128xf32>
    %174 = vector.extract_strided_slice %156 {offsets = [0, 256], sizes = [8, 128], strides = [1, 1]} : vector<8x384xf32> to vector<8x128xf32>
    %175 = arith.addf %174, %9 : vector<8x128xf32>
    %176 = arith.mulf %164, %175 : vector<8x128xf32>
    %177 = arith.addf %173, %176 : vector<8x128xf32>
    %178 = math.tanh %177 : vector<8x128xf32>
    %cst_52 = arith.constant 1.000000e+00 : f32
    %179 = vector.broadcast %cst_52 : f32 to vector<8x128xf32>
    %180 = arith.subf %179, %172 : vector<8x128xf32>
    %181 = arith.mulf %180, %178 : vector<8x128xf32>
    %182 = arith.mulf %172, %148 : vector<8x128xf32>
    %183 = arith.addf %181, %182 : vector<8x128xf32>
    %184 = arith.index_cast %152 : i32 to index
    %c0_53 = arith.constant 0 : index
    %185 = vector.load %arg14[%184, %c0_53] : memref<64x128xf32, #tpu.memory_space<vmem>>, vector<8x128xf32>
    tpu.vector_store %arg14[%184, %c0_53], %183 {strides = array<i32>} : memref<64x128xf32, #tpu.memory_space<vmem>>, vector<8x128xf32>,
    %c5_i32 = arith.constant 5 : i32
    %c8_i32_54 = arith.constant 8 : i32
    %186 = arith.muli %c5_i32, %c8_i32_54 : i32
    %187 = tpu.assume_multiple %186, 8 : i32
    %188 = arith.index_cast %187 : i32 to index
    %c0_55 = arith.constant 0 : index
    %189 = vector.load %arg13[%188, %c0_55] : memref<64x384xf32, #tpu.memory_space<vmem>>, vector<8x384xf32>
    %c0_56 = arith.constant 0 : index
    %c0_57 = arith.constant 0 : index
    %190 = vector.load %arg4[%c0_56, %c0_57] : memref<128x384xf32, #tpu.memory_space<vmem>>, vector<128x384xf32>
    %cst_58 = arith.constant dense<0.000000e+00> : vector<8x384xf32>
    %191 = tpu.matmul %183, %190, %cst_58 {dimension_numbers = #tpu.dot_dimension_numbers<[1], [0], [0], [1], [0, 0, 1, 1], [], []>} : vector<8x128xf32>, vector<128x384xf32>, vector<8x384xf32> -> vector<8x384xf32>
    %192 = vector.extract_strided_slice %189 {offsets = [0, 0], sizes = [8, 128], strides = [1, 1]} : vector<8x384xf32> to vector<8x128xf32>
    %193 = vector.extract_strided_slice %191 {offsets = [0, 0], sizes = [8, 128], strides = [1, 1]} : vector<8x384xf32> to vector<8x128xf32>
    %194 = arith.addf %192, %193 : vector<8x128xf32>
    %195 = arith.negf %194 : vector<8x128xf32>
    %196 = math.exp %195 : vector<8x128xf32>
    %cst_59 = arith.constant 1.000000e+00 : f32
    %197 = vector.broadcast %cst_59 : f32 to vector<8x128xf32>
    %198 = arith.addf %197, %196 : vector<8x128xf32>
    %199 = arith.divf %197, %198 : vector<8x128xf32>
    %200 = vector.extract_strided_slice %189 {offsets = [0, 128], sizes = [8, 128], strides = [1, 1]} : vector<8x384xf32> to vector<8x128xf32>
    %201 = vector.extract_strided_slice %191 {offsets = [0, 128], sizes = [8, 128], strides = [1, 1]} : vector<8x384xf32> to vector<8x128xf32>
    %202 = arith.addf %200, %201 : vector<8x128xf32>
    %203 = arith.negf %202 : vector<8x128xf32>
    %204 = math.exp %203 : vector<8x128xf32>
    %cst_60 = arith.constant 1.000000e+00 : f32
    %205 = vector.broadcast %cst_60 : f32 to vector<8x128xf32>
    %206 = arith.addf %205, %204 : vector<8x128xf32>
    %207 = arith.divf %205, %206 : vector<8x128xf32>
    %208 = vector.extract_strided_slice %189 {offsets = [0, 256], sizes = [8, 128], strides = [1, 1]} : vector<8x384xf32> to vector<8x128xf32>
    %209 = vector.extract_strided_slice %191 {offsets = [0, 256], sizes = [8, 128], strides = [1, 1]} : vector<8x384xf32> to vector<8x128xf32>
    %210 = arith.addf %209, %9 : vector<8x128xf32>
    %211 = arith.mulf %199, %210 : vector<8x128xf32>
    %212 = arith.addf %208, %211 : vector<8x128xf32>
    %213 = math.tanh %212 : vector<8x128xf32>
    %cst_61 = arith.constant 1.000000e+00 : f32
    %214 = vector.broadcast %cst_61 : f32 to vector<8x128xf32>
    %215 = arith.subf %214, %207 : vector<8x128xf32>
    %216 = arith.mulf %215, %213 : vector<8x128xf32>
    %217 = arith.mulf %207, %183 : vector<8x128xf32>
    %218 = arith.addf %216, %217 : vector<8x128xf32>
    %219 = arith.index_cast %187 : i32 to index
    %c0_62 = arith.constant 0 : index
    %220 = vector.load %arg14[%219, %c0_62] : memref<64x128xf32, #tpu.memory_space<vmem>>, vector<8x128xf32>
    tpu.vector_store %arg14[%219, %c0_62], %218 {strides = array<i32>} : memref<64x128xf32, #tpu.memory_space<vmem>>, vector<8x128xf32>,
    %c6_i32 = arith.constant 6 : i32
    %c8_i32_63 = arith.constant 8 : i32
    %221 = arith.muli %c6_i32, %c8_i32_63 : i32
    %222 = tpu.assume_multiple %221, 8 : i32
    %223 = arith.index_cast %222 : i32 to index
    %c0_64 = arith.constant 0 : index
    %224 = vector.load %arg13[%223, %c0_64] : memref<64x384xf32, #tpu.memory_space<vmem>>, vector<8x384xf32>
    %c0_65 = arith.constant 0 : index
    %c0_66 = arith.constant 0 : index
    %225 = vector.load %arg4[%c0_65, %c0_66] : memref<128x384xf32, #tpu.memory_space<vmem>>, vector<128x384xf32>
    %cst_67 = arith.constant dense<0.000000e+00> : vector<8x384xf32>
    %226 = tpu.matmul %218, %225, %cst_67 {dimension_numbers = #tpu.dot_dimension_numbers<[1], [0], [0], [1], [0, 0, 1, 1], [], []>} : vector<8x128xf32>, vector<128x384xf32>, vector<8x384xf32> -> vector<8x384xf32>
    %227 = vector.extract_strided_slice %224 {offsets = [0, 0], sizes = [8, 128], strides = [1, 1]} : vector<8x384xf32> to vector<8x128xf32>
    %228 = vector.extract_strided_slice %226 {offsets = [0, 0], sizes = [8, 128], strides = [1, 1]} : vector<8x384xf32> to vector<8x128xf32>
    %229 = arith.addf %227, %228 : vector<8x128xf32>
    %230 = arith.negf %229 : vector<8x128xf32>
    %231 = math.exp %230 : vector<8x128xf32>
    %cst_68 = arith.constant 1.000000e+00 : f32
    %232 = vector.broadcast %cst_68 : f32 to vector<8x128xf32>
    %233 = arith.addf %232, %231 : vector<8x128xf32>
    %234 = arith.divf %232, %233 : vector<8x128xf32>
    %235 = vector.extract_strided_slice %224 {offsets = [0, 128], sizes = [8, 128], strides = [1, 1]} : vector<8x384xf32> to vector<8x128xf32>
    %236 = vector.extract_strided_slice %226 {offsets = [0, 128], sizes = [8, 128], strides = [1, 1]} : vector<8x384xf32> to vector<8x128xf32>
    %237 = arith.addf %235, %236 : vector<8x128xf32>
    %238 = arith.negf %237 : vector<8x128xf32>
    %239 = math.exp %238 : vector<8x128xf32>
    %cst_69 = arith.constant 1.000000e+00 : f32
    %240 = vector.broadcast %cst_69 : f32 to vector<8x128xf32>
    %241 = arith.addf %240, %239 : vector<8x128xf32>
    %242 = arith.divf %240, %241 : vector<8x128xf32>
    %243 = vector.extract_strided_slice %224 {offsets = [0, 256], sizes = [8, 128], strides = [1, 1]} : vector<8x384xf32> to vector<8x128xf32>
    %244 = vector.extract_strided_slice %226 {offsets = [0, 256], sizes = [8, 128], strides = [1, 1]} : vector<8x384xf32> to vector<8x128xf32>
    %245 = arith.addf %244, %9 : vector<8x128xf32>
    %246 = arith.mulf %234, %245 : vector<8x128xf32>
    %247 = arith.addf %243, %246 : vector<8x128xf32>
    %248 = math.tanh %247 : vector<8x128xf32>
    %cst_70 = arith.constant 1.000000e+00 : f32
    %249 = vector.broadcast %cst_70 : f32 to vector<8x128xf32>
    %250 = arith.subf %249, %242 : vector<8x128xf32>
    %251 = arith.mulf %250, %248 : vector<8x128xf32>
    %252 = arith.mulf %242, %218 : vector<8x128xf32>
    %253 = arith.addf %251, %252 : vector<8x128xf32>
    %254 = arith.index_cast %222 : i32 to index
    %c0_71 = arith.constant 0 : index
    %255 = vector.load %arg14[%254, %c0_71] : memref<64x128xf32, #tpu.memory_space<vmem>>, vector<8x128xf32>
    tpu.vector_store %arg14[%254, %c0_71], %253 {strides = array<i32>} : memref<64x128xf32, #tpu.memory_space<vmem>>, vector<8x128xf32>,
    %c7_i32 = arith.constant 7 : i32
    %c8_i32_72 = arith.constant 8 : i32
    %256 = arith.muli %c7_i32, %c8_i32_72 : i32
    %257 = tpu.assume_multiple %256, 8 : i32
    %258 = arith.index_cast %257 : i32 to index
    %c0_73 = arith.constant 0 : index
    %259 = vector.load %arg13[%258, %c0_73] : memref<64x384xf32, #tpu.memory_space<vmem>>, vector<8x384xf32>
    %c0_74 = arith.constant 0 : index
    %c0_75 = arith.constant 0 : index
    %260 = vector.load %arg4[%c0_74, %c0_75] : memref<128x384xf32, #tpu.memory_space<vmem>>, vector<128x384xf32>
    %cst_76 = arith.constant dense<0.000000e+00> : vector<8x384xf32>
    %261 = tpu.matmul %253, %260, %cst_76 {dimension_numbers = #tpu.dot_dimension_numbers<[1], [0], [0], [1], [0, 0, 1, 1], [], []>} : vector<8x128xf32>, vector<128x384xf32>, vector<8x384xf32> -> vector<8x384xf32>
    %262 = vector.extract_strided_slice %259 {offsets = [0, 0], sizes = [8, 128], strides = [1, 1]} : vector<8x384xf32> to vector<8x128xf32>
    %263 = vector.extract_strided_slice %261 {offsets = [0, 0], sizes = [8, 128], strides = [1, 1]} : vector<8x384xf32> to vector<8x128xf32>
    %264 = arith.addf %262, %263 : vector<8x128xf32>
    %265 = arith.negf %264 : vector<8x128xf32>
    %266 = math.exp %265 : vector<8x128xf32>
    %cst_77 = arith.constant 1.000000e+00 : f32
    %267 = vector.broadcast %cst_77 : f32 to vector<8x128xf32>
    %268 = arith.addf %267, %266 : vector<8x128xf32>
    %269 = arith.divf %267, %268 : vector<8x128xf32>
    %270 = vector.extract_strided_slice %259 {offsets = [0, 128], sizes = [8, 128], strides = [1, 1]} : vector<8x384xf32> to vector<8x128xf32>
    %271 = vector.extract_strided_slice %261 {offsets = [0, 128], sizes = [8, 128], strides = [1, 1]} : vector<8x384xf32> to vector<8x128xf32>
    %272 = arith.addf %270, %271 : vector<8x128xf32>
    %273 = arith.negf %272 : vector<8x128xf32>
    %274 = math.exp %273 : vector<8x128xf32>
    %cst_78 = arith.constant 1.000000e+00 : f32
    %275 = vector.broadcast %cst_78 : f32 to vector<8x128xf32>
    %276 = arith.addf %275, %274 : vector<8x128xf32>
    %277 = arith.divf %275, %276 : vector<8x128xf32>
    %278 = vector.extract_strided_slice %259 {offsets = [0, 256], sizes = [8, 128], strides = [1, 1]} : vector<8x384xf32> to vector<8x128xf32>
    %279 = vector.extract_strided_slice %261 {offsets = [0, 256], sizes = [8, 128], strides = [1, 1]} : vector<8x384xf32> to vector<8x128xf32>
    %280 = arith.addf %279, %9 : vector<8x128xf32>
    %281 = arith.mulf %269, %280 : vector<8x128xf32>
    %282 = arith.addf %278, %281 : vector<8x128xf32>
    %283 = math.tanh %282 : vector<8x128xf32>
    %cst_79 = arith.constant 1.000000e+00 : f32
    %284 = vector.broadcast %cst_79 : f32 to vector<8x128xf32>
    %285 = arith.subf %284, %277 : vector<8x128xf32>
    %286 = arith.mulf %285, %283 : vector<8x128xf32>
    %287 = arith.mulf %277, %253 : vector<8x128xf32>
    %288 = arith.addf %286, %287 : vector<8x128xf32>
    %289 = arith.index_cast %257 : i32 to index
    %c0_80 = arith.constant 0 : index
    %290 = vector.load %arg14[%289, %c0_80] : memref<64x128xf32, #tpu.memory_space<vmem>>, vector<8x128xf32>
    tpu.vector_store %arg14[%289, %c0_80], %288 {strides = array<i32>} : memref<64x128xf32, #tpu.memory_space<vmem>>, vector<8x128xf32>,
    %c8_i32_81 = arith.constant 8 : i32
    %c0_82 = arith.constant 0 : index
    %c0_83 = arith.constant 0 : index
    %291 = vector.load %arg14[%c0_82, %c0_83] : memref<64x128xf32, #tpu.memory_space<vmem>>, vector<64x128xf32>
    %c0_84 = arith.constant 0 : index
    %c0_85 = arith.constant 0 : index
    %292 = vector.load %arg6[%c0_84, %c0_85] : memref<128x384xf32, #tpu.memory_space<vmem>>, vector<128x384xf32>
    %cst_86 = arith.constant dense<0.000000e+00> : vector<64x384xf32>
    %293 = tpu.matmul %291, %292, %cst_86 {dimension_numbers = #tpu.dot_dimension_numbers<[1], [0], [0], [1], [0, 0, 1, 1], [], []>} : vector<64x128xf32>, vector<128x384xf32>, vector<64x384xf32> -> vector<64x384xf32>
    %c0_87 = arith.constant 0 : index
    %c0_88 = arith.constant 0 : index
    %294 = vector.load %arg7[%c0_87, %c0_88] : memref<1x384xf32, #tpu.memory_space<vmem>>, vector<1x384xf32>
    %295 = vector.broadcast %294 : vector<1x384xf32> to vector<64x384xf32>
    %296 = arith.addf %293, %295 : vector<64x384xf32>
    %c0_89 = arith.constant 0 : index
    %c0_90 = arith.constant 0 : index
    %297 = vector.load %arg13[%c0_89, %c0_90] : memref<64x384xf32, #tpu.memory_space<vmem>>, vector<64x384xf32>
    tpu.vector_store %arg13[%c0_89, %c0_90], %296 {strides = array<i32>} : memref<64x384xf32, #tpu.memory_space<vmem>>, vector<64x384xf32>,
    %c0_91 = arith.constant 0 : index
    %c0_92 = arith.constant 0 : index
    %298 = vector.load %arg9[%c0_91, %c0_92] : memref<1x128xf32, #tpu.memory_space<vmem>>, vector<1x128xf32>
    %299 = vector.shape_cast %298 : vector<1x128xf32> to vector<1x128xf32>
    %300 = vector.broadcast %299 : vector<1x128xf32> to vector<8x128xf32>
    %cst_93 = arith.constant 0.000000e+00 : f32
    %301 = vector.broadcast %cst_93 : f32 to vector<8x128xf32>
    %c0_i32_94 = arith.constant 0 : i32
    %c8_i32_95 = arith.constant 8 : i32
    %302 = arith.muli %c0_i32_94, %c8_i32_95 : i32
    %303 = tpu.assume_multiple %302, 8 : i32
    %304 = arith.index_cast %303 : i32 to index
    %c0_96 = arith.constant 0 : index
    %305 = vector.load %arg13[%304, %c0_96] : memref<64x384xf32, #tpu.memory_space<vmem>>, vector<8x384xf32>
    %c0_97 = arith.constant 0 : index
    %c0_98 = arith.constant 0 : index
    %306 = vector.load %arg8[%c0_97, %c0_98] : memref<128x384xf32, #tpu.memory_space<vmem>>, vector<128x384xf32>
    %cst_99 = arith.constant dense<0.000000e+00> : vector<8x384xf32>
    %307 = tpu.matmul %301, %306, %cst_99 {dimension_numbers = #tpu.dot_dimension_numbers<[1], [0], [0], [1], [0, 0, 1, 1], [], []>} : vector<8x128xf32>, vector<128x384xf32>, vector<8x384xf32> -> vector<8x384xf32>
    %308 = vector.extract_strided_slice %305 {offsets = [0, 0], sizes = [8, 128], strides = [1, 1]} : vector<8x384xf32> to vector<8x128xf32>
    %309 = vector.extract_strided_slice %307 {offsets = [0, 0], sizes = [8, 128], strides = [1, 1]} : vector<8x384xf32> to vector<8x128xf32>
    %310 = arith.addf %308, %309 : vector<8x128xf32>
    %311 = arith.negf %310 : vector<8x128xf32>
    %312 = math.exp %311 : vector<8x128xf32>
    %cst_100 = arith.constant 1.000000e+00 : f32
    %313 = vector.broadcast %cst_100 : f32 to vector<8x128xf32>
    %314 = arith.addf %313, %312 : vector<8x128xf32>
    %315 = arith.divf %313, %314 : vector<8x128xf32>
    %316 = vector.extract_strided_slice %305 {offsets = [0, 128], sizes = [8, 128], strides = [1, 1]} : vector<8x384xf32> to vector<8x128xf32>
    %317 = vector.extract_strided_slice %307 {offsets = [0, 128], sizes = [8, 128], strides = [1, 1]} : vector<8x384xf32> to vector<8x128xf32>
    %318 = arith.addf %316, %317 : vector<8x128xf32>
    %319 = arith.negf %318 : vector<8x128xf32>
    %320 = math.exp %319 : vector<8x128xf32>
    %cst_101 = arith.constant 1.000000e+00 : f32
    %321 = vector.broadcast %cst_101 : f32 to vector<8x128xf32>
    %322 = arith.addf %321, %320 : vector<8x128xf32>
    %323 = arith.divf %321, %322 : vector<8x128xf32>
    %324 = vector.extract_strided_slice %305 {offsets = [0, 256], sizes = [8, 128], strides = [1, 1]} : vector<8x384xf32> to vector<8x128xf32>
    %325 = vector.extract_strided_slice %307 {offsets = [0, 256], sizes = [8, 128], strides = [1, 1]} : vector<8x384xf32> to vector<8x128xf32>
    %326 = arith.addf %325, %300 : vector<8x128xf32>
    %327 = arith.mulf %315, %326 : vector<8x128xf32>
    %328 = arith.addf %324, %327 : vector<8x128xf32>
    %329 = math.tanh %328 : vector<8x128xf32>
    %cst_102 = arith.constant 1.000000e+00 : f32
    %330 = vector.broadcast %cst_102 : f32 to vector<8x128xf32>
    %331 = arith.subf %330, %323 : vector<8x128xf32>
    %332 = arith.mulf %331, %329 : vector<8x128xf32>
    %333 = arith.mulf %323, %301 : vector<8x128xf32>
    %334 = arith.addf %332, %333 : vector<8x128xf32>
    %335 = arith.index_cast %303 : i32 to index
    %c0_103 = arith.constant 0 : index
    %336 = vector.load %arg14[%335, %c0_103] : memref<64x128xf32, #tpu.memory_space<vmem>>, vector<8x128xf32>
    tpu.vector_store %arg14[%335, %c0_103], %334 {strides = array<i32>} : memref<64x128xf32, #tpu.memory_space<vmem>>, vector<8x128xf32>,
    %c1_i32_104 = arith.constant 1 : i32
    %c8_i32_105 = arith.constant 8 : i32
    %337 = arith.muli %c1_i32_104, %c8_i32_105 : i32
    %338 = tpu.assume_multiple %337, 8 : i32
    %339 = arith.index_cast %338 : i32 to index
    %c0_106 = arith.constant 0 : index
    %340 = vector.load %arg13[%339, %c0_106] : memref<64x384xf32, #tpu.memory_space<vmem>>, vector<8x384xf32>
    %c0_107 = arith.constant 0 : index
    %c0_108 = arith.constant 0 : index
    %341 = vector.load %arg8[%c0_107, %c0_108] : memref<128x384xf32, #tpu.memory_space<vmem>>, vector<128x384xf32>
    %cst_109 = arith.constant dense<0.000000e+00> : vector<8x384xf32>
    %342 = tpu.matmul %334, %341, %cst_109 {dimension_numbers = #tpu.dot_dimension_numbers<[1], [0], [0], [1], [0, 0, 1, 1], [], []>} : vector<8x128xf32>, vector<128x384xf32>, vector<8x384xf32> -> vector<8x384xf32>
    %343 = vector.extract_strided_slice %340 {offsets = [0, 0], sizes = [8, 128], strides = [1, 1]} : vector<8x384xf32> to vector<8x128xf32>
    %344 = vector.extract_strided_slice %342 {offsets = [0, 0], sizes = [8, 128], strides = [1, 1]} : vector<8x384xf32> to vector<8x128xf32>
    %345 = arith.addf %343, %344 : vector<8x128xf32>
    %346 = arith.negf %345 : vector<8x128xf32>
    %347 = math.exp %346 : vector<8x128xf32>
    %cst_110 = arith.constant 1.000000e+00 : f32
    %348 = vector.broadcast %cst_110 : f32 to vector<8x128xf32>
    %349 = arith.addf %348, %347 : vector<8x128xf32>
    %350 = arith.divf %348, %349 : vector<8x128xf32>
    %351 = vector.extract_strided_slice %340 {offsets = [0, 128], sizes = [8, 128], strides = [1, 1]} : vector<8x384xf32> to vector<8x128xf32>
    %352 = vector.extract_strided_slice %342 {offsets = [0, 128], sizes = [8, 128], strides = [1, 1]} : vector<8x384xf32> to vector<8x128xf32>
    %353 = arith.addf %351, %352 : vector<8x128xf32>
    %354 = arith.negf %353 : vector<8x128xf32>
    %355 = math.exp %354 : vector<8x128xf32>
    %cst_111 = arith.constant 1.000000e+00 : f32
    %356 = vector.broadcast %cst_111 : f32 to vector<8x128xf32>
    %357 = arith.addf %356, %355 : vector<8x128xf32>
    %358 = arith.divf %356, %357 : vector<8x128xf32>
    %359 = vector.extract_strided_slice %340 {offsets = [0, 256], sizes = [8, 128], strides = [1, 1]} : vector<8x384xf32> to vector<8x128xf32>
    %360 = vector.extract_strided_slice %342 {offsets = [0, 256], sizes = [8, 128], strides = [1, 1]} : vector<8x384xf32> to vector<8x128xf32>
    %361 = arith.addf %360, %300 : vector<8x128xf32>
    %362 = arith.mulf %350, %361 : vector<8x128xf32>
    %363 = arith.addf %359, %362 : vector<8x128xf32>
    %364 = math.tanh %363 : vector<8x128xf32>
    %cst_112 = arith.constant 1.000000e+00 : f32
    %365 = vector.broadcast %cst_112 : f32 to vector<8x128xf32>
    %366 = arith.subf %365, %358 : vector<8x128xf32>
    %367 = arith.mulf %366, %364 : vector<8x128xf32>
    %368 = arith.mulf %358, %334 : vector<8x128xf32>
    %369 = arith.addf %367, %368 : vector<8x128xf32>
    %370 = arith.index_cast %338 : i32 to index
    %c0_113 = arith.constant 0 : index
    %371 = vector.load %arg14[%370, %c0_113] : memref<64x128xf32, #tpu.memory_space<vmem>>, vector<8x128xf32>
    tpu.vector_store %arg14[%370, %c0_113], %369 {strides = array<i32>} : memref<64x128xf32, #tpu.memory_space<vmem>>, vector<8x128xf32>,
    %c2_i32_114 = arith.constant 2 : i32
    %c8_i32_115 = arith.constant 8 : i32
    %372 = arith.muli %c2_i32_114, %c8_i32_115 : i32
    %373 = tpu.assume_multiple %372, 8 : i32
    %374 = arith.index_cast %373 : i32 to index
    %c0_116 = arith.constant 0 : index
    %375 = vector.load %arg13[%374, %c0_116] : memref<64x384xf32, #tpu.memory_space<vmem>>, vector<8x384xf32>
    %c0_117 = arith.constant 0 : index
    %c0_118 = arith.constant 0 : index
    %376 = vector.load %arg8[%c0_117, %c0_118] : memref<128x384xf32, #tpu.memory_space<vmem>>, vector<128x384xf32>
    %cst_119 = arith.constant dense<0.000000e+00> : vector<8x384xf32>
    %377 = tpu.matmul %369, %376, %cst_119 {dimension_numbers = #tpu.dot_dimension_numbers<[1], [0], [0], [1], [0, 0, 1, 1], [], []>} : vector<8x128xf32>, vector<128x384xf32>, vector<8x384xf32> -> vector<8x384xf32>
    %378 = vector.extract_strided_slice %375 {offsets = [0, 0], sizes = [8, 128], strides = [1, 1]} : vector<8x384xf32> to vector<8x128xf32>
    %379 = vector.extract_strided_slice %377 {offsets = [0, 0], sizes = [8, 128], strides = [1, 1]} : vector<8x384xf32> to vector<8x128xf32>
    %380 = arith.addf %378, %379 : vector<8x128xf32>
    %381 = arith.negf %380 : vector<8x128xf32>
    %382 = math.exp %381 : vector<8x128xf32>
    %cst_120 = arith.constant 1.000000e+00 : f32
    %383 = vector.broadcast %cst_120 : f32 to vector<8x128xf32>
    %384 = arith.addf %383, %382 : vector<8x128xf32>
    %385 = arith.divf %383, %384 : vector<8x128xf32>
    %386 = vector.extract_strided_slice %375 {offsets = [0, 128], sizes = [8, 128], strides = [1, 1]} : vector<8x384xf32> to vector<8x128xf32>
    %387 = vector.extract_strided_slice %377 {offsets = [0, 128], sizes = [8, 128], strides = [1, 1]} : vector<8x384xf32> to vector<8x128xf32>
    %388 = arith.addf %386, %387 : vector<8x128xf32>
    %389 = arith.negf %388 : vector<8x128xf32>
    %390 = math.exp %389 : vector<8x128xf32>
    %cst_121 = arith.constant 1.000000e+00 : f32
    %391 = vector.broadcast %cst_121 : f32 to vector<8x128xf32>
    %392 = arith.addf %391, %390 : vector<8x128xf32>
    %393 = arith.divf %391, %392 : vector<8x128xf32>
    %394 = vector.extract_strided_slice %375 {offsets = [0, 256], sizes = [8, 128], strides = [1, 1]} : vector<8x384xf32> to vector<8x128xf32>
    %395 = vector.extract_strided_slice %377 {offsets = [0, 256], sizes = [8, 128], strides = [1, 1]} : vector<8x384xf32> to vector<8x128xf32>
    %396 = arith.addf %395, %300 : vector<8x128xf32>
    %397 = arith.mulf %385, %396 : vector<8x128xf32>
    %398 = arith.addf %394, %397 : vector<8x128xf32>
    %399 = math.tanh %398 : vector<8x128xf32>
    %cst_122 = arith.constant 1.000000e+00 : f32
    %400 = vector.broadcast %cst_122 : f32 to vector<8x128xf32>
    %401 = arith.subf %400, %393 : vector<8x128xf32>
    %402 = arith.mulf %401, %399 : vector<8x128xf32>
    %403 = arith.mulf %393, %369 : vector<8x128xf32>
    %404 = arith.addf %402, %403 : vector<8x128xf32>
    %405 = arith.index_cast %373 : i32 to index
    %c0_123 = arith.constant 0 : index
    %406 = vector.load %arg14[%405, %c0_123] : memref<64x128xf32, #tpu.memory_space<vmem>>, vector<8x128xf32>
    tpu.vector_store %arg14[%405, %c0_123], %404 {strides = array<i32>} : memref<64x128xf32, #tpu.memory_space<vmem>>, vector<8x128xf32>,
    %c3_i32_124 = arith.constant 3 : i32
    %c8_i32_125 = arith.constant 8 : i32
    %407 = arith.muli %c3_i32_124, %c8_i32_125 : i32
    %408 = tpu.assume_multiple %407, 8 : i32
    %409 = arith.index_cast %408 : i32 to index
    %c0_126 = arith.constant 0 : index
    %410 = vector.load %arg13[%409, %c0_126] : memref<64x384xf32, #tpu.memory_space<vmem>>, vector<8x384xf32>
    %c0_127 = arith.constant 0 : index
    %c0_128 = arith.constant 0 : index
    %411 = vector.load %arg8[%c0_127, %c0_128] : memref<128x384xf32, #tpu.memory_space<vmem>>, vector<128x384xf32>
    %cst_129 = arith.constant dense<0.000000e+00> : vector<8x384xf32>
    %412 = tpu.matmul %404, %411, %cst_129 {dimension_numbers = #tpu.dot_dimension_numbers<[1], [0], [0], [1], [0, 0, 1, 1], [], []>} : vector<8x128xf32>, vector<128x384xf32>, vector<8x384xf32> -> vector<8x384xf32>
    %413 = vector.extract_strided_slice %410 {offsets = [0, 0], sizes = [8, 128], strides = [1, 1]} : vector<8x384xf32> to vector<8x128xf32>
    %414 = vector.extract_strided_slice %412 {offsets = [0, 0], sizes = [8, 128], strides = [1, 1]} : vector<8x384xf32> to vector<8x128xf32>
    %415 = arith.addf %413, %414 : vector<8x128xf32>
    %416 = arith.negf %415 : vector<8x128xf32>
    %417 = math.exp %416 : vector<8x128xf32>
    %cst_130 = arith.constant 1.000000e+00 : f32
    %418 = vector.broadcast %cst_130 : f32 to vector<8x128xf32>
    %419 = arith.addf %418, %417 : vector<8x128xf32>
    %420 = arith.divf %418, %419 : vector<8x128xf32>
    %421 = vector.extract_strided_slice %410 {offsets = [0, 128], sizes = [8, 128], strides = [1, 1]} : vector<8x384xf32> to vector<8x128xf32>
    %422 = vector.extract_strided_slice %412 {offsets = [0, 128], sizes = [8, 128], strides = [1, 1]} : vector<8x384xf32> to vector<8x128xf32>
    %423 = arith.addf %421, %422 : vector<8x128xf32>
    %424 = arith.negf %423 : vector<8x128xf32>
    %425 = math.exp %424 : vector<8x128xf32>
    %cst_131 = arith.constant 1.000000e+00 : f32
    %426 = vector.broadcast %cst_131 : f32 to vector<8x128xf32>
    %427 = arith.addf %426, %425 : vector<8x128xf32>
    %428 = arith.divf %426, %427 : vector<8x128xf32>
    %429 = vector.extract_strided_slice %410 {offsets = [0, 256], sizes = [8, 128], strides = [1, 1]} : vector<8x384xf32> to vector<8x128xf32>
    %430 = vector.extract_strided_slice %412 {offsets = [0, 256], sizes = [8, 128], strides = [1, 1]} : vector<8x384xf32> to vector<8x128xf32>
    %431 = arith.addf %430, %300 : vector<8x128xf32>
    %432 = arith.mulf %420, %431 : vector<8x128xf32>
    %433 = arith.addf %429, %432 : vector<8x128xf32>
    %434 = math.tanh %433 : vector<8x128xf32>
    %cst_132 = arith.constant 1.000000e+00 : f32
    %435 = vector.broadcast %cst_132 : f32 to vector<8x128xf32>
    %436 = arith.subf %435, %428 : vector<8x128xf32>
    %437 = arith.mulf %436, %434 : vector<8x128xf32>
    %438 = arith.mulf %428, %404 : vector<8x128xf32>
    %439 = arith.addf %437, %438 : vector<8x128xf32>
    %440 = arith.index_cast %408 : i32 to index
    %c0_133 = arith.constant 0 : index
    %441 = vector.load %arg14[%440, %c0_133] : memref<64x128xf32, #tpu.memory_space<vmem>>, vector<8x128xf32>
    tpu.vector_store %arg14[%440, %c0_133], %439 {strides = array<i32>} : memref<64x128xf32, #tpu.memory_space<vmem>>, vector<8x128xf32>,
    %c4_i32_134 = arith.constant 4 : i32
    %c8_i32_135 = arith.constant 8 : i32
    %442 = arith.muli %c4_i32_134, %c8_i32_135 : i32
    %443 = tpu.assume_multiple %442, 8 : i32
    %444 = arith.index_cast %443 : i32 to index
    %c0_136 = arith.constant 0 : index
    %445 = vector.load %arg13[%444, %c0_136] : memref<64x384xf32, #tpu.memory_space<vmem>>, vector<8x384xf32>
    %c0_137 = arith.constant 0 : index
    %c0_138 = arith.constant 0 : index
    %446 = vector.load %arg8[%c0_137, %c0_138] : memref<128x384xf32, #tpu.memory_space<vmem>>, vector<128x384xf32>
    %cst_139 = arith.constant dense<0.000000e+00> : vector<8x384xf32>
    %447 = tpu.matmul %439, %446, %cst_139 {dimension_numbers = #tpu.dot_dimension_numbers<[1], [0], [0], [1], [0, 0, 1, 1], [], []>} : vector<8x128xf32>, vector<128x384xf32>, vector<8x384xf32> -> vector<8x384xf32>
    %448 = vector.extract_strided_slice %445 {offsets = [0, 0], sizes = [8, 128], strides = [1, 1]} : vector<8x384xf32> to vector<8x128xf32>
    %449 = vector.extract_strided_slice %447 {offsets = [0, 0], sizes = [8, 128], strides = [1, 1]} : vector<8x384xf32> to vector<8x128xf32>
    %450 = arith.addf %448, %449 : vector<8x128xf32>
    %451 = arith.negf %450 : vector<8x128xf32>
    %452 = math.exp %451 : vector<8x128xf32>
    %cst_140 = arith.constant 1.000000e+00 : f32
    %453 = vector.broadcast %cst_140 : f32 to vector<8x128xf32>
    %454 = arith.addf %453, %452 : vector<8x128xf32>
    %455 = arith.divf %453, %454 : vector<8x128xf32>
    %456 = vector.extract_strided_slice %445 {offsets = [0, 128], sizes = [8, 128], strides = [1, 1]} : vector<8x384xf32> to vector<8x128xf32>
    %457 = vector.extract_strided_slice %447 {offsets = [0, 128], sizes = [8, 128], strides = [1, 1]} : vector<8x384xf32> to vector<8x128xf32>
    %458 = arith.addf %456, %457 : vector<8x128xf32>
    %459 = arith.negf %458 : vector<8x128xf32>
    %460 = math.exp %459 : vector<8x128xf32>
    %cst_141 = arith.constant 1.000000e+00 : f32
    %461 = vector.broadcast %cst_141 : f32 to vector<8x128xf32>
    %462 = arith.addf %461, %460 : vector<8x128xf32>
    %463 = arith.divf %461, %462 : vector<8x128xf32>
    %464 = vector.extract_strided_slice %445 {offsets = [0, 256], sizes = [8, 128], strides = [1, 1]} : vector<8x384xf32> to vector<8x128xf32>
    %465 = vector.extract_strided_slice %447 {offsets = [0, 256], sizes = [8, 128], strides = [1, 1]} : vector<8x384xf32> to vector<8x128xf32>
    %466 = arith.addf %465, %300 : vector<8x128xf32>
    %467 = arith.mulf %455, %466 : vector<8x128xf32>
    %468 = arith.addf %464, %467 : vector<8x128xf32>
    %469 = math.tanh %468 : vector<8x128xf32>
    %cst_142 = arith.constant 1.000000e+00 : f32
    %470 = vector.broadcast %cst_142 : f32 to vector<8x128xf32>
    %471 = arith.subf %470, %463 : vector<8x128xf32>
    %472 = arith.mulf %471, %469 : vector<8x128xf32>
    %473 = arith.mulf %463, %439 : vector<8x128xf32>
    %474 = arith.addf %472, %473 : vector<8x128xf32>
    %475 = arith.index_cast %443 : i32 to index
    %c0_143 = arith.constant 0 : index
    %476 = vector.load %arg14[%475, %c0_143] : memref<64x128xf32, #tpu.memory_space<vmem>>, vector<8x128xf32>
    tpu.vector_store %arg14[%475, %c0_143], %474 {strides = array<i32>} : memref<64x128xf32, #tpu.memory_space<vmem>>, vector<8x128xf32>,
    %c5_i32_144 = arith.constant 5 : i32
    %c8_i32_145 = arith.constant 8 : i32
    %477 = arith.muli %c5_i32_144, %c8_i32_145 : i32
    %478 = tpu.assume_multiple %477, 8 : i32
    %479 = arith.index_cast %478 : i32 to index
    %c0_146 = arith.constant 0 : index
    %480 = vector.load %arg13[%479, %c0_146] : memref<64x384xf32, #tpu.memory_space<vmem>>, vector<8x384xf32>
    %c0_147 = arith.constant 0 : index
    %c0_148 = arith.constant 0 : index
    %481 = vector.load %arg8[%c0_147, %c0_148] : memref<128x384xf32, #tpu.memory_space<vmem>>, vector<128x384xf32>
    %cst_149 = arith.constant dense<0.000000e+00> : vector<8x384xf32>
    %482 = tpu.matmul %474, %481, %cst_149 {dimension_numbers = #tpu.dot_dimension_numbers<[1], [0], [0], [1], [0, 0, 1, 1], [], []>} : vector<8x128xf32>, vector<128x384xf32>, vector<8x384xf32> -> vector<8x384xf32>
    %483 = vector.extract_strided_slice %480 {offsets = [0, 0], sizes = [8, 128], strides = [1, 1]} : vector<8x384xf32> to vector<8x128xf32>
    %484 = vector.extract_strided_slice %482 {offsets = [0, 0], sizes = [8, 128], strides = [1, 1]} : vector<8x384xf32> to vector<8x128xf32>
    %485 = arith.addf %483, %484 : vector<8x128xf32>
    %486 = arith.negf %485 : vector<8x128xf32>
    %487 = math.exp %486 : vector<8x128xf32>
    %cst_150 = arith.constant 1.000000e+00 : f32
    %488 = vector.broadcast %cst_150 : f32 to vector<8x128xf32>
    %489 = arith.addf %488, %487 : vector<8x128xf32>
    %490 = arith.divf %488, %489 : vector<8x128xf32>
    %491 = vector.extract_strided_slice %480 {offsets = [0, 128], sizes = [8, 128], strides = [1, 1]} : vector<8x384xf32> to vector<8x128xf32>
    %492 = vector.extract_strided_slice %482 {offsets = [0, 128], sizes = [8, 128], strides = [1, 1]} : vector<8x384xf32> to vector<8x128xf32>
    %493 = arith.addf %491, %492 : vector<8x128xf32>
    %494 = arith.negf %493 : vector<8x128xf32>
    %495 = math.exp %494 : vector<8x128xf32>
    %cst_151 = arith.constant 1.000000e+00 : f32
    %496 = vector.broadcast %cst_151 : f32 to vector<8x128xf32>
    %497 = arith.addf %496, %495 : vector<8x128xf32>
    %498 = arith.divf %496, %497 : vector<8x128xf32>
    %499 = vector.extract_strided_slice %480 {offsets = [0, 256], sizes = [8, 128], strides = [1, 1]} : vector<8x384xf32> to vector<8x128xf32>
    %500 = vector.extract_strided_slice %482 {offsets = [0, 256], sizes = [8, 128], strides = [1, 1]} : vector<8x384xf32> to vector<8x128xf32>
    %501 = arith.addf %500, %300 : vector<8x128xf32>
    %502 = arith.mulf %490, %501 : vector<8x128xf32>
    %503 = arith.addf %499, %502 : vector<8x128xf32>
    %504 = math.tanh %503 : vector<8x128xf32>
    %cst_152 = arith.constant 1.000000e+00 : f32
    %505 = vector.broadcast %cst_152 : f32 to vector<8x128xf32>
    %506 = arith.subf %505, %498 : vector<8x128xf32>
    %507 = arith.mulf %506, %504 : vector<8x128xf32>
    %508 = arith.mulf %498, %474 : vector<8x128xf32>
    %509 = arith.addf %507, %508 : vector<8x128xf32>
    %510 = arith.index_cast %478 : i32 to index
    %c0_153 = arith.constant 0 : index
    %511 = vector.load %arg14[%510, %c0_153] : memref<64x128xf32, #tpu.memory_space<vmem>>, vector<8x128xf32>
    tpu.vector_store %arg14[%510, %c0_153], %509 {strides = array<i32>} : memref<64x128xf32, #tpu.memory_space<vmem>>, vector<8x128xf32>,
    %c6_i32_154 = arith.constant 6 : i32
    %c8_i32_155 = arith.constant 8 : i32
    %512 = arith.muli %c6_i32_154, %c8_i32_155 : i32
    %513 = tpu.assume_multiple %512, 8 : i32
    %514 = arith.index_cast %513 : i32 to index
    %c0_156 = arith.constant 0 : index
    %515 = vector.load %arg13[%514, %c0_156] : memref<64x384xf32, #tpu.memory_space<vmem>>, vector<8x384xf32>
    %c0_157 = arith.constant 0 : index
    %c0_158 = arith.constant 0 : index
    %516 = vector.load %arg8[%c0_157, %c0_158] : memref<128x384xf32, #tpu.memory_space<vmem>>, vector<128x384xf32>
    %cst_159 = arith.constant dense<0.000000e+00> : vector<8x384xf32>
    %517 = tpu.matmul %509, %516, %cst_159 {dimension_numbers = #tpu.dot_dimension_numbers<[1], [0], [0], [1], [0, 0, 1, 1], [], []>} : vector<8x128xf32>, vector<128x384xf32>, vector<8x384xf32> -> vector<8x384xf32>
    %518 = vector.extract_strided_slice %515 {offsets = [0, 0], sizes = [8, 128], strides = [1, 1]} : vector<8x384xf32> to vector<8x128xf32>
    %519 = vector.extract_strided_slice %517 {offsets = [0, 0], sizes = [8, 128], strides = [1, 1]} : vector<8x384xf32> to vector<8x128xf32>
    %520 = arith.addf %518, %519 : vector<8x128xf32>
    %521 = arith.negf %520 : vector<8x128xf32>
    %522 = math.exp %521 : vector<8x128xf32>
    %cst_160 = arith.constant 1.000000e+00 : f32
    %523 = vector.broadcast %cst_160 : f32 to vector<8x128xf32>
    %524 = arith.addf %523, %522 : vector<8x128xf32>
    %525 = arith.divf %523, %524 : vector<8x128xf32>
    %526 = vector.extract_strided_slice %515 {offsets = [0, 128], sizes = [8, 128], strides = [1, 1]} : vector<8x384xf32> to vector<8x128xf32>
    %527 = vector.extract_strided_slice %517 {offsets = [0, 128], sizes = [8, 128], strides = [1, 1]} : vector<8x384xf32> to vector<8x128xf32>
    %528 = arith.addf %526, %527 : vector<8x128xf32>
    %529 = arith.negf %528 : vector<8x128xf32>
    %530 = math.exp %529 : vector<8x128xf32>
    %cst_161 = arith.constant 1.000000e+00 : f32
    %531 = vector.broadcast %cst_161 : f32 to vector<8x128xf32>
    %532 = arith.addf %531, %530 : vector<8x128xf32>
    %533 = arith.divf %531, %532 : vector<8x128xf32>
    %534 = vector.extract_strided_slice %515 {offsets = [0, 256], sizes = [8, 128], strides = [1, 1]} : vector<8x384xf32> to vector<8x128xf32>
    %535 = vector.extract_strided_slice %517 {offsets = [0, 256], sizes = [8, 128], strides = [1, 1]} : vector<8x384xf32> to vector<8x128xf32>
    %536 = arith.addf %535, %300 : vector<8x128xf32>
    %537 = arith.mulf %525, %536 : vector<8x128xf32>
    %538 = arith.addf %534, %537 : vector<8x128xf32>
    %539 = math.tanh %538 : vector<8x128xf32>
    %cst_162 = arith.constant 1.000000e+00 : f32
    %540 = vector.broadcast %cst_162 : f32 to vector<8x128xf32>
    %541 = arith.subf %540, %533 : vector<8x128xf32>
    %542 = arith.mulf %541, %539 : vector<8x128xf32>
    %543 = arith.mulf %533, %509 : vector<8x128xf32>
    %544 = arith.addf %542, %543 : vector<8x128xf32>
    %545 = arith.index_cast %513 : i32 to index
    %c0_163 = arith.constant 0 : index
    %546 = vector.load %arg14[%545, %c0_163] : memref<64x128xf32, #tpu.memory_space<vmem>>, vector<8x128xf32>
    tpu.vector_store %arg14[%545, %c0_163], %544 {strides = array<i32>} : memref<64x128xf32, #tpu.memory_space<vmem>>, vector<8x128xf32>,
    %c7_i32_164 = arith.constant 7 : i32
    %c8_i32_165 = arith.constant 8 : i32
    %547 = arith.muli %c7_i32_164, %c8_i32_165 : i32
    %548 = tpu.assume_multiple %547, 8 : i32
    %549 = arith.index_cast %548 : i32 to index
    %c0_166 = arith.constant 0 : index
    %550 = vector.load %arg13[%549, %c0_166] : memref<64x384xf32, #tpu.memory_space<vmem>>, vector<8x384xf32>
    %c0_167 = arith.constant 0 : index
    %c0_168 = arith.constant 0 : index
    %551 = vector.load %arg8[%c0_167, %c0_168] : memref<128x384xf32, #tpu.memory_space<vmem>>, vector<128x384xf32>
    %cst_169 = arith.constant dense<0.000000e+00> : vector<8x384xf32>
    %552 = tpu.matmul %544, %551, %cst_169 {dimension_numbers = #tpu.dot_dimension_numbers<[1], [0], [0], [1], [0, 0, 1, 1], [], []>} : vector<8x128xf32>, vector<128x384xf32>, vector<8x384xf32> -> vector<8x384xf32>
    %553 = vector.extract_strided_slice %550 {offsets = [0, 0], sizes = [8, 128], strides = [1, 1]} : vector<8x384xf32> to vector<8x128xf32>
    %554 = vector.extract_strided_slice %552 {offsets = [0, 0], sizes = [8, 128], strides = [1, 1]} : vector<8x384xf32> to vector<8x128xf32>
    %555 = arith.addf %553, %554 : vector<8x128xf32>
    %556 = arith.negf %555 : vector<8x128xf32>
    %557 = math.exp %556 : vector<8x128xf32>
    %cst_170 = arith.constant 1.000000e+00 : f32
    %558 = vector.broadcast %cst_170 : f32 to vector<8x128xf32>
    %559 = arith.addf %558, %557 : vector<8x128xf32>
    %560 = arith.divf %558, %559 : vector<8x128xf32>
    %561 = vector.extract_strided_slice %550 {offsets = [0, 128], sizes = [8, 128], strides = [1, 1]} : vector<8x384xf32> to vector<8x128xf32>
    %562 = vector.extract_strided_slice %552 {offsets = [0, 128], sizes = [8, 128], strides = [1, 1]} : vector<8x384xf32> to vector<8x128xf32>
    %563 = arith.addf %561, %562 : vector<8x128xf32>
    %564 = arith.negf %563 : vector<8x128xf32>
    %565 = math.exp %564 : vector<8x128xf32>
    %cst_171 = arith.constant 1.000000e+00 : f32
    %566 = vector.broadcast %cst_171 : f32 to vector<8x128xf32>
    %567 = arith.addf %566, %565 : vector<8x128xf32>
    %568 = arith.divf %566, %567 : vector<8x128xf32>
    %569 = vector.extract_strided_slice %550 {offsets = [0, 256], sizes = [8, 128], strides = [1, 1]} : vector<8x384xf32> to vector<8x128xf32>
    %570 = vector.extract_strided_slice %552 {offsets = [0, 256], sizes = [8, 128], strides = [1, 1]} : vector<8x384xf32> to vector<8x128xf32>
    %571 = arith.addf %570, %300 : vector<8x128xf32>
    %572 = arith.mulf %560, %571 : vector<8x128xf32>
    %573 = arith.addf %569, %572 : vector<8x128xf32>
    %574 = math.tanh %573 : vector<8x128xf32>
    %cst_172 = arith.constant 1.000000e+00 : f32
    %575 = vector.broadcast %cst_172 : f32 to vector<8x128xf32>
    %576 = arith.subf %575, %568 : vector<8x128xf32>
    %577 = arith.mulf %576, %574 : vector<8x128xf32>
    %578 = arith.mulf %568, %544 : vector<8x128xf32>
    %579 = arith.addf %577, %578 : vector<8x128xf32>
    %580 = arith.index_cast %548 : i32 to index
    %c0_173 = arith.constant 0 : index
    %581 = vector.load %arg14[%580, %c0_173] : memref<64x128xf32, #tpu.memory_space<vmem>>, vector<8x128xf32>
    tpu.vector_store %arg14[%580, %c0_173], %579 {strides = array<i32>} : memref<64x128xf32, #tpu.memory_space<vmem>>, vector<8x128xf32>,
    %c8_i32_174 = arith.constant 8 : i32
    %c0_175 = arith.constant 0 : index
    %c0_176 = arith.constant 0 : index
    %582 = vector.load %arg14[%c0_175, %c0_176] : memref<64x128xf32, #tpu.memory_space<vmem>>, vector<64x128xf32>
    %c0_177 = arith.constant 0 : index
    %c0_178 = arith.constant 0 : index
    %583 = vector.load %arg10[%c0_177, %c0_178] : memref<128x128xf32, #tpu.memory_space<vmem>>, vector<128x128xf32>
    %cst_179 = arith.constant dense<0.000000e+00> : vector<64x128xf32>
    %584 = tpu.matmul %582, %583, %cst_179 {dimension_numbers = #tpu.dot_dimension_numbers<[1], [0], [0], [1], [0, 0, 1, 1], [], []>} : vector<64x128xf32>, vector<128x128xf32>, vector<64x128xf32> -> vector<64x128xf32>
    %c0_180 = arith.constant 0 : index
    %c0_181 = arith.constant 0 : index
    %585 = vector.load %arg11[%c0_180, %c0_181] : memref<1x128xf32, #tpu.memory_space<vmem>>, vector<1x128xf32>
    %586 = vector.broadcast %585 : vector<1x128xf32> to vector<64x128xf32>
    %587 = arith.addf %584, %586 : vector<64x128xf32>
    %c0_182 = arith.constant 0 : index
    %c0_183 = arith.constant 0 : index
    %588 = vector.load %arg12[%c0_182, %c0_183] : memref<64x128xf32, #tpu.memory_space<vmem>>, vector<64x128xf32>
    tpu.vector_store %arg12[%c0_182, %c0_183], %587 {strides = array<i32>} : memref<64x128xf32, #tpu.memory_space<vmem>>, vector<64x128xf32>,
    return
  }
  func.func @transform_0(%arg0: i32) -> (i32, i32) {
    %c0_i32 = arith.constant 0 : i32
    %c0_i32_0 = arith.constant 0 : i32
    %c0_i32_1 = arith.constant 0 : i32
    return %c0_i32, %c0_i32_0 : i32, i32
  }
  func.func @transform_1(%arg0: i32) -> (i32, i32) {
    %c0_i32 = arith.constant 0 : i32
    %c0_i32_0 = arith.constant 0 : i32
    %c0_i32_1 = arith.constant 0 : i32
    return %c0_i32, %c0_i32_0 : i32, i32
  }
  func.func @transform_2(%arg0: i32) -> (i32, i32) {
    %c0_i32 = arith.constant 0 : i32
    %c0_i32_0 = arith.constant 0 : i32
    %c0_i32_1 = arith.constant 0 : i32
    return %c0_i32, %c0_i32_0 : i32, i32
  }
  func.func @transform_3(%arg0: i32) -> (i32, i32) {
    %c0_i32 = arith.constant 0 : i32
    %c0_i32_0 = arith.constant 0 : i32
    %c0_i32_1 = arith.constant 0 : i32
    return %c0_i32, %c0_i32_0 : i32, i32
  }
  func.func @transform_4(%arg0: i32) -> (i32, i32) {
    %c0_i32 = arith.constant 0 : i32
    %c0_i32_0 = arith.constant 0 : i32
    %c0_i32_1 = arith.constant 0 : i32
    return %c0_i32, %c0_i32_0 : i32, i32
  }
  func.func @transform_5(%arg0: i32) -> (i32, i32) {
    %c0_i32 = arith.constant 0 : i32
    %c0_i32_0 = arith.constant 0 : i32
    %c0_i32_1 = arith.constant 0 : i32
    return %c0_i32, %c0_i32_0 : i32, i32
  }
  func.func @transform_6(%arg0: i32) -> (i32, i32) {
    %c0_i32 = arith.constant 0 : i32
    %c0_i32_0 = arith.constant 0 : i32
    %c0_i32_1 = arith.constant 0 : i32
    return %c0_i32, %c0_i32_0 : i32, i32
  }
  func.func @transform_7(%arg0: i32) -> (i32, i32) {
    %c0_i32 = arith.constant 0 : i32
    %c0_i32_0 = arith.constant 0 : i32
    %c0_i32_1 = arith.constant 0 : i32
    return %c0_i32, %c0_i32_0 : i32, i32
  }
  func.func @transform_8(%arg0: i32) -> (i32, i32) {
    %c0_i32 = arith.constant 0 : i32
    %c0_i32_0 = arith.constant 0 : i32
    %c0_i32_1 = arith.constant 0 : i32
    return %c0_i32, %c0_i32_0 : i32, i32
  }
  func.func @transform_9(%arg0: i32) -> (i32, i32) {
    %c0_i32 = arith.constant 0 : i32
    %c0_i32_0 = arith.constant 0 : i32
    %c0_i32_1 = arith.constant 0 : i32
    return %c0_i32, %c0_i32_0 : i32, i32
  }
  func.func @transform_10(%arg0: i32) -> (i32, i32) {
    %c0_i32 = arith.constant 0 : i32
    %c0_i32_0 = arith.constant 0 : i32
    %c0_i32_1 = arith.constant 0 : i32
    return %c0_i32, %c0_i32_0 : i32, i32
  }
  func.func @transform_11(%arg0: i32) -> (i32, i32) {
    %c0_i32 = arith.constant 0 : i32
    %c0_i32_0 = arith.constant 0 : i32
    %c0_i32_1 = arith.constant 0 : i32
    return %c0_i32, %c0_i32_0 : i32, i32
  }
}

</mosaic_0001>

<llo_original>
// kernel: gru_forward_pallas.1
$region0: #{gru_forward_pallas.1}
  #allocation0 [shape = 'u32[]', space=smem, size = 0x4, offset = 0x4, fixed_abs, tag = 'smem constant byte address 0x4 - core index']
  #allocation1 [shape = 'u32[144,128]{1,0:T(1,128)}', space=vmem, size = 0x12000, scoped, tag = 'internal scratch']
  #allocation2 [shape = 'f32[64,384]{1,0:T(8,128)}', space=vmem, size = 0x18000, scoped, tag = 'scratch operand']
  #allocation3 [shape = 'f32[64,128]{1,0:T(8,128)}', space=vmem, size = 0x8000, scoped, tag = 'scratch operand']
  %s0 = inlined_call_operand.vmem [shape: f32[64,8], index: 0, kind: input, shape index: {}]
  %s1 = inlined_call_operand.vmem [shape: f32[8,384], index: 1, kind: input, shape index: {}]
  %s2 = inlined_call_operand.vmem [shape: f32[1,384], index: 2, kind: input, shape index: {}]
  %s3 = inlined_call_operand.vmem [shape: f32[128,384], index: 3, kind: input, shape index: {}]
  %s4 = inlined_call_operand.vmem [shape: f32[1,128], index: 4, kind: input, shape index: {}]
  %s5 = inlined_call_operand.vmem [shape: f32[128,384], index: 5, kind: input, shape index: {}]
  %s6 = inlined_call_operand.vmem [shape: f32[1,384], index: 6, kind: input, shape index: {}]
  %s7 = inlined_call_operand.vmem [shape: f32[128,384], index: 7, kind: input, shape index: {}]
  %s8 = inlined_call_operand.vmem [shape: f32[1,128], index: 8, kind: input, shape index: {}]
  %s9 = inlined_call_operand.vmem [shape: f32[128,128], index: 9, kind: input, shape index: {}]
  %s10 = inlined_call_operand.vmem [shape: f32[1,128], index: 10, kind: input, shape index: {}]
  %s11 = inlined_call_operand.vmem [shape: f32[64,128], index: 11, kind: output, shape index: {}]
  %s12 = sld [smem:[#allocation0]]
  $region54: #{gru_forward_pallas.1} parent=0
    _
  %s14 = ssub.s32 1, %s12
  %s15 = scalar_select 0, %s14, %s12
  // Predicated region
  $region2: #{gru_forward_pallas.1} parent=0 // pred_check
    _
  $region3: #{gru_forward_pallas.1} parent=0 // pred_check_branch
    %17 = sbr.rel (0) target = $region5
  $region4: #{gru_forward_pallas.1} parent=0 // pred_region
    _
  $region5: #{gru_forward_pallas.1} parent=0 // pred_fallthru
    _
  // Predicated region
  $region6: #{gru_forward_pallas.1} parent=0 // pred_check
    _
  $region7: #{gru_forward_pallas.1} parent=0 // pred_check_branch
    %19 = sbr.rel (0) target = $region9
  $region8: #{gru_forward_pallas.1} parent=0 // pred_region
    _
  $region9: #{gru_forward_pallas.1} parent=0 // pred_fallthru
    _
  // Predicated region
  $region10: #{gru_forward_pallas.1} parent=0 // pred_check
    _
  $region11: #{gru_forward_pallas.1} parent=0 // pred_check_branch
    %21 = sbr.rel (0) target = $region13
  $region12: #{gru_forward_pallas.1} parent=0 // pred_region
    _
  $region13: #{gru_forward_pallas.1} parent=0 // pred_fallthru
    _
  // Predicated region
  $region14: #{gru_forward_pallas.1} parent=0 // pred_check
    _
  $region15: #{gru_forward_pallas.1} parent=0 // pred_check_branch
    %23 = sbr.rel (0) target = $region17
  $region16: #{gru_forward_pallas.1} parent=0 // pred_region
    _
  $region17: #{gru_forward_pallas.1} parent=0 // pred_fallthru
    _
  // Predicated region
  $region18: #{gru_forward_pallas.1} parent=0 // pred_check
    _
  $region19: #{gru_forward_pallas.1} parent=0 // pred_check_branch
    %25 = sbr.rel (0) target = $region21
  $region20: #{gru_forward_pallas.1} parent=0 // pred_region
    _
  $region21: #{gru_forward_pallas.1} parent=0 // pred_fallthru
    _
  // Predicated region
  $region22: #{gru_forward_pallas.1} parent=0 // pred_check
    _
  $region23: #{gru_forward_pallas.1} parent=0 // pred_check_branch
    %27 = sbr.rel (0) target = $region25
  $region24: #{gru_forward_pallas.1} parent=0 // pred_region
    _
  $region25: #{gru_forward_pallas.1} parent=0 // pred_fallthru
    _
  // Predicated region
  $region26: #{gru_forward_pallas.1} parent=0 // pred_check
    _
  $region27: #{gru_forward_pallas.1} parent=0 // pred_check_branch
    %29 = sbr.rel (0) target = $region29
  $region28: #{gru_forward_pallas.1} parent=0 // pred_region
    _
  $region29: #{gru_forward_pallas.1} parent=0 // pred_fallthru
    _
  // Predicated region
  $region30: #{gru_forward_pallas.1} parent=0 // pred_check
    _
  $region31: #{gru_forward_pallas.1} parent=0 // pred_check_branch
    %31 = sbr.rel (0) target = $region33
  $region32: #{gru_forward_pallas.1} parent=0 // pred_region
    _
  $region33: #{gru_forward_pallas.1} parent=0 // pred_fallthru
    _
  // Predicated region
  $region34: #{gru_forward_pallas.1} parent=0 // pred_check
    _
  $region35: #{gru_forward_pallas.1} parent=0 // pred_check_branch
    %33 = sbr.rel (0) target = $region37
  $region36: #{gru_forward_pallas.1} parent=0 // pred_region
    _
  $region37: #{gru_forward_pallas.1} parent=0 // pred_fallthru
    _
  // Predicated region
  $region38: #{gru_forward_pallas.1} parent=0 // pred_check
    _
  $region39: #{gru_forward_pallas.1} parent=0 // pred_check_branch
    %35 = sbr.rel (0) target = $region41
  $region40: #{gru_forward_pallas.1} parent=0 // pred_region
    _
  $region41: #{gru_forward_pallas.1} parent=0 // pred_fallthru
    _
  // Predicated region
  $region42: #{gru_forward_pallas.1} parent=0 // pred_check
    _
  $region43: #{gru_forward_pallas.1} parent=0 // pred_check_branch
    %37 = sbr.rel (0) target = $region45
  $region44: #{gru_forward_pallas.1} parent=0 // pred_region
    _
  $region45: #{gru_forward_pallas.1} parent=0 // pred_fallthru
    _
  %v38 = vld [vmem:[%s0] sm:$0xff]
  %v39 = vld [vmem:[%s0 + $0x8] sm:$0xff]
  %v40 = vld [vmem:[%s0 + $0x10] sm:$0xff]
  %v41 = vld [vmem:[%s0 + $0x18] sm:$0xff]
  %v42 = vld [vmem:[%s0 + $0x20] sm:$0xff]
  %v43 = vld [vmem:[%s0 + $0x28] sm:$0xff]
  %v44 = vld [vmem:[%s0 + $0x30] sm:$0xff]
  %v45 = vld [vmem:[%s0 + $0x38] sm:$0xff]
  %v46 = vld [vmem:[%s1] sm:$0xff]
  %v47 = vld [vmem:[%s1 + $0x8] sm:$0xff]
  %v48 = vld [vmem:[%s1 + $0x10] sm:$0xff]
  %v49 = vld [vmem:[%s2] sm:$0x7]
  %v51 = vlaneseq
  %v52 = vshrl.u32 %v51, 7
  %v53 = vsub.s32 0, %v52
  %v54 = vrot.slane %v49, %v53
  %v55 = vlaneseq
  %v56 = vshrl.u32 %v55, 7
  %v57 = vsub.s32 1, %v56
  %v58 = vrot.slane %v49, %v57
  %v59 = vlaneseq
  %v60 = vshrl.u32 %v59, 7
  %v61 = vsub.s32 2, %v60
  %v62 = vrot.slane %v49, %v61
  %vm66 = vcmask 64512
  %v68 = vsel %vm66, %v38, 0
  %v71 = vsel %vm66, %v39, 0
  %v74 = vsel %vm66, %v40, 0
  %v77 = vsel %vm66, %v41, 0
  %v80 = vsel %vm66, %v42, 0
  %v83 = vsel %vm66, %v43, 0
  %v86 = vsel %vm66, %v44, 0
  %v89 = vsel %vm66, %v45, 0
  %91 = vmatprep.subr.mxu0 0.0
  %92 = vmatpush1.msra.mxu0 0.0
  %93 = vmatprep.subr.mxu0 0.0
  %94 = vmatpush1.msra.mxu0 0.0
  %95 = vmatprep.subr.mxu0 0.0
  %96 = vmatpush1.msra.mxu0 0.0
  %97 = vmatprep.subr.mxu0 0.0
  %98 = vmatpush1.msra.mxu0 0.0
  %99 = vmatprep.subr.mxu0 0.0
  %100 = vmatpush1.msra.mxu0 0.0
  %101 = vmatprep.subr.mxu0 0.0
  %102 = vmatpush1.msra.mxu0 0.0
  %103 = vmatprep.subr.mxu0 0.0
  %104 = vmatpush1.msra.mxu0 0.0
  %105 = vmatprep.subr.mxu0 0.0
  %106 = vmatpush1.msra.mxu0 0.0
  %107 = vmatprep.subr.mxu0 0.0
  %108 = vmatpush1.msra.mxu0 0.0
  %109 = vmatprep.subr.mxu0 0.0
  %110 = vmatpush1.msra.mxu0 0.0
  %111 = vmatprep.subr.mxu0 0.0
  %112 = vmatpush1.msra.mxu0 0.0
  %113 = vmatprep.subr.mxu0 0.0
  %114 = vmatpush1.msra.mxu0 0.0
  %115 = vmatprep.subr.mxu0 0.0
  %116 = vmatpush1.msra.mxu0 0.0
  %117 = vmatprep.subr.mxu0 0.0
  %118 = vmatpush1.msra.mxu0 0.0
  %119 = vmatprep.subr.mxu0 0.0
  %120 = vmatpush1.msra.mxu0 0.0
  %121 = vmatprep.subr.mxu0 %v47
  %122 = vmatpush1.msra.mxu0 %v46
  %123 = vmatprep.subr.mxu0 0.0
  %124 = vmatpush2.msra.mxu0 0.0
  %125 = vmatprep.subr.mxu0 0.0
  %126 = vmatpush2.msra.mxu0 0.0
  %127 = vmatprep.subr.mxu0 0.0
  %128 = vmatpush2.msra.mxu0 0.0
  %129 = vmatprep.subr.mxu0 0.0
  %130 = vmatpush2.msra.mxu0 0.0
  %131 = vmatprep.subr.mxu0 0.0
  %132 = vmatpush2.msra.mxu0 0.0
  %133 = vmatprep.subr.mxu0 0.0
  %134 = vmatpush2.msra.mxu0 0.0
  %135 = vmatprep.subr.mxu0 0.0
  %136 = vmatpush2.msra.mxu0 0.0
  %137 = vmatprep.subr.mxu0 0.0
  %138 = vmatpush2.msra.mxu0 0.0
  %139 = vmatprep.subr.mxu0 0.0
  %140 = vmatpush2.msra.mxu0 0.0
  %141 = vmatprep.subr.mxu0 0.0
  %142 = vmatpush2.msra.mxu0 0.0
  %143 = vmatprep.subr.mxu0 0.0
  %144 = vmatpush2.msra.mxu0 0.0
  %145 = vmatprep.subr.mxu0 0.0
  %146 = vmatpush2.msra.mxu0 0.0
  %147 = vmatprep.subr.mxu0 0.0
  %148 = vmatpush2.msra.mxu0 0.0
  %149 = vmatprep.subr.mxu0 0.0
  %150 = vmatpush2.msra.mxu0 0.0
  %151 = vmatprep.subr.mxu0 0.0
  %152 = vmatpush2.msra.mxu0 0.0
  %153 = vmatprep.subr.mxu0 0.0
  %154 = vmatpush2.msra.mxu0 0.0
  %155 = vmatprep.mubr.f32.mxu0 0.0
  %156 = vmatmul.mubr.f32.gmra.mxu0 %v68
  %v157 = vpop.f32.mrf.mxu0
  %v158 = vadd.f32 %v54, %v157
  %v159 = vpop.f32.mrf.mxu0
  %v160 = vadd.f32 %v58, %v159
  %161 = vmatprep.mubr.f32.mxu0 0.0
  %162 = vmatmul.mubr.f32.gmra.mxu0 %v71
  %v163 = vpop.f32.mrf.mxu0
  %v164 = vadd.f32 %v54, %v163
  %v165 = vpop.f32.mrf.mxu0
  %v166 = vadd.f32 %v58, %v165
  %167 = vmatprep.mubr.f32.mxu0 0.0
  %168 = vmatmul.mubr.f32.gmra.mxu0 %v74
  %v169 = vpop.f32.mrf.mxu0
  %v170 = vadd.f32 %v54, %v169
  %v171 = vpop.f32.mrf.mxu0
  %v172 = vadd.f32 %v58, %v171
  %173 = vmatprep.mubr.f32.mxu0 0.0
  %174 = vmatmul.mubr.f32.gmra.mxu0 %v77
  %v175 = vpop.f32.mrf.mxu0
  %v176 = vadd.f32 %v54, %v175
  %v177 = vpop.f32.mrf.mxu0
  %v178 = vadd.f32 %v58, %v177
  %179 = vmatprep.mubr.f32.mxu0 0.0
  %180 = vmatmul.mubr.f32.gmra.mxu0 %v80
  %v181 = vpop.f32.mrf.mxu0
  %v182 = vadd.f32 %v54, %v181
  %v183 = vpop.f32.mrf.mxu0
  %v184 = vadd.f32 %v58, %v183
  %185 = vmatprep.mubr.f32.mxu0 0.0
  %186 = vmatmul.mubr.f32.gmra.mxu0 %v83
  %v187 = vpop.f32.mrf.mxu0
  %v188 = vadd.f32 %v54, %v187
  %v189 = vpop.f32.mrf.mxu0
  %v190 = vadd.f32 %v58, %v189
  %191 = vmatprep.mubr.f32.mxu0 0.0
  %192 = vmatmul.mubr.f32.gmra.mxu0 %v86
  %v193 = vpop.f32.mrf.mxu0
  %v194 = vadd.f32 %v54, %v193
  %v195 = vpop.f32.mrf.mxu0
  %v196 = vadd.f32 %v58, %v195
  %197 = vmatprep.mubr.f32.mxu0 0.0
  %198 = vmatmul.mubr.f32.gmra.mxu0 %v89
  %v199 = vpop.f32.mrf.mxu0
  %v200 = vadd.f32 %v54, %v199
  %v201 = vpop.f32.mrf.mxu0
  %v202 = vadd.f32 %v58, %v201
  %203 = vdwg.mxu0
  %204 = vmatprep.subr.mxu0 0.0
  %205 = vmatpush1.msra.mxu0 0.0
  %206 = vmatprep.subr.mxu0 0.0
  %207 = vmatpush1.msra.mxu0 0.0
  %208 = vmatprep.subr.mxu0 0.0
  %209 = vmatpush1.msra.mxu0 0.0
  %210 = vmatprep.subr.mxu0 0.0
  %211 = vmatpush1.msra.mxu0 0.0
  %212 = vmatprep.subr.mxu0 0.0
  %213 = vmatpush1.msra.mxu0 0.0
  %214 = vmatprep.subr.mxu0 0.0
  %215 = vmatpush1.msra.mxu0 0.0
  %216 = vmatprep.subr.mxu0 0.0
  %217 = vmatpush1.msra.mxu0 0.0
  %218 = vmatprep.subr.mxu0 0.0
  %219 = vmatpush1.msra.mxu0 0.0
  %220 = vmatprep.subr.mxu0 0.0
  %221 = vmatpush1.msra.mxu0 0.0
  %222 = vmatprep.subr.mxu0 0.0
  %223 = vmatpush1.msra.mxu0 0.0
  %224 = vmatprep.subr.mxu0 0.0
  %225 = vmatpush1.msra.mxu0 0.0
  %226 = vmatprep.subr.mxu0 0.0
  %227 = vmatpush1.msra.mxu0 0.0
  %228 = vmatprep.subr.mxu0 0.0
  %229 = vmatpush1.msra.mxu0 0.0
  %230 = vmatprep.subr.mxu0 0.0
  %231 = vmatpush1.msra.mxu0 0.0
  %232 = vmatprep.subr.mxu0 0.0
  %233 = vmatpush1.msra.mxu0 0.0
  %234 = vmatprep.subr.mxu0 0.0
  %235 = vmatpush1.msra.mxu0 %v48
  %236 = vmatprep.subr.mxu0 0.0
  %237 = vmatpush2.msra.mxu0 0.0
  %238 = vmatprep.subr.mxu0 0.0
  %239 = vmatpush2.msra.mxu0 0.0
  %240 = vmatprep.subr.mxu0 0.0
  %241 = vmatpush2.msra.mxu0 0.0
  %242 = vmatprep.subr.mxu0 0.0
  %243 = vmatpush2.msra.mxu0 0.0
  %244 = vmatprep.subr.mxu0 0.0
  %245 = vmatpush2.msra.mxu0 0.0
  %246 = vmatprep.subr.mxu0 0.0
  %247 = vmatpush2.msra.mxu0 0.0
  %248 = vmatprep.subr.mxu0 0.0
  %249 = vmatpush2.msra.mxu0 0.0
  %250 = vmatprep.subr.mxu0 0.0
  %251 = vmatpush2.msra.mxu0 0.0
  %252 = vmatprep.subr.mxu0 0.0
  %253 = vmatpush2.msra.mxu0 0.0
  %254 = vmatprep.subr.mxu0 0.0
  %255 = vmatpush2.msra.mxu0 0.0
  %256 = vmatprep.subr.mxu0 0.0
  %257 = vmatpush2.msra.mxu0 0.0
  %258 = vmatprep.subr.mxu0 0.0
  %259 = vmatpush2.msra.mxu0 0.0
  %260 = vmatprep.subr.mxu0 0.0
  %261 = vmatpush2.msra.mxu0 0.0
  %262 = vmatprep.subr.mxu0 0.0
  %263 = vmatpush2.msra.mxu0 0.0
  %264 = vmatprep.subr.mxu0 0.0
  %265 = vmatpush2.msra.mxu0 0.0
  %266 = vmatprep.subr.mxu0 0.0
  %267 = vmatpush2.msra.mxu0 0.0
  %268 = vmatprep.mubr.f32.mxu0 0.0
  %269 = vmatmul.mubr.f32.gmra.mxu0 %v68
  %v270 = vpop.f32.mrf.mxu0
  %v271 = vadd.f32 %v62, %v270
  %v272 = vpop.f32.mrf.mxu0
  %273 = vmatprep.mubr.f32.mxu0 0.0
  %274 = vmatmul.mubr.f32.gmra.mxu0 %v71
  %v275 = vpop.f32.mrf.mxu0
  %v276 = vadd.f32 %v62, %v275
  %v277 = vpop.f32.mrf.mxu0
  %278 = vmatprep.mubr.f32.mxu0 0.0
  %279 = vmatmul.mubr.f32.gmra.mxu0 %v74
  %v280 = vpop.f32.mrf.mxu0
  %v281 = vadd.f32 %v62, %v280
  %v282 = vpop.f32.mrf.mxu0
  %283 = vmatprep.mubr.f32.mxu0 0.0
  %284 = vmatmul.mubr.f32.gmra.mxu0 %v77
  %v285 = vpop.f32.mrf.mxu0
  %v286 = vadd.f32 %v62, %v285
  %v287 = vpop.f32.mrf.mxu0
  %288 = vmatprep.mubr.f32.mxu0 0.0
  %289 = vmatmul.mubr.f32.gmra.mxu0 %v80
  %v290 = vpop.f32.mrf.mxu0
  %v291 = vadd.f32 %v62, %v290
  %v292 = vpop.f32.mrf.mxu0
  %293 = vmatprep.mubr.f32.mxu0 0.0
  %294 = vmatmul.mubr.f32.gmra.mxu0 %v83
  %v295 = vpop.f32.mrf.mxu0
  %v296 = vadd.f32 %v62, %v295
  %v297 = vpop.f32.mrf.mxu0
  %298 = vmatprep.mubr.f32.mxu0 0.0
  %299 = vmatmul.mubr.f32.gmra.mxu0 %v86
  %v300 = vpop.f32.mrf.mxu0
  %v301 = vadd.f32 %v62, %v300
  %v302 = vpop.f32.mrf.mxu0
  %303 = vmatprep.mubr.f32.mxu0 0.0
  %304 = vmatmul.mubr.f32.gmra.mxu0 %v89
  %v305 = vpop.f32.mrf.mxu0
  %v306 = vadd.f32 %v62, %v305
  %v307 = vpop.f32.mrf.mxu0
  %308 = vdwg.mxu0
  %309 = vst [vmem:[#allocation2] sm:$0xff] %v158
  %310 = vst [vmem:[#allocation2 + $0x8] sm:$0xff] %v160
  %311 = vst [vmem:[#allocation2 + $0x10] sm:$0xff] %v271
  %312 = vst [vmem:[#allocation2 + $0x18] sm:$0xff] %v164
  %313 = vst [vmem:[#allocation2 + $0x20] sm:$0xff] %v166
  %314 = vst [vmem:[#allocation2 + $0x28] sm:$0xff] %v276
  %315 = vst [vmem:[#allocation2 + $0x30] sm:$0xff] %v170
  %316 = vst [vmem:[#allocation2 + $0x38] sm:$0xff] %v172
  %317 = vst [vmem:[#allocation2 + $0x40] sm:$0xff] %v281
  %318 = vst [vmem:[#allocation2 + $0x48] sm:$0xff] %v176
  %319 = vst [vmem:[#allocation2 + $0x50] sm:$0xff] %v178
  %320 = vst [vmem:[#allocation2 + $0x58] sm:$0xff] %v286
  %321 = vst [vmem:[#allocation2 + $0x60] sm:$0xff] %v182
  %322 = vst [vmem:[#allocation2 + $0x68] sm:$0xff] %v184
  %323 = vst [vmem:[#allocation2 + $0x70] sm:$0xff] %v291
  %324 = vst [vmem:[#allocation2 + $0x78] sm:$0xff] %v188
  %325 = vst [vmem:[#allocation2 + $0x80] sm:$0xff] %v190
  %326 = vst [vmem:[#allocation2 + $0x88] sm:$0xff] %v296
  %327 = vst [vmem:[#allocation2 + $0x90] sm:$0xff] %v194
  %328 = vst [vmem:[#allocation2 + $0x98] sm:$0xff] %v196
  %329 = vst [vmem:[#allocation2 + $0xa0] sm:$0xff] %v301
  %330 = vst [vmem:[#allocation2 + $0xa8] sm:$0xff] %v200
  %331 = vst [vmem:[#allocation2 + $0xb0] sm:$0xff] %v202
  %332 = vst [vmem:[#allocation2 + $0xb8] sm:$0xff] %v306
  %v333 = vld [vmem:[%s4] sm:$0x1]
  %v335 = vlaneseq
  %v336 = vshrl.u32 %v335, 7
  %v337 = vsub.s32 0, %v336
  %v338 = vrot.slane %v333, %v337
  %s340 = smul.u32 0, 3
  %s341 = smul.addr %s340, 8
  %s342 = scalar_lea.vmem [#allocation2], %s341
  %v343 = vld [vmem:[%s342] sm:$0xff]
  %v344 = vld [vmem:[%s342 + $0x8] sm:$0xff]
  %v345 = vld [vmem:[%s342 + $0x10] sm:$0xff]
  %v346 = vld [vmem:[%s3] sm:$0xff]
  %v347 = vld [vmem:[%s3 + $0x8] sm:$0xff]
  %v348 = vld [vmem:[%s3 + $0x10] sm:$0xff]
  %v349 = vld [vmem:[%s3 + $0x18] sm:$0xff]
  %v350 = vld [vmem:[%s3 + $0x20] sm:$0xff]
  %v351 = vld [vmem:[%s3 + $0x28] sm:$0xff]
  %v352 = vld [vmem:[%s3 + $0x30] sm:$0xff]
  %v353 = vld [vmem:[%s3 + $0x38] sm:$0xff]
  %v354 = vld [vmem:[%s3 + $0x40] sm:$0xff]
  %v355 = vld [vmem:[%s3 + $0x48] sm:$0xff]
  %v356 = vld [vmem:[%s3 + $0x50] sm:$0xff]
  %v357 = vld [vmem:[%s3 + $0x58] sm:$0xff]
  %v358 = vld [vmem:[%s3 + $0x60] sm:$0xff]
  %v359 = vld [vmem:[%s3 + $0x68] sm:$0xff]
  %v360 = vld [vmem:[%s3 + $0x70] sm:$0xff]
  %v361 = vld [vmem:[%s3 + $0x78] sm:$0xff]
  %v362 = vld [vmem:[%s3 + $0x80] sm:$0xff]
  %v363 = vld [vmem:[%s3 + $0x88] sm:$0xff]
  %v364 = vld [vmem:[%s3 + $0x90] sm:$0xff]
  %v365 = vld [vmem:[%s3 + $0x98] sm:$0xff]
  %v366 = vld [vmem:[%s3 + $0xa0] sm:$0xff]
  %v367 = vld [vmem:[%s3 + $0xa8] sm:$0xff]
  %v368 = vld [vmem:[%s3 + $0xb0] sm:$0xff]
  %v369 = vld [vmem:[%s3 + $0xb8] sm:$0xff]
  %v370 = vld [vmem:[%s3 + $0xc0] sm:$0xff]
  %v371 = vld [vmem:[%s3 + $0xc8] sm:$0xff]
  %v372 = vld [vmem:[%s3 + $0xd0] sm:$0xff]
  %v373 = vld [vmem:[%s3 + $0xd8] sm:$0xff]
  %v374 = vld [vmem:[%s3 + $0xe0] sm:$0xff]
  %v375 = vld [vmem:[%s3 + $0xe8] sm:$0xff]
  %v376 = vld [vmem:[%s3 + $0xf0] sm:$0xff]
  %v377 = vld [vmem:[%s3 + $0xf8] sm:$0xff]
  %v378 = vld [vmem:[%s3 + $0x100] sm:$0xff]
  %v379 = vld [vmem:[%s3 + $0x108] sm:$0xff]
  %v380 = vld [vmem:[%s3 + $0x110] sm:$0xff]
  %v381 = vld [vmem:[%s3 + $0x118] sm:$0xff]
  %v382 = vld [vmem:[%s3 + $0x120] sm:$0xff]
  %v383 = vld [vmem:[%s3 + $0x128] sm:$0xff]
  %v384 = vld [vmem:[%s3 + $0x130] sm:$0xff]
  %v385 = vld [vmem:[%s3 + $0x138] sm:$0xff]
  %v386 = vld [vmem:[%s3 + $0x140] sm:$0xff]
  %v387 = vld [vmem:[%s3 + $0x148] sm:$0xff]
  %v388 = vld [vmem:[%s3 + $0x150] sm:$0xff]
  %v389 = vld [vmem:[%s3 + $0x158] sm:$0xff]
  %v390 = vld [vmem:[%s3 + $0x160] sm:$0xff]
  %v391 = vld [vmem:[%s3 + $0x168] sm:$0xff]
  %v392 = vld [vmem:[%s3 + $0x170] sm:$0xff]
  %v393 = vld [vmem:[%s3 + $0x178] sm:$0xff]
  %394 = vmatprep.subr.mxu0 %v392
  %395 = vmatpush1.msra.mxu0 %v391
  %396 = vmatprep.subr.mxu0 %v389
  %397 = vmatpush1.msra.mxu0 %v388
  %398 = vmatprep.subr.mxu0 %v386
  %399 = vmatpush1.msra.mxu0 %v385
  %400 = vmatprep.subr.mxu0 %v383
  %401 = vmatpush1.msra.mxu0 %v382
  %402 = vmatprep.subr.mxu0 %v380
  %403 = vmatpush1.msra.mxu0 %v379
  %404 = vmatprep.subr.mxu0 %v377
  %405 = vmatpush1.msra.mxu0 %v376
  %406 = vmatprep.subr.mxu0 %v374
  %407 = vmatpush1.msra.mxu0 %v373
  %408 = vmatprep.subr.mxu0 %v371
  %409 = vmatpush1.msra.mxu0 %v370
  %410 = vmatprep.subr.mxu0 %v368
  %411 = vmatpush1.msra.mxu0 %v367
  %412 = vmatprep.subr.mxu0 %v365
  %413 = vmatpush1.msra.mxu0 %v364
  %414 = vmatprep.subr.mxu0 %v362
  %415 = vmatpush1.msra.mxu0 %v361
  %416 = vmatprep.subr.mxu0 %v359
  %417 = vmatpush1.msra.mxu0 %v358
  %418 = vmatprep.subr.mxu0 %v356
  %419 = vmatpush1.msra.mxu0 %v355
  %420 = vmatprep.subr.mxu0 %v353
  %421 = vmatpush1.msra.mxu0 %v352
  %422 = vmatprep.subr.mxu0 %v350
  %423 = vmatpush1.msra.mxu0 %v349
  %424 = vmatprep.subr.mxu0 %v347
  %425 = vmatpush1.msra.mxu0 %v346
  %426 = vmatprep.subr.mxu0 0.0
  %427 = vmatpush2.msra.mxu0 0.0
  %428 = vmatprep.subr.mxu0 0.0
  %429 = vmatpush2.msra.mxu0 0.0
  %430 = vmatprep.subr.mxu0 0.0
  %431 = vmatpush2.msra.mxu0 0.0
  %432 = vmatprep.subr.mxu0 0.0
  %433 = vmatpush2.msra.mxu0 0.0
  %434 = vmatprep.subr.mxu0 0.0
  %435 = vmatpush2.msra.mxu0 0.0
  %436 = vmatprep.subr.mxu0 0.0
  %437 = vmatpush2.msra.mxu0 0.0
  %438 = vmatprep.subr.mxu0 0.0
  %439 = vmatpush2.msra.mxu0 0.0
  %440 = vmatprep.subr.mxu0 0.0
  %441 = vmatpush2.msra.mxu0 0.0
  %442 = vmatprep.subr.mxu0 0.0
  %443 = vmatpush2.msra.mxu0 0.0
  %444 = vmatprep.subr.mxu0 0.0
  %445 = vmatpush2.msra.mxu0 0.0
  %446 = vmatprep.subr.mxu0 0.0
  %447 = vmatpush2.msra.mxu0 0.0
  %448 = vmatprep.subr.mxu0 0.0
  %449 = vmatpush2.msra.mxu0 0.0
  %450 = vmatprep.subr.mxu0 0.0
  %451 = vmatpush2.msra.mxu0 0.0
  %452 = vmatprep.subr.mxu0 0.0
  %453 = vmatpush2.msra.mxu0 0.0
  %454 = vmatprep.subr.mxu0 0.0
  %455 = vmatpush2.msra.mxu0 0.0
  %456 = vmatprep.subr.mxu0 0.0
  %457 = vmatpush2.msra.mxu0 0.0
  %458 = vmatprep.mubr.f32.mxu0 0.0
  %459 = vmatmul.mubr.f32.gmra.mxu0 0.0
  %v460 = vpop.f32.mrf.mxu0
  %v461 = vadd.f32 0.0, %v460
  %v462 = vpop.f32.mrf.mxu0
  %v463 = vadd.f32 0.0, %v462
  %464 = vdwg.mxu0
  %465 = vmatprep.subr.mxu0 0.0
  %466 = vmatpush1.msra.mxu0 %v393
  %467 = vmatprep.subr.mxu0 0.0
  %468 = vmatpush1.msra.mxu0 %v390
  %469 = vmatprep.subr.mxu0 0.0
  %470 = vmatpush1.msra.mxu0 %v387
  %471 = vmatprep.subr.mxu0 0.0
  %472 = vmatpush1.msra.mxu0 %v384
  %473 = vmatprep.subr.mxu0 0.0
  %474 = vmatpush1.msra.mxu0 %v381
  %475 = vmatprep.subr.mxu0 0.0
  %476 = vmatpush1.msra.mxu0 %v378
  %477 = vmatprep.subr.mxu0 0.0
  %478 = vmatpush1.msra.mxu0 %v375
  %479 = vmatprep.subr.mxu0 0.0
  %480 = vmatpush1.msra.mxu0 %v372
  %481 = vmatprep.subr.mxu0 0.0
  %482 = vmatpush1.msra.mxu0 %v369
  %483 = vmatprep.subr.mxu0 0.0
  %484 = vmatpush1.msra.mxu0 %v366
  %485 = vmatprep.subr.mxu0 0.0
  %486 = vmatpush1.msra.mxu0 %v363
  %487 = vmatprep.subr.mxu0 0.0
  %488 = vmatpush1.msra.mxu0 %v360
  %489 = vmatprep.subr.mxu0 0.0
  %490 = vmatpush1.msra.mxu0 %v357
  %491 = vmatprep.subr.mxu0 0.0
  %492 = vmatpush1.msra.mxu0 %v354
  %493 = vmatprep.subr.mxu0 0.0
  %494 = vmatpush1.msra.mxu0 %v351
  %495 = vmatprep.subr.mxu0 0.0
  %496 = vmatpush1.msra.mxu0 %v348
  %497 = vmatprep.subr.mxu0 0.0
  %498 = vmatpush2.msra.mxu0 0.0
  %499 = vmatprep.subr.mxu0 0.0
  %500 = vmatpush2.msra.mxu0 0.0
  %501 = vmatprep.subr.mxu0 0.0
  %502 = vmatpush2.msra.mxu0 0.0
  %503 = vmatprep.subr.mxu0 0.0
  %504 = vmatpush2.msra.mxu0 0.0
  %505 = vmatprep.subr.mxu0 0.0
  %506 = vmatpush2.msra.mxu0 0.0
  %507 = vmatprep.subr.mxu0 0.0
  %508 = vmatpush2.msra.mxu0 0.0
  %509 = vmatprep.subr.mxu0 0.0
  %510 = vmatpush2.msra.mxu0 0.0
  %511 = vmatprep.subr.mxu0 0.0
  %512 = vmatpush2.msra.mxu0 0.0
  %513 = vmatprep.subr.mxu0 0.0
  %514 = vmatpush2.msra.mxu0 0.0
  %515 = vmatprep.subr.mxu0 0.0
  %516 = vmatpush2.msra.mxu0 0.0
  %517 = vmatprep.subr.mxu0 0.0
  %518 = vmatpush2.msra.mxu0 0.0
  %519 = vmatprep.subr.mxu0 0.0
  %520 = vmatpush2.msra.mxu0 0.0
  %521 = vmatprep.subr.mxu0 0.0
  %522 = vmatpush2.msra.mxu0 0.0
  %523 = vmatprep.subr.mxu0 0.0
  %524 = vmatpush2.msra.mxu0 0.0
  %525 = vmatprep.subr.mxu0 0.0
  %526 = vmatpush2.msra.mxu0 0.0
  %527 = vmatprep.subr.mxu0 0.0
  %528 = vmatpush2.msra.mxu0 0.0
  %529 = vmatprep.mubr.f32.mxu0 0.0
  %530 = vmatmul.mubr.f32.gmra.mxu0 0.0
  %v531 = vpop.f32.mrf.mxu0
  %v532 = vadd.f32 0.0, %v531
  %v533 = vpop.f32.mrf.mxu0
  %534 = vdwg.mxu0
  %v535 = vadd.f32 %v343, %v461
  %v536 = vxor.u32 %v535, 2147483648
  %v537 = vmul.f32 %v536, 1.442695
  %v538 = vpow.pop %v537
  %v539 = vadd.f32 %v538, 1.0
  %v540 = vrcp.pop %v539
  %v541 = vmul.f32 1.0, %v540
  %v542 = vadd.f32 %v344, %v463
  %v543 = vxor.u32 %v542, 2147483648
  %v544 = vmul.f32 %v543, 1.442695
  %v545 = vpow.pop %v544
  %v546 = vadd.f32 %v545, 1.0
  %v547 = vrcp.pop %v546
  %v548 = vmul.f32 1.0, %v547
  %v549 = vadd.f32 %v532, %v338
  %v550 = vmul.f32 %v541, %v549
  %v551 = vadd.f32 %v345, %v550
  %v552 = vtanh.pop %v551
  %v553 = vsub.f32 1.0, %v548
  %v554 = vmul.f32 %v553, %v552
  %v555 = vmul.f32 %v548, 0.0
  %v556 = vadd.f32 %v554, %v555
  %557 = vst [vmem:[#allocation3] sm:$0xff] %v556
  %s558 = smul.u32 1, 3
  %s559 = smul.addr %s558, 8
  %s560 = scalar_lea.vmem [#allocation2], %s559
  %v561 = vld [vmem:[%s560] sm:$0xff]
  %v562 = vld [vmem:[%s560 + $0x8] sm:$0xff]
  %v563 = vld [vmem:[%s560 + $0x10] sm:$0xff]
  %v564 = vld [vmem:[%s3] sm:$0xff]
  %v565 = vld [vmem:[%s3 + $0x8] sm:$0xff]
  %v566 = vld [vmem:[%s3 + $0x10] sm:$0xff]
  %v567 = vld [vmem:[%s3 + $0x18] sm:$0xff]
  %v568 = vld [vmem:[%s3 + $0x20] sm:$0xff]
  %v569 = vld [vmem:[%s3 + $0x28] sm:$0xff]
  %v570 = vld [vmem:[%s3 + $0x30] sm:$0xff]
  %v571 = vld [vmem:[%s3 + $0x38] sm:$0xff]
  %v572 = vld [vmem:[%s3 + $0x40] sm:$0xff]
  %v573 = vld [vmem:[%s3 + $0x48] sm:$0xff]
  %v574 = vld [vmem:[%s3 + $0x50] sm:$0xff]
  %v575 = vld [vmem:[%s3 + $0x58] sm:$0xff]
  %v576 = vld [vmem:[%s3 + $0x60] sm:$0xff]
  %v577 = vld [vmem:[%s3 + $0x68] sm:$0xff]
  %v578 = vld [vmem:[%s3 + $0x70] sm:$0xff]
  %v579 = vld [vmem:[%s3 + $0x78] sm:$0xff]
  %v580 = vld [vmem:[%s3 + $0x80] sm:$0xff]
  %v581 = vld [vmem:[%s3 + $0x88] sm:$0xff]
  %v582 = vld [vmem:[%s3 + $0x90] sm:$0xff]
  %v583 = vld [vmem:[%s3 + $0x98] sm:$0xff]
  %v584 = vld [vmem:[%s3 + $0xa0] sm:$0xff]
  %v585 = vld [vmem:[%s3 + $0xa8] sm:$0xff]
  %v586 = vld [vmem:[%s3 + $0xb0] sm:$0xff]
  %v587 = vld [vmem:[%s3 + $0xb8] sm:$0xff]
  %v588 = vld [vmem:[%s3 + $0xc0] sm:$0xff]
  %v589 = vld [vmem:[%s3 + $0xc8] sm:$0xff]
  %v590 = vld [vmem:[%s3 + $0xd0] sm:$0xff]
  %v591 = vld [vmem:[%s3 + $0xd8] sm:$0xff]
  %v592 = vld [vmem:[%s3 + $0xe0] sm:$0xff]
  %v593 = vld [vmem:[%s3 + $0xe8] sm:$0xff]
  %v594 = vld [vmem:[%s3 + $0xf0] sm:$0xff]
  %v595 = vld [vmem:[%s3 + $0xf8] sm:$0xff]
  %v596 = vld [vmem:[%s3 + $0x100] sm:$0xff]
  %v597 = vld [vmem:[%s3 + $0x108] sm:$0xff]
  %v598 = vld [vmem:[%s3 + $0x110] sm:$0xff]
  %v599 = vld [vmem:[%s3 + $0x118] sm:$0xff]
  %v600 = vld [vmem:[%s3 + $0x120] sm:$0xff]
  %v601 = vld [vmem:[%s3 + $0x128] sm:$0xff]
  %v602 = vld [vmem:[%s3 + $0x130] sm:$0xff]
  %v603 = vld [vmem:[%s3 + $0x138] sm:$0xff]
  %v604 = vld [vmem:[%s3 + $0x140] sm:$0xff]
  %v605 = vld [vmem:[%s3 + $0x148] sm:$0xff]
  %v606 = vld [vmem:[%s3 + $0x150] sm:$0xff]
  %v607 = vld [vmem:[%s3 + $0x158] sm:$0xff]
  %v608 = vld [vmem:[%s3 + $0x160] sm:$0xff]
  %v609 = vld [vmem:[%s3 + $0x168] sm:$0xff]
  %v610 = vld [vmem:[%s3 + $0x170] sm:$0xff]
  %v611 = vld [vmem:[%s3 + $0x178] sm:$0xff]
  %612 = vmatprep.subr.mxu0 %v610
  %613 = vmatpush1.msra.mxu0 %v609
  %614 = vmatprep.subr.mxu0 %v607
  %615 = vmatpush1.msra.mxu0 %v606
  %616 = vmatprep.subr.mxu0 %v604
  %617 = vmatpush1.msra.mxu0 %v603
  %618 = vmatprep.subr.mxu0 %v601
  %619 = vmatpush1.msra.mxu0 %v600
  %620 = vmatprep.subr.mxu0 %v598
  %621 = vmatpush1.msra.mxu0 %v597
  %622 = vmatprep.subr.mxu0 %v595
  %623 = vmatpush1.msra.mxu0 %v594
  %624 = vmatprep.subr.mxu0 %v592
  %625 = vmatpush1.msra.mxu0 %v591
  %626 = vmatprep.subr.mxu0 %v589
  %627 = vmatpush1.msra.mxu0 %v588
  %628 = vmatprep.subr.mxu0 %v586
  %629 = vmatpush1.msra.mxu0 %v585
  %630 = vmatprep.subr.mxu0 %v583
  %631 = vmatpush1.msra.mxu0 %v582
  %632 = vmatprep.subr.mxu0 %v580
  %633 = vmatpush1.msra.mxu0 %v579
  %634 = vmatprep.subr.mxu0 %v577
  %635 = vmatpush1.msra.mxu0 %v576
  %636 = vmatprep.subr.mxu0 %v574
  %637 = vmatpush1.msra.mxu0 %v573
  %638 = vmatprep.subr.mxu0 %v571
  %639 = vmatpush1.msra.mxu0 %v570
  %640 = vmatprep.subr.mxu0 %v568
  %641 = vmatpush1.msra.mxu0 %v567
  %642 = vmatprep.subr.mxu0 %v565
  %643 = vmatpush1.msra.mxu0 %v564
  %644 = vmatprep.subr.mxu0 0.0
  %645 = vmatpush2.msra.mxu0 0.0
  %646 = vmatprep.subr.mxu0 0.0
  %647 = vmatpush2.msra.mxu0 0.0
  %648 = vmatprep.subr.mxu0 0.0
  %649 = vmatpush2.msra.mxu0 0.0
  %650 = vmatprep.subr.mxu0 0.0
  %651 = vmatpush2.msra.mxu0 0.0
  %652 = vmatprep.subr.mxu0 0.0
  %653 = vmatpush2.msra.mxu0 0.0
  %654 = vmatprep.subr.mxu0 0.0
  %655 = vmatpush2.msra.mxu0 0.0
  %656 = vmatprep.subr.mxu0 0.0
  %657 = vmatpush2.msra.mxu0 0.0
  %658 = vmatprep.subr.mxu0 0.0
  %659 = vmatpush2.msra.mxu0 0.0
  %660 = vmatprep.subr.mxu0 0.0
  %661 = vmatpush2.msra.mxu0 0.0
  %662 = vmatprep.subr.mxu0 0.0
  %663 = vmatpush2.msra.mxu0 0.0
  %664 = vmatprep.subr.mxu0 0.0
  %665 = vmatpush2.msra.mxu0 0.0
  %666 = vmatprep.subr.mxu0 0.0
  %667 = vmatpush2.msra.mxu0 0.0
  %668 = vmatprep.subr.mxu0 0.0
  %669 = vmatpush2.msra.mxu0 0.0
  %670 = vmatprep.subr.mxu0 0.0
  %671 = vmatpush2.msra.mxu0 0.0
  %672 = vmatprep.subr.mxu0 0.0
  %673 = vmatpush2.msra.mxu0 0.0
  %674 = vmatprep.subr.mxu0 0.0
  %675 = vmatpush2.msra.mxu0 0.0
  %676 = vmatprep.mubr.f32.mxu0 0.0
  %677 = vmatmul.mubr.f32.gmra.mxu0 %v556
  %v678 = vpop.f32.mrf.mxu0
  %v679 = vadd.f32 0.0, %v678
  %v680 = vpop.f32.mrf.mxu0
  %v681 = vadd.f32 0.0, %v680
  %682 = vdwg.mxu0
  %683 = vmatprep.subr.mxu0 0.0
  %684 = vmatpush1.msra.mxu0 %v611
  %685 = vmatprep.subr.mxu0 0.0
  %686 = vmatpush1.msra.mxu0 %v608
  %687 = vmatprep.subr.mxu0 0.0
  %688 = vmatpush1.msra.mxu0 %v605
  %689 = vmatprep.subr.mxu0 0.0
  %690 = vmatpush1.msra.mxu0 %v602
  %691 = vmatprep.subr.mxu0 0.0
  %692 = vmatpush1.msra.mxu0 %v599
  %693 = vmatprep.subr.mxu0 0.0
  %694 = vmatpush1.msra.mxu0 %v596
  %695 = vmatprep.subr.mxu0 0.0
  %696 = vmatpush1.msra.mxu0 %v593
  %697 = vmatprep.subr.mxu0 0.0
  %698 = vmatpush1.msra.mxu0 %v590
  %699 = vmatprep.subr.mxu0 0.0
  %700 = vmatpush1.msra.mxu0 %v587
  %701 = vmatprep.subr.mxu0 0.0
  %702 = vmatpush1.msra.mxu0 %v584
  %703 = vmatprep.subr.mxu0 0.0
  %704 = vmatpush1.msra.mxu0 %v581
  %705 = vmatprep.subr.mxu0 0.0
  %706 = vmatpush1.msra.mxu0 %v578
  %707 = vmatprep.subr.mxu0 0.0
  %708 = vmatpush1.msra.mxu0 %v575
  %709 = vmatprep.subr.mxu0 0.0
  %710 = vmatpush1.msra.mxu0 %v572
  %711 = vmatprep.subr.mxu0 0.0
  %712 = vmatpush1.msra.mxu0 %v569
  %713 = vmatprep.subr.mxu0 0.0
  %714 = vmatpush1.msra.mxu0 %v566
  %715 = vmatprep.subr.mxu0 0.0
  %716 = vmatpush2.msra.mxu0 0.0
  %717 = vmatprep.subr.mxu0 0.0
  %718 = vmatpush2.msra.mxu0 0.0
  %719 = vmatprep.subr.mxu0 0.0
  %720 = vmatpush2.msra.mxu0 0.0
  %721 = vmatprep.subr.mxu0 0.0
  %722 = vmatpush2.msra.mxu0 0.0
  %723 = vmatprep.subr.mxu0 0.0
  %724 = vmatpush2.msra.mxu0 0.0
  %725 = vmatprep.subr.mxu0 0.0
  %726 = vmatpush2.msra.mxu0 0.0
  %727 = vmatprep.subr.mxu0 0.0
  %728 = vmatpush2.msra.mxu0 0.0
  %729 = vmatprep.subr.mxu0 0.0
  %730 = vmatpush2.msra.mxu0 0.0
  %731 = vmatprep.subr.mxu0 0.0
  %732 = vmatpush2.msra.mxu0 0.0
  %733 = vmatprep.subr.mxu0 0.0
  %734 = vmatpush2.msra.mxu0 0.0
  %735 = vmatprep.subr.mxu0 0.0
  %736 = vmatpush2.msra.mxu0 0.0
  %737 = vmatprep.subr.mxu0 0.0
  %738 = vmatpush2.msra.mxu0 0.0
  %739 = vmatprep.subr.mxu0 0.0
  %740 = vmatpush2.msra.mxu0 0.0
  %741 = vmatprep.subr.mxu0 0.0
  %742 = vmatpush2.msra.mxu0 0.0
  %743 = vmatprep.subr.mxu0 0.0
  %744 = vmatpush2.msra.mxu0 0.0
  %745 = vmatprep.subr.mxu0 0.0
  %746 = vmatpush2.msra.mxu0 0.0
  %747 = vmatprep.mubr.f32.mxu0 0.0
  %748 = vmatmul.mubr.f32.gmra.mxu0 %v556
  %v749 = vpop.f32.mrf.mxu0
  %v750 = vadd.f32 0.0, %v749
  %v751 = vpop.f32.mrf.mxu0
  %752 = vdwg.mxu0
  %v753 = vadd.f32 %v561, %v679
  %v754 = vxor.u32 %v753, 2147483648
  %v755 = vmul.f32 %v754, 1.442695
  %v756 = vpow.pop %v755
  %v757 = vadd.f32 %v756, 1.0
  %v758 = vrcp.pop %v757
  %v759 = vmul.f32 1.0, %v758
  %v760 = vadd.f32 %v562, %v681
  %v761 = vxor.u32 %v760, 2147483648
  %v762 = vmul.f32 %v761, 1.442695
  %v763 = vpow.pop %v762
  %v764 = vadd.f32 %v763, 1.0
  %v765 = vrcp.pop %v764
  %v766 = vmul.f32 1.0, %v765
  %v767 = vadd.f32 %v750, %v338
  %v768 = vmul.f32 %v759, %v767
  %v769 = vadd.f32 %v563, %v768
  %v770 = vtanh.pop %v769
  %v771 = vsub.f32 1.0, %v766
  %v772 = vmul.f32 %v771, %v770
  %v773 = vmul.f32 %v766, %v556
  %v774 = vadd.f32 %v772, %v773
  %s775 = scalar_lea.vmem [#allocation3], 8
  %776 = vst [vmem:[%s775] sm:$0xff] %v774
  %s777 = smul.u32 2, 3
  %s778 = smul.addr %s777, 8
  %s779 = scalar_lea.vmem [#allocation2], %s778
  %v780 = vld [vmem:[%s779] sm:$0xff]
  %v781 = vld [vmem:[%s779 + $0x8] sm:$0xff]
  %v782 = vld [vmem:[%s779 + $0x10] sm:$0xff]
  %v783 = vld [vmem:[%s3] sm:$0xff]
  %v784 = vld [vmem:[%s3 + $0x8] sm:$0xff]
  %v785 = vld [vmem:[%s3 + $0x10] sm:$0xff]
  %v786 = vld [vmem:[%s3 + $0x18] sm:$0xff]
  %v787 = vld [vmem:[%s3 + $0x20] sm:$0xff]
  %v788 = vld [vmem:[%s3 + $0x28] sm:$0xff]
  %v789 = vld [vmem:[%s3 + $0x30] sm:$0xff]
  %v790 = vld [vmem:[%s3 + $0x38] sm:$0xff]
  %v791 = vld [vmem:[%s3 + $0x40] sm:$0xff]
  %v792 = vld [vmem:[%s3 + $0x48] sm:$0xff]
  %v793 = vld [vmem:[%s3 + $0x50] sm:$0xff]
  %v794 = vld [vmem:[%s3 + $0x58] sm:$0xff]
  %v795 = vld [vmem:[%s3 + $0x60] sm:$0xff]
  %v796 = vld [vmem:[%s3 + $0x68] sm:$0xff]
  %v797 = vld [vmem:[%s3 + $0x70] sm:$0xff]
  %v798 = vld [vmem:[%s3 + $0x78] sm:$0xff]
  %v799 = vld [vmem:[%s3 + $0x80] sm:$0xff]
  %v800 = vld [vmem:[%s3 + $0x88] sm:$0xff]
  %v801 = vld [vmem:[%s3 + $0x90] sm:$0xff]
  %v802 = vld [vmem:[%s3 + $0x98] sm:$0xff]
  %v803 = vld [vmem:[%s3 + $0xa0] sm:$0xff]
  %v804 = vld [vmem:[%s3 + $0xa8] sm:$0xff]
  %v805 = vld [vmem:[%s3 + $0xb0] sm:$0xff]
  %v806 = vld [vmem:[%s3 + $0xb8] sm:$0xff]
  %v807 = vld [vmem:[%s3 + $0xc0] sm:$0xff]
  %v808 = vld [vmem:[%s3 + $0xc8] sm:$0xff]
  %v809 = vld [vmem:[%s3 + $0xd0] sm:$0xff]
  %v810 = vld [vmem:[%s3 + $0xd8] sm:$0xff]
  %v811 = vld [vmem:[%s3 + $0xe0] sm:$0xff]
  %v812 = vld [vmem:[%s3 + $0xe8] sm:$0xff]
  %v813 = vld [vmem:[%s3 + $0xf0] sm:$0xff]
  %v814 = vld [vmem:[%s3 + $0xf8] sm:$0xff]
  %v815 = vld [vmem:[%s3 + $0x100] sm:$0xff]
  %v816 = vld [vmem:[%s3 + $0x108] sm:$0xff]
  %v817 = vld [vmem:[%s3 + $0x110] sm:$0xff]
  %v818 = vld [vmem:[%s3 + $0x118] sm:$0xff]
  %v819 = vld [vmem:[%s3 + $0x120] sm:$0xff]
  %v820 = vld [vmem:[%s3 + $0x128] sm:$0xff]
  %v821 = vld [vmem:[%s3 + $0x130] sm:$0xff]
  %v822 = vld [vmem:[%s3 + $0x138] sm:$0xff]
  %v823 = vld [vmem:[%s3 + $0x140] sm:$0xff]
  %v824 = vld [vmem:[%s3 + $0x148] sm:$0xff]
  %v825 = vld [vmem:[%s3 + $0x150] sm:$0xff]
  %v826 = vld [vmem:[%s3 + $0x158] sm:$0xff]
  %v827 = vld [vmem:[%s3 + $0x160] sm:$0xff]
  %v828 = vld [vmem:[%s3 + $0x168] sm:$0xff]
  %v829 = vld [vmem:[%s3 + $0x170] sm:$0xff]
  %v830 = vld [vmem:[%s3 + $0x178] sm:$0xff]
  %831 = vmatprep.subr.mxu0 %v829
  %832 = vmatpush1.msra.mxu0 %v828
  %833 = vmatprep.subr.mxu0 %v826
  %834 = vmatpush1.msra.mxu0 %v825
  %835 = vmatprep.subr.mxu0 %v823
  %836 = vmatpush1.msra.mxu0 %v822
  %837 = vmatprep.subr.mxu0 %v820
  %838 = vmatpush1.msra.mxu0 %v819
  %839 = vmatprep.subr.mxu0 %v817
  %840 = vmatpush1.msra.mxu0 %v816
  %841 = vmatprep.subr.mxu0 %v814
  %842 = vmatpush1.msra.mxu0 %v813
  %843 = vmatprep.subr.mxu0 %v811
  %844 = vmatpush1.msra.mxu0 %v810
  %845 = vmatprep.subr.mxu0 %v808
  %846 = vmatpush1.msra.mxu0 %v807
  %847 = vmatprep.subr.mxu0 %v805
  %848 = vmatpush1.msra.mxu0 %v804
  %849 = vmatprep.subr.mxu0 %v802
  %850 = vmatpush1.msra.mxu0 %v801
  %851 = vmatprep.subr.mxu0 %v799
  %852 = vmatpush1.msra.mxu0 %v798
  %853 = vmatprep.subr.mxu0 %v796
  %854 = vmatpush1.msra.mxu0 %v795
  %855 = vmatprep.subr.mxu0 %v793
  %856 = vmatpush1.msra.mxu0 %v792
  %857 = vmatprep.subr.mxu0 %v790
  %858 = vmatpush1.msra.mxu0 %v789
  %859 = vmatprep.subr.mxu0 %v787
  %860 = vmatpush1.msra.mxu0 %v786
  %861 = vmatprep.subr.mxu0 %v784
  %862 = vmatpush1.msra.mxu0 %v783
  %863 = vmatprep.subr.mxu0 0.0
  %864 = vmatpush2.msra.mxu0 0.0
  %865 = vmatprep.subr.mxu0 0.0
  %866 = vmatpush2.msra.mxu0 0.0
  %867 = vmatprep.subr.mxu0 0.0
  %868 = vmatpush2.msra.mxu0 0.0
  %869 = vmatprep.subr.mxu0 0.0
  %870 = vmatpush2.msra.mxu0 0.0
  %871 = vmatprep.subr.mxu0 0.0
  %872 = vmatpush2.msra.mxu0 0.0
  %873 = vmatprep.subr.mxu0 0.0
  %874 = vmatpush2.msra.mxu0 0.0
  %875 = vmatprep.subr.mxu0 0.0
  %876 = vmatpush2.msra.mxu0 0.0
  %877 = vmatprep.subr.mxu0 0.0
  %878 = vmatpush2.msra.mxu0 0.0
  %879 = vmatprep.subr.mxu0 0.0
  %880 = vmatpush2.msra.mxu0 0.0
  %881 = vmatprep.subr.mxu0 0.0
  %882 = vmatpush2.msra.mxu0 0.0
  %883 = vmatprep.subr.mxu0 0.0
  %884 = vmatpush2.msra.mxu0 0.0
  %885 = vmatprep.subr.mxu0 0.0
  %886 = vmatpush2.msra.mxu0 0.0
  %887 = vmatprep.subr.mxu0 0.0
  %888 = vmatpush2.msra.mxu0 0.0
  %889 = vmatprep.subr.mxu0 0.0
  %890 = vmatpush2.msra.mxu0 0.0
  %891 = vmatprep.subr.mxu0 0.0
  %892 = vmatpush2.msra.mxu0 0.0
  %893 = vmatprep.subr.mxu0 0.0
  %894 = vmatpush2.msra.mxu0 0.0
  %895 = vmatprep.mubr.f32.mxu0 0.0
  %896 = vmatmul.mubr.f32.gmra.mxu0 %v774
  %v897 = vpop.f32.mrf.mxu0
  %v898 = vadd.f32 0.0, %v897
  %v899 = vpop.f32.mrf.mxu0
  %v900 = vadd.f32 0.0, %v899
  %901 = vdwg.mxu0
  %902 = vmatprep.subr.mxu0 0.0
  %903 = vmatpush1.msra.mxu0 %v830
  %904 = vmatprep.subr.mxu0 0.0
  %905 = vmatpush1.msra.mxu0 %v827
  %906 = vmatprep.subr.mxu0 0.0
  %907 = vmatpush1.msra.mxu0 %v824
  %908 = vmatprep.subr.mxu0 0.0
  %909 = vmatpush1.msra.mxu0 %v821
  %910 = vmatprep.subr.mxu0 0.0
  %911 = vmatpush1.msra.mxu0 %v818
  %912 = vmatprep.subr.mxu0 0.0
  %913 = vmatpush1.msra.mxu0 %v815
  %914 = vmatprep.subr.mxu0 0.0
  %915 = vmatpush1.msra.mxu0 %v812
  %916 = vmatprep.subr.mxu0 0.0
  %917 = vmatpush1.msra.mxu0 %v809
  %918 = vmatprep.subr.mxu0 0.0
  %919 = vmatpush1.msra.mxu0 %v806
  %920 = vmatprep.subr.mxu0 0.0
  %921 = vmatpush1.msra.mxu0 %v803
  %922 = vmatprep.subr.mxu0 0.0
  %923 = vmatpush1.msra.mxu0 %v800
  %924 = vmatprep.subr.mxu0 0.0
  %925 = vmatpush1.msra.mxu0 %v797
  %926 = vmatprep.subr.mxu0 0.0
  %927 = vmatpush1.msra.mxu0 %v794
  %928 = vmatprep.subr.mxu0 0.0
  %929 = vmatpush1.msra.mxu0 %v791
  %930 = vmatprep.subr.mxu0 0.0
  %931 = vmatpush1.msra.mxu0 %v788
  %932 = vmatprep.subr.mxu0 0.0
  %933 = vmatpush1.msra.mxu0 %v785
  %934 = vmatprep.subr.mxu0 0.0
  %935 = vmatpush2.msra.mxu0 0.0
  %936 = vmatprep.subr.mxu0 0.0
  %937 = vmatpush2.msra.mxu0 0.0
  %938 = vmatprep.subr.mxu0 0.0
  %939 = vmatpush2.msra.mxu0 0.0
  %940 = vmatprep.subr.mxu0 0.0
  %941 = vmatpush2.msra.mxu0 0.0
  %942 = vmatprep.subr.mxu0 0.0
  %943 = vmatpush2.msra.mxu0 0.0
  %944 = vmatprep.subr.mxu0 0.0
  %945 = vmatpush2.msra.mxu0 0.0
  %946 = vmatprep.subr.mxu0 0.0
  %947 = vmatpush2.msra.mxu0 0.0
  %948 = vmatprep.subr.mxu0 0.0
  %949 = vmatpush2.msra.mxu0 0.0
  %950 = vmatprep.subr.mxu0 0.0
  %951 = vmatpush2.msra.mxu0 0.0
  %952 = vmatprep.subr.mxu0 0.0
  %953 = vmatpush2.msra.mxu0 0.0
  %954 = vmatprep.subr.mxu0 0.0
  %955 = vmatpush2.msra.mxu0 0.0
  %956 = vmatprep.subr.mxu0 0.0
  %957 = vmatpush2.msra.mxu0 0.0
  %958 = vmatprep.subr.mxu0 0.0
  %959 = vmatpush2.msra.mxu0 0.0
  %960 = vmatprep.subr.mxu0 0.0
  %961 = vmatpush2.msra.mxu0 0.0
  %962 = vmatprep.subr.mxu0 0.0
  %963 = vmatpush2.msra.mxu0 0.0
  %964 = vmatprep.subr.mxu0 0.0
  %965 = vmatpush2.msra.mxu0 0.0
  %966 = vmatprep.mubr.f32.mxu0 0.0
  %967 = vmatmul.mubr.f32.gmra.mxu0 %v774
  %v968 = vpop.f32.mrf.mxu0
  %v969 = vadd.f32 0.0, %v968
  %v970 = vpop.f32.mrf.mxu0
  %971 = vdwg.mxu0
  %v972 = vadd.f32 %v780, %v898
  %v973 = vxor.u32 %v972, 2147483648
  %v974 = vmul.f32 %v973, 1.442695
  %v975 = vpow.pop %v974
  %v976 = vadd.f32 %v975, 1.0
  %v977 = vrcp.pop %v976
  %v978 = vmul.f32 1.0, %v977
  %v979 = vadd.f32 %v781, %v900
  %v980 = vxor.u32 %v979, 2147483648
  %v981 = vmul.f32 %v980, 1.442695
  %v982 = vpow.pop %v981
  %v983 = vadd.f32 %v982, 1.0
  %v984 = vrcp.pop %v983
  %v985 = vmul.f32 1.0, %v984
  %v986 = vadd.f32 %v969, %v338
  %v987 = vmul.f32 %v978, %v986
  %v988 = vadd.f32 %v782, %v987
  %v989 = vtanh.pop %v988
  %v990 = vsub.f32 1.0, %v985
  %v991 = vmul.f32 %v990, %v989
  %v992 = vmul.f32 %v985, %v774
  %v993 = vadd.f32 %v991, %v992
  %s994 = scalar_lea.vmem [#allocation3], 16
  %995 = vst [vmem:[%s994] sm:$0xff] %v993
  %s996 = smul.u32 3, 3
  %s997 = smul.addr %s996, 8
  %s998 = scalar_lea.vmem [#allocation2], %s997
  %v999 = vld [vmem:[%s998] sm:$0xff]
  %v1000 = vld [vmem:[%s998 + $0x8] sm:$0xff]
  %v1001 = vld [vmem:[%s998 + $0x10] sm:$0xff]
  %v1002 = vld [vmem:[%s3] sm:$0xff]
  %v1003 = vld [vmem:[%s3 + $0x8] sm:$0xff]
  %v1004 = vld [vmem:[%s3 + $0x10] sm:$0xff]
  %v1005 = vld [vmem:[%s3 + $0x18] sm:$0xff]
  %v1006 = vld [vmem:[%s3 + $0x20] sm:$0xff]
  %v1007 = vld [vmem:[%s3 + $0x28] sm:$0xff]
  %v1008 = vld [vmem:[%s3 + $0x30] sm:$0xff]
  %v1009 = vld [vmem:[%s3 + $0x38] sm:$0xff]
  %v1010 = vld [vmem:[%s3 + $0x40] sm:$0xff]
  %v1011 = vld [vmem:[%s3 + $0x48] sm:$0xff]
  %v1012 = vld [vmem:[%s3 + $0x50] sm:$0xff]
  %v1013 = vld [vmem:[%s3 + $0x58] sm:$0xff]
  %v1014 = vld [vmem:[%s3 + $0x60] sm:$0xff]
  %v1015 = vld [vmem:[%s3 + $0x68] sm:$0xff]
  %v1016 = vld [vmem:[%s3 + $0x70] sm:$0xff]
  %v1017 = vld [vmem:[%s3 + $0x78] sm:$0xff]
  %v1018 = vld [vmem:[%s3 + $0x80] sm:$0xff]
  %v1019 = vld [vmem:[%s3 + $0x88] sm:$0xff]
  %v1020 = vld [vmem:[%s3 + $0x90] sm:$0xff]
  %v1021 = vld [vmem:[%s3 + $0x98] sm:$0xff]
  %v1022 = vld [vmem:[%s3 + $0xa0] sm:$0xff]
  %v1023 = vld [vmem:[%s3 + $0xa8] sm:$0xff]
  %v1024 = vld [vmem:[%s3 + $0xb0] sm:$0xff]
  %v1025 = vld [vmem:[%s3 + $0xb8] sm:$0xff]
  %v1026 = vld [vmem:[%s3 + $0xc0] sm:$0xff]
  %v1027 = vld [vmem:[%s3 + $0xc8] sm:$0xff]
  %v1028 = vld [vmem:[%s3 + $0xd0] sm:$0xff]
  %v1029 = vld [vmem:[%s3 + $0xd8] sm:$0xff]
  %v1030 = vld [vmem:[%s3 + $0xe0] sm:$0xff]
  %v1031 = vld [vmem:[%s3 + $0xe8] sm:$0xff]
  %v1032 = vld [vmem:[%s3 + $0xf0] sm:$0xff]
  %v1033 = vld [vmem:[%s3 + $0xf8] sm:$0xff]
  %v1034 = vld [vmem:[%s3 + $0x100] sm:$0xff]
  %v1035 = vld [vmem:[%s3 + $0x108] sm:$0xff]
  %v1036 = vld [vmem:[%s3 + $0x110] sm:$0xff]
  %v1037 = vld [vmem:[%s3 + $0x118] sm:$0xff]
  %v1038 = vld [vmem:[%s3 + $0x120] sm:$0xff]
  %v1039 = vld [vmem:[%s3 + $0x128] sm:$0xff]
  %v1040 = vld [vmem:[%s3 + $0x130] sm:$0xff]
  %v1041 = vld [vmem:[%s3 + $0x138] sm:$0xff]
  %v1042 = vld [vmem:[%s3 + $0x140] sm:$0xff]
  %v1043 = vld [vmem:[%s3 + $0x148] sm:$0xff]
  %v1044 = vld [vmem:[%s3 + $0x150] sm:$0xff]
  %v1045 = vld [vmem:[%s3 + $0x158] sm:$0xff]
  %v1046 = vld [vmem:[%s3 + $0x160] sm:$0xff]
  %v1047 = vld [vmem:[%s3 + $0x168] sm:$0xff]
  %v1048 = vld [vmem:[%s3 + $0x170] sm:$0xff]
  %v1049 = vld [vmem:[%s3 + $0x178] sm:$0xff]
  %1050 = vmatprep.subr.mxu0 %v1048
  %1051 = vmatpush1.msra.mxu0 %v1047
  %1052 = vmatprep.subr.mxu0 %v1045
  %1053 = vmatpush1.msra.mxu0 %v1044
  %1054 = vmatprep.subr.mxu0 %v1042
  %1055 = vmatpush1.msra.mxu0 %v1041
  %1056 = vmatprep.subr.mxu0 %v1039
  %1057 = vmatpush1.msra.mxu0 %v1038
  %1058 = vmatprep.subr.mxu0 %v1036
  %1059 = vmatpush1.msra.mxu0 %v1035
  %1060 = vmatprep.subr.mxu0 %v1033
  %1061 = vmatpush1.msra.mxu0 %v1032
  %1062 = vmatprep.subr.mxu0 %v1030
  %1063 = vmatpush1.msra.mxu0 %v1029
  %1064 = vmatprep.subr.mxu0 %v1027
  %1065 = vmatpush1.msra.mxu0 %v1026
  %1066 = vmatprep.subr.mxu0 %v1024
  %1067 = vmatpush1.msra.mxu0 %v1023
  %1068 = vmatprep.subr.mxu0 %v1021
  %1069 = vmatpush1.msra.mxu0 %v1020
  %1070 = vmatprep.subr.mxu0 %v1018
  %1071 = vmatpush1.msra.mxu0 %v1017
  %1072 = vmatprep.subr.mxu0 %v1015
  %1073 = vmatpush1.msra.mxu0 %v1014
  %1074 = vmatprep.subr.mxu0 %v1012
  %1075 = vmatpush1.msra.mxu0 %v1011
  %1076 = vmatprep.subr.mxu0 %v1009
  %1077 = vmatpush1.msra.mxu0 %v1008
  %1078 = vmatprep.subr.mxu0 %v1006
  %1079 = vmatpush1.msra.mxu0 %v1005
  %1080 = vmatprep.subr.mxu0 %v1003
  %1081 = vmatpush1.msra.mxu0 %v1002
  %1082 = vmatprep.subr.mxu0 0.0
  %1083 = vmatpush2.msra.mxu0 0.0
  %1084 = vmatprep.subr.mxu0 0.0
  %1085 = vmatpush2.msra.mxu0 0.0
  %1086 = vmatprep.subr.mxu0 0.0
  %1087 = vmatpush2.msra.mxu0 0.0
  %1088 = vmatprep.subr.mxu0 0.0
  %1089 = vmatpush2.msra.mxu0 0.0
  %1090 = vmatprep.subr.mxu0 0.0
  %1091 = vmatpush2.msra.mxu0 0.0
  %1092 = vmatprep.subr.mxu0 0.0
  %1093 = vmatpush2.msra.mxu0 0.0
  %1094 = vmatprep.subr.mxu0 0.0
  %1095 = vmatpush2.msra.mxu0 0.0
  %1096 = vmatprep.subr.mxu0 0.0
  %1097 = vmatpush2.msra.mxu0 0.0
  %1098 = vmatprep.subr.mxu0 0.0
  %1099 = vmatpush2.msra.mxu0 0.0
  %1100 = vmatprep.subr.mxu0 0.0
  %1101 = vmatpush2.msra.mxu0 0.0
  %1102 = vmatprep.subr.mxu0 0.0
  %1103 = vmatpush2.msra.mxu0 0.0
  %1104 = vmatprep.subr.mxu0 0.0
  %1105 = vmatpush2.msra.mxu0 0.0
  %1106 = vmatprep.subr.mxu0 0.0
  %1107 = vmatpush2.msra.mxu0 0.0
  %1108 = vmatprep.subr.mxu0 0.0
  %1109 = vmatpush2.msra.mxu0 0.0
  %1110 = vmatprep.subr.mxu0 0.0
  %1111 = vmatpush2.msra.mxu0 0.0
  %1112 = vmatprep.subr.mxu0 0.0
  %1113 = vmatpush2.msra.mxu0 0.0
  %1114 = vmatprep.mubr.f32.mxu0 0.0
  %1115 = vmatmul.mubr.f32.gmra.mxu0 %v993
  %v1116 = vpop.f32.mrf.mxu0
  %v1117 = vadd.f32 0.0, %v1116
  %v1118 = vpop.f32.mrf.mxu0
  %v1119 = vadd.f32 0.0, %v1118
  %1120 = vdwg.mxu0
  %1121 = vmatprep.subr.mxu0 0.0
  %1122 = vmatpush1.msra.mxu0 %v1049
  %1123 = vmatprep.subr.mxu0 0.0
  %1124 = vmatpush1.msra.mxu0 %v1046
  %1125 = vmatprep.subr.mxu0 0.0
  %1126 = vmatpush1.msra.mxu0 %v1043
  %1127 = vmatprep.subr.mxu0 0.0
  %1128 = vmatpush1.msra.mxu0 %v1040
  %1129 = vmatprep.subr.mxu0 0.0
  %1130 = vmatpush1.msra.mxu0 %v1037
  %1131 = vmatprep.subr.mxu0 0.0
  %1132 = vmatpush1.msra.mxu0 %v1034
  %1133 = vmatprep.subr.mxu0 0.0
  %1134 = vmatpush1.msra.mxu0 %v1031
  %1135 = vmatprep.subr.mxu0 0.0
  %1136 = vmatpush1.msra.mxu0 %v1028
  %1137 = vmatprep.subr.mxu0 0.0
  %1138 = vmatpush1.msra.mxu0 %v1025
  %1139 = vmatprep.subr.mxu0 0.0
  %1140 = vmatpush1.msra.mxu0 %v1022
  %1141 = vmatprep.subr.mxu0 0.0
  %1142 = vmatpush1.msra.mxu0 %v1019
  %1143 = vmatprep.subr.mxu0 0.0
  %1144 = vmatpush1.msra.mxu0 %v1016
  %1145 = vmatprep.subr.mxu0 0.0
  %1146 = vmatpush1.msra.mxu0 %v1013
  %1147 = vmatprep.subr.mxu0 0.0
  %1148 = vmatpush1.msra.mxu0 %v1010
  %1149 = vmatprep.subr.mxu0 0.0
  %1150 = vmatpush1.msra.mxu0 %v1007
  %1151 = vmatprep.subr.mxu0 0.0
  %1152 = vmatpush1.msra.mxu0 %v1004
  %1153 = vmatprep.subr.mxu0 0.0
  %1154 = vmatpush2.msra.mxu0 0.0
  %1155 = vmatprep.subr.mxu0 0.0
  %1156 = vmatpush2.msra.mxu0 0.0
  %1157 = vmatprep.subr.mxu0 0.0
  %1158 = vmatpush2.msra.mxu0 0.0
  %1159 = vmatprep.subr.mxu0 0.0
  %1160 = vmatpush2.msra.mxu0 0.0
  %1161 = vmatprep.subr.mxu0 0.0
  %1162 = vmatpush2.msra.mxu0 0.0
  %1163 = vmatprep.subr.mxu0 0.0
  %1164 = vmatpush2.msra.mxu0 0.0
  %1165 = vmatprep.subr.mxu0 0.0
  %1166 = vmatpush2.msra.mxu0 0.0
  %1167 = vmatprep.subr.mxu0 0.0
  %1168 = vmatpush2.msra.mxu0 0.0
  %1169 = vmatprep.subr.mxu0 0.0
  %1170 = vmatpush2.msra.mxu0 0.0
  %1171 = vmatprep.subr.mxu0 0.0
  %1172 = vmatpush2.msra.mxu0 0.0
  %1173 = vmatprep.subr.mxu0 0.0
  %1174 = vmatpush2.msra.mxu0 0.0
  %1175 = vmatprep.subr.mxu0 0.0
  %1176 = vmatpush2.msra.mxu0 0.0
  %1177 = vmatprep.subr.mxu0 0.0
  %1178 = vmatpush2.msra.mxu0 0.0
  %1179 = vmatprep.subr.mxu0 0.0
  %1180 = vmatpush2.msra.mxu0 0.0
  %1181 = vmatprep.subr.mxu0 0.0
  %1182 = vmatpush2.msra.mxu0 0.0
  %1183 = vmatprep.subr.mxu0 0.0
  %1184 = vmatpush2.msra.mxu0 0.0
  %1185 = vmatprep.mubr.f32.mxu0 0.0
  %1186 = vmatmul.mubr.f32.gmra.mxu0 %v993
  %v1187 = vpop.f32.mrf.mxu0
  %v1188 = vadd.f32 0.0, %v1187
  %v1189 = vpop.f32.mrf.mxu0
  %1190 = vdwg.mxu0
  %v1191 = vadd.f32 %v999, %v1117
  %v1192 = vxor.u32 %v1191, 2147483648
  %v1193 = vmul.f32 %v1192, 1.442695
  %v1194 = vpow.pop %v1193
  %v1195 = vadd.f32 %v1194, 1.0
  %v1196 = vrcp.pop %v1195
  %v1197 = vmul.f32 1.0, %v1196
  %v1198 = vadd.f32 %v1000, %v1119
  %v1199 = vxor.u32 %v1198, 2147483648
  %v1200 = vmul.f32 %v1199, 1.442695
  %v1201 = vpow.pop %v1200
  %v1202 = vadd.f32 %v1201, 1.0
  %v1203 = vrcp.pop %v1202
  %v1204 = vmul.f32 1.0, %v1203
  %v1205 = vadd.f32 %v1188, %v338
  %v1206 = vmul.f32 %v1197, %v1205
  %v1207 = vadd.f32 %v1001, %v1206
  %v1208 = vtanh.pop %v1207
  %v1209 = vsub.f32 1.0, %v1204
  %v1210 = vmul.f32 %v1209, %v1208
  %v1211 = vmul.f32 %v1204, %v993
  %v1212 = vadd.f32 %v1210, %v1211
  %s1213 = scalar_lea.vmem [#allocation3], 24
  %1214 = vst [vmem:[%s1213] sm:$0xff] %v1212
  %s1215 = smul.u32 4, 3
  %s1216 = smul.addr %s1215, 8
  %s1217 = scalar_lea.vmem [#allocation2], %s1216
  %v1218 = vld [vmem:[%s1217] sm:$0xff]
  %v1219 = vld [vmem:[%s1217 + $0x8] sm:$0xff]
  %v1220 = vld [vmem:[%s1217 + $0x10] sm:$0xff]
  %v1221 = vld [vmem:[%s3] sm:$0xff]
  %v1222 = vld [vmem:[%s3 + $0x8] sm:$0xff]
  %v1223 = vld [vmem:[%s3 + $0x10] sm:$0xff]
  %v1224 = vld [vmem:[%s3 + $0x18] sm:$0xff]
  %v1225 = vld [vmem:[%s3 + $0x20] sm:$0xff]
  %v1226 = vld [vmem:[%s3 + $0x28] sm:$0xff]
  %v1227 = vld [vmem:[%s3 + $0x30] sm:$0xff]
  %v1228 = vld [vmem:[%s3 + $0x38] sm:$0xff]
  %v1229 = vld [vmem:[%s3 + $0x40] sm:$0xff]
  %v1230 = vld [vmem:[%s3 + $0x48] sm:$0xff]
  %v1231 = vld [vmem:[%s3 + $0x50] sm:$0xff]
  %v1232 = vld [vmem:[%s3 + $0x58] sm:$0xff]
  %v1233 = vld [vmem:[%s3 + $0x60] sm:$0xff]
  %v1234 = vld [vmem:[%s3 + $0x68] sm:$0xff]
  %v1235 = vld [vmem:[%s3 + $0x70] sm:$0xff]
  %v1236 = vld [vmem:[%s3 + $0x78] sm:$0xff]
  %v1237 = vld [vmem:[%s3 + $0x80] sm:$0xff]
  %v1238 = vld [vmem:[%s3 + $0x88] sm:$0xff]
  %v1239 = vld [vmem:[%s3 + $0x90] sm:$0xff]
  %v1240 = vld [vmem:[%s3 + $0x98] sm:$0xff]
  %v1241 = vld [vmem:[%s3 + $0xa0] sm:$0xff]
  %v1242 = vld [vmem:[%s3 + $0xa8] sm:$0xff]
  %v1243 = vld [vmem:[%s3 + $0xb0] sm:$0xff]
  %v1244 = vld [vmem:[%s3 + $0xb8] sm:$0xff]
  %v1245 = vld [vmem:[%s3 + $0xc0] sm:$0xff]
  %v1246 = vld [vmem:[%s3 + $0xc8] sm:$0xff]
  %v1247 = vld [vmem:[%s3 + $0xd0] sm:$0xff]
  %v1248 = vld [vmem:[%s3 + $0xd8] sm:$0xff]
  %v1249 = vld [vmem:[%s3 + $0xe0] sm:$0xff]
  %v1250 = vld [vmem:[%s3 + $0xe8] sm:$0xff]
  %v1251 = vld [vmem:[%s3 + $0xf0] sm:$0xff]
  %v1252 = vld [vmem:[%s3 + $0xf8] sm:$0xff]
  %v1253 = vld [vmem:[%s3 + $0x100] sm:$0xff]
  %v1254 = vld [vmem:[%s3 + $0x108] sm:$0xff]
  %v1255 = vld [vmem:[%s3 + $0x110] sm:$0xff]
  %v1256 = vld [vmem:[%s3 + $0x118] sm:$0xff]
  %v1257 = vld [vmem:[%s3 + $0x120] sm:$0xff]
  %v1258 = vld [vmem:[%s3 + $0x128] sm:$0xff]
  %v1259 = vld [vmem:[%s3 + $0x130] sm:$0xff]
  %v1260 = vld [vmem:[%s3 + $0x138] sm:$0xff]
  %v1261 = vld [vmem:[%s3 + $0x140] sm:$0xff]
  %v1262 = vld [vmem:[%s3 + $0x148] sm:$0xff]
  %v1263 = vld [vmem:[%s3 + $0x150] sm:$0xff]
  %v1264 = vld [vmem:[%s3 + $0x158] sm:$0xff]
  %v1265 = vld [vmem:[%s3 + $0x160] sm:$0xff]
  %v1266 = vld [vmem:[%s3 + $0x168] sm:$0xff]
  %v1267 = vld [vmem:[%s3 + $0x170] sm:$0xff]
  %v1268 = vld [vmem:[%s3 + $0x178] sm:$0xff]
  %1269 = vmatprep.subr.mxu0 %v1267
  %1270 = vmatpush1.msra.mxu0 %v1266
  %1271 = vmatprep.subr.mxu0 %v1264
  %1272 = vmatpush1.msra.mxu0 %v1263
  %1273 = vmatprep.subr.mxu0 %v1261
  %1274 = vmatpush1.msra.mxu0 %v1260
  %1275 = vmatprep.subr.mxu0 %v1258
  %1276 = vmatpush1.msra.mxu0 %v1257
  %1277 = vmatprep.subr.mxu0 %v1255
  %1278 = vmatpush1.msra.mxu0 %v1254
  %1279 = vmatprep.subr.mxu0 %v1252
  %1280 = vmatpush1.msra.mxu0 %v1251
  %1281 = vmatprep.subr.mxu0 %v1249
  %1282 = vmatpush1.msra.mxu0 %v1248
  %1283 = vmatprep.subr.mxu0 %v1246
  %1284 = vmatpush1.msra.mxu0 %v1245
  %1285 = vmatprep.subr.mxu0 %v1243
  %1286 = vmatpush1.msra.mxu0 %v1242
  %1287 = vmatprep.subr.mxu0 %v1240
  %1288 = vmatpush1.msra.mxu0 %v1239
  %1289 = vmatprep.subr.mxu0 %v1237
  %1290 = vmatpush1.msra.mxu0 %v1236
  %1291 = vmatprep.subr.mxu0 %v1234
  %1292 = vmatpush1.msra.mxu0 %v1233
  %1293 = vmatprep.subr.mxu0 %v1231
  %1294 = vmatpush1.msra.mxu0 %v1230
  %1295 = vmatprep.subr.mxu0 %v1228
  %1296 = vmatpush1.msra.mxu0 %v1227
  %1297 = vmatprep.subr.mxu0 %v1225
  %1298 = vmatpush1.msra.mxu0 %v1224
  %1299 = vmatprep.subr.mxu0 %v1222
  %1300 = vmatpush1.msra.mxu0 %v1221
  %1301 = vmatprep.subr.mxu0 0.0
  %1302 = vmatpush2.msra.mxu0 0.0
  %1303 = vmatprep.subr.mxu0 0.0
  %1304 = vmatpush2.msra.mxu0 0.0
  %1305 = vmatprep.subr.mxu0 0.0
  %1306 = vmatpush2.msra.mxu0 0.0
  %1307 = vmatprep.subr.mxu0 0.0
  %1308 = vmatpush2.msra.mxu0 0.0
  %1309 = vmatprep.subr.mxu0 0.0
  %1310 = vmatpush2.msra.mxu0 0.0
  %1311 = vmatprep.subr.mxu0 0.0
  %1312 = vmatpush2.msra.mxu0 0.0
  %1313 = vmatprep.subr.mxu0 0.0
  %1314 = vmatpush2.msra.mxu0 0.0
  %1315 = vmatprep.subr.mxu0 0.0
  %1316 = vmatpush2.msra.mxu0 0.0
  %1317 = vmatprep.subr.mxu0 0.0
  %1318 = vmatpush2.msra.mxu0 0.0
  %1319 = vmatprep.subr.mxu0 0.0
  %1320 = vmatpush2.msra.mxu0 0.0
  %1321 = vmatprep.subr.mxu0 0.0
  %1322 = vmatpush2.msra.mxu0 0.0
  %1323 = vmatprep.subr.mxu0 0.0
  %1324 = vmatpush2.msra.mxu0 0.0
  %1325 = vmatprep.subr.mxu0 0.0
  %1326 = vmatpush2.msra.mxu0 0.0
  %1327 = vmatprep.subr.mxu0 0.0
  %1328 = vmatpush2.msra.mxu0 0.0
  %1329 = vmatprep.subr.mxu0 0.0
  %1330 = vmatpush2.msra.mxu0 0.0
  %1331 = vmatprep.subr.mxu0 0.0
  %1332 = vmatpush2.msra.mxu0 0.0
  %1333 = vmatprep.mubr.f32.mxu0 0.0
  %1334 = vmatmul.mubr.f32.gmra.mxu0 %v1212
  %v1335 = vpop.f32.mrf.mxu0
  %v1336 = vadd.f32 0.0, %v1335
  %v1337 = vpop.f32.mrf.mxu0
  %v1338 = vadd.f32 0.0, %v1337
  %1339 = vdwg.mxu0
  %1340 = vmatprep.subr.mxu0 0.0
  %1341 = vmatpush1.msra.mxu0 %v1268
  %1342 = vmatprep.subr.mxu0 0.0
  %1343 = vmatpush1.msra.mxu0 %v1265
  %1344 = vmatprep.subr.mxu0 0.0
  %1345 = vmatpush1.msra.mxu0 %v1262
  %1346 = vmatprep.subr.mxu0 0.0
  %1347 = vmatpush1.msra.mxu0 %v1259
  %1348 = vmatprep.subr.mxu0 0.0
  %1349 = vmatpush1.msra.mxu0 %v1256
  %1350 = vmatprep.subr.mxu0 0.0
  %1351 = vmatpush1.msra.mxu0 %v1253
  %1352 = vmatprep.subr.mxu0 0.0
  %1353 = vmatpush1.msra.mxu0 %v1250
  %1354 = vmatprep.subr.mxu0 0.0
  %1355 = vmatpush1.msra.mxu0 %v1247
  %1356 = vmatprep.subr.mxu0 0.0
  %1357 = vmatpush1.msra.mxu0 %v1244
  %1358 = vmatprep.subr.mxu0 0.0
  %1359 = vmatpush1.msra.mxu0 %v1241
  %1360 = vmatprep.subr.mxu0 0.0
  %1361 = vmatpush1.msra.mxu0 %v1238
  %1362 = vmatprep.subr.mxu0 0.0
  %1363 = vmatpush1.msra.mxu0 %v1235
  %1364 = vmatprep.subr.mxu0 0.0
  %1365 = vmatpush1.msra.mxu0 %v1232
  %1366 = vmatprep.subr.mxu0 0.0
  %1367 = vmatpush1.msra.mxu0 %v1229
  %1368 = vmatprep.subr.mxu0 0.0
  %1369 = vmatpush1.msra.mxu0 %v1226
  %1370 = vmatprep.subr.mxu0 0.0
  %1371 = vmatpush1.msra.mxu0 %v1223
  %1372 = vmatprep.subr.mxu0 0.0
  %1373 = vmatpush2.msra.mxu0 0.0
  %1374 = vmatprep.subr.mxu0 0.0
  %1375 = vmatpush2.msra.mxu0 0.0
  %1376 = vmatprep.subr.mxu0 0.0
  %1377 = vmatpush2.msra.mxu0 0.0
  %1378 = vmatprep.subr.mxu0 0.0
  %1379 = vmatpush2.msra.mxu0 0.0
  %1380 = vmatprep.subr.mxu0 0.0
  %1381 = vmatpush2.msra.mxu0 0.0
  %1382 = vmatprep.subr.mxu0 0.0
  %1383 = vmatpush2.msra.mxu0 0.0
  %1384 = vmatprep.subr.mxu0 0.0
  %1385 = vmatpush2.msra.mxu0 0.0
  %1386 = vmatprep.subr.mxu0 0.0
  %1387 = vmatpush2.msra.mxu0 0.0
  %1388 = vmatprep.subr.mxu0 0.0
  %1389 = vmatpush2.msra.mxu0 0.0
  %1390 = vmatprep.subr.mxu0 0.0
  %1391 = vmatpush2.msra.mxu0 0.0
  %1392 = vmatprep.subr.mxu0 0.0
  %1393 = vmatpush2.msra.mxu0 0.0
  %1394 = vmatprep.subr.mxu0 0.0
  %1395 = vmatpush2.msra.mxu0 0.0
  %1396 = vmatprep.subr.mxu0 0.0
  %1397 = vmatpush2.msra.mxu0 0.0
  %1398 = vmatprep.subr.mxu0 0.0
  %1399 = vmatpush2.msra.mxu0 0.0
  %1400 = vmatprep.subr.mxu0 0.0
  %1401 = vmatpush2.msra.mxu0 0.0
  %1402 = vmatprep.subr.mxu0 0.0
  %1403 = vmatpush2.msra.mxu0 0.0
  %1404 = vmatprep.mubr.f32.mxu0 0.0
  %1405 = vmatmul.mubr.f32.gmra.mxu0 %v1212
  %v1406 = vpop.f32.mrf.mxu0
  %v1407 = vadd.f32 0.0, %v1406
  %v1408 = vpop.f32.mrf.mxu0
  %1409 = vdwg.mxu0
  %v1410 = vadd.f32 %v1218, %v1336
  %v1411 = vxor.u32 %v1410, 2147483648
  %v1412 = vmul.f32 %v1411, 1.442695
  %v1413 = vpow.pop %v1412
  %v1414 = vadd.f32 %v1413, 1.0
  %v1415 = vrcp.pop %v1414
  %v1416 = vmul.f32 1.0, %v1415
  %v1417 = vadd.f32 %v1219, %v1338
  %v1418 = vxor.u32 %v1417, 2147483648
  %v1419 = vmul.f32 %v1418, 1.442695
  %v1420 = vpow.pop %v1419
  %v1421 = vadd.f32 %v1420, 1.0
  %v1422 = vrcp.pop %v1421
  %v1423 = vmul.f32 1.0, %v1422
  %v1424 = vadd.f32 %v1407, %v338
  %v1425 = vmul.f32 %v1416, %v1424
  %v1426 = vadd.f32 %v1220, %v1425
  %v1427 = vtanh.pop %v1426
  %v1428 = vsub.f32 1.0, %v1423
  %v1429 = vmul.f32 %v1428, %v1427
  %v1430 = vmul.f32 %v1423, %v1212
  %v1431 = vadd.f32 %v1429, %v1430
  %s1432 = scalar_lea.vmem [#allocation3], 32
  %1433 = vst [vmem:[%s1432] sm:$0xff] %v1431
  %s1434 = smul.u32 5, 3
  %s1435 = smul.addr %s1434, 8
  %s1436 = scalar_lea.vmem [#allocation2], %s1435
  %v1437 = vld [vmem:[%s1436] sm:$0xff]
  %v1438 = vld [vmem:[%s1436 + $0x8] sm:$0xff]
  %v1439 = vld [vmem:[%s1436 + $0x10] sm:$0xff]
  %v1440 = vld [vmem:[%s3] sm:$0xff]
  %v1441 = vld [vmem:[%s3 + $0x8] sm:$0xff]
  %v1442 = vld [vmem:[%s3 + $0x10] sm:$0xff]
  %v1443 = vld [vmem:[%s3 + $0x18] sm:$0xff]
  %v1444 = vld [vmem:[%s3 + $0x20] sm:$0xff]
  %v1445 = vld [vmem:[%s3 + $0x28] sm:$0xff]
  %v1446 = vld [vmem:[%s3 + $0x30] sm:$0xff]
  %v1447 = vld [vmem:[%s3 + $0x38] sm:$0xff]
  %v1448 = vld [vmem:[%s3 + $0x40] sm:$0xff]
  %v1449 = vld [vmem:[%s3 + $0x48] sm:$0xff]
  %v1450 = vld [vmem:[%s3 + $0x50] sm:$0xff]
  %v1451 = vld [vmem:[%s3 + $0x58] sm:$0xff]
  %v1452 = vld [vmem:[%s3 + $0x60] sm:$0xff]
  %v1453 = vld [vmem:[%s3 + $0x68] sm:$0xff]
  %v1454 = vld [vmem:[%s3 + $0x70] sm:$0xff]
  %v1455 = vld [vmem:[%s3 + $0x78] sm:$0xff]
  %v1456 = vld [vmem:[%s3 + $0x80] sm:$0xff]
  %v1457 = vld [vmem:[%s3 + $0x88] sm:$0xff]
  %v1458 = vld [vmem:[%s3 + $0x90] sm:$0xff]
  %v1459 = vld [vmem:[%s3 + $0x98] sm:$0xff]
  %v1460 = vld [vmem:[%s3 + $0xa0] sm:$0xff]
  %v1461 = vld [vmem:[%s3 + $0xa8] sm:$0xff]
  %v1462 = vld [vmem:[%s3 + $0xb0] sm:$0xff]
  %v1463 = vld [vmem:[%s3 + $0xb8] sm:$0xff]
  %v1464 = vld [vmem:[%s3 + $0xc0] sm:$0xff]
  %v1465 = vld [vmem:[%s3 + $0xc8] sm:$0xff]
  %v1466 = vld [vmem:[%s3 + $0xd0] sm:$0xff]
  %v1467 = vld [vmem:[%s3 + $0xd8] sm:$0xff]
  %v1468 = vld [vmem:[%s3 + $0xe0] sm:$0xff]
  %v1469 = vld [vmem:[%s3 + $0xe8] sm:$0xff]
  %v1470 = vld [vmem:[%s3 + $0xf0] sm:$0xff]
  %v1471 = vld [vmem:[%s3 + $0xf8] sm:$0xff]
  %v1472 = vld [vmem:[%s3 + $0x100] sm:$0xff]
  %v1473 = vld [vmem:[%s3 + $0x108] sm:$0xff]
  %v1474 = vld [vmem:[%s3 + $0x110] sm:$0xff]
  %v1475 = vld [vmem:[%s3 + $0x118] sm:$0xff]
  %v1476 = vld [vmem:[%s3 + $0x120] sm:$0xff]
  %v1477 = vld [vmem:[%s3 + $0x128] sm:$0xff]
  %v1478 = vld [vmem:[%s3 + $0x130] sm:$0xff]
  %v1479 = vld [vmem:[%s3 + $0x138] sm:$0xff]
  %v1480 = vld [vmem:[%s3 + $0x140] sm:$0xff]
  %v1481 = vld [vmem:[%s3 + $0x148] sm:$0xff]
  %v1482 = vld [vmem:[%s3 + $0x150] sm:$0xff]
  %v1483 = vld [vmem:[%s3 + $0x158] sm:$0xff]
  %v1484 = vld [vmem:[%s3 + $0x160] sm:$0xff]
  %v1485 = vld [vmem:[%s3 + $0x168] sm:$0xff]
  %v1486 = vld [vmem:[%s3 + $0x170] sm:$0xff]
  %v1487 = vld [vmem:[%s3 + $0x178] sm:$0xff]
  %1488 = vmatprep.subr.mxu0 %v1486
  %1489 = vmatpush1.msra.mxu0 %v1485
  %1490 = vmatprep.subr.mxu0 %v1483
  %1491 = vmatpush1.msra.mxu0 %v1482
  %1492 = vmatprep.subr.mxu0 %v1480
  %1493 = vmatpush1.msra.mxu0 %v1479
  %1494 = vmatprep.subr.mxu0 %v1477
  %1495 = vmatpush1.msra.mxu0 %v1476
  %1496 = vmatprep.subr.mxu0 %v1474
  %1497 = vmatpush1.msra.mxu0 %v1473
  %1498 = vmatprep.subr.mxu0 %v1471
  %1499 = vmatpush1.msra.mxu0 %v1470
  %1500 = vmatprep.subr.mxu0 %v1468
  %1501 = vmatpush1.msra.mxu0 %v1467
  %1502 = vmatprep.subr.mxu0 %v1465
  %1503 = vmatpush1.msra.mxu0 %v1464
  %1504 = vmatprep.subr.mxu0 %v1462
  %1505 = vmatpush1.msra.mxu0 %v1461
  %1506 = vmatprep.subr.mxu0 %v1459
  %1507 = vmatpush1.msra.mxu0 %v1458
  %1508 = vmatprep.subr.mxu0 %v1456
  %1509 = vmatpush1.msra.mxu0 %v1455
  %1510 = vmatprep.subr.mxu0 %v1453
  %1511 = vmatpush1.msra.mxu0 %v1452
  %1512 = vmatprep.subr.mxu0 %v1450
  %1513 = vmatpush1.msra.mxu0 %v1449
  %1514 = vmatprep.subr.mxu0 %v1447
  %1515 = vmatpush1.msra.mxu0 %v1446
  %1516 = vmatprep.subr.mxu0 %v1444
  %1517 = vmatpush1.msra.mxu0 %v1443
  %1518 = vmatprep.subr.mxu0 %v1441
  %1519 = vmatpush1.msra.mxu0 %v1440
  %1520 = vmatprep.subr.mxu0 0.0
  %1521 = vmatpush2.msra.mxu0 0.0
  %1522 = vmatprep.subr.mxu0 0.0
  %1523 = vmatpush2.msra.mxu0 0.0
  %1524 = vmatprep.subr.mxu0 0.0
  %1525 = vmatpush2.msra.mxu0 0.0
  %1526 = vmatprep.subr.mxu0 0.0
  %1527 = vmatpush2.msra.mxu0 0.0
  %1528 = vmatprep.subr.mxu0 0.0
  %1529 = vmatpush2.msra.mxu0 0.0
  %1530 = vmatprep.subr.mxu0 0.0
  %1531 = vmatpush2.msra.mxu0 0.0
  %1532 = vmatprep.subr.mxu0 0.0
  %1533 = vmatpush2.msra.mxu0 0.0
  %1534 = vmatprep.subr.mxu0 0.0
  %1535 = vmatpush2.msra.mxu0 0.0
  %1536 = vmatprep.subr.mxu0 0.0
  %1537 = vmatpush2.msra.mxu0 0.0
  %1538 = vmatprep.subr.mxu0 0.0
  %1539 = vmatpush2.msra.mxu0 0.0
  %1540 = vmatprep.subr.mxu0 0.0
  %1541 = vmatpush2.msra.mxu0 0.0
  %1542 = vmatprep.subr.mxu0 0.0
  %1543 = vmatpush2.msra.mxu0 0.0
  %1544 = vmatprep.subr.mxu0 0.0
  %1545 = vmatpush2.msra.mxu0 0.0
  %1546 = vmatprep.subr.mxu0 0.0
  %1547 = vmatpush2.msra.mxu0 0.0
  %1548 = vmatprep.subr.mxu0 0.0
  %1549 = vmatpush2.msra.mxu0 0.0
  %1550 = vmatprep.subr.mxu0 0.0
  %1551 = vmatpush2.msra.mxu0 0.0
  %1552 = vmatprep.mubr.f32.mxu0 0.0
  %1553 = vmatmul.mubr.f32.gmra.mxu0 %v1431
  %v1554 = vpop.f32.mrf.mxu0
  %v1555 = vadd.f32 0.0, %v1554
  %v1556 = vpop.f32.mrf.mxu0
  %v1557 = vadd.f32 0.0, %v1556
  %1558 = vdwg.mxu0
  %1559 = vmatprep.subr.mxu0 0.0
  %1560 = vmatpush1.msra.mxu0 %v1487
  %1561 = vmatprep.subr.mxu0 0.0
  %1562 = vmatpush1.msra.mxu0 %v1484
  %1563 = vmatprep.subr.mxu0 0.0
  %1564 = vmatpush1.msra.mxu0 %v1481
  %1565 = vmatprep.subr.mxu0 0.0
  %1566 = vmatpush1.msra.mxu0 %v1478
  %1567 = vmatprep.subr.mxu0 0.0
  %1568 = vmatpush1.msra.mxu0 %v1475
  %1569 = vmatprep.subr.mxu0 0.0
  %1570 = vmatpush1.msra.mxu0 %v1472
  %1571 = vmatprep.subr.mxu0 0.0
  %1572 = vmatpush1.msra.mxu0 %v1469
  %1573 = vmatprep.subr.mxu0 0.0
  %1574 = vmatpush1.msra.mxu0 %v1466
  %1575 = vmatprep.subr.mxu0 0.0
  %1576 = vmatpush1.msra.mxu0 %v1463
  %1577 = vmatprep.subr.mxu0 0.0
  %1578 = vmatpush1.msra.mxu0 %v1460
  %1579 = vmatprep.subr.mxu0 0.0
  %1580 = vmatpush1.msra.mxu0 %v1457
  %1581 = vmatprep.subr.mxu0 0.0
  %1582 = vmatpush1.msra.mxu0 %v1454
  %1583 = vmatprep.subr.mxu0 0.0
  %1584 = vmatpush1.msra.mxu0 %v1451
  %1585 = vmatprep.subr.mxu0 0.0
  %1586 = vmatpush1.msra.mxu0 %v1448
  %1587 = vmatprep.subr.mxu0 0.0
  %1588 = vmatpush1.msra.mxu0 %v1445
  %1589 = vmatprep.subr.mxu0 0.0
  %1590 = vmatpush1.msra.mxu0 %v1442
  %1591 = vmatprep.subr.mxu0 0.0
  %1592 = vmatpush2.msra.mxu0 0.0
  %1593 = vmatprep.subr.mxu0 0.0
  %1594 = vmatpush2.msra.mxu0 0.0
  %1595 = vmatprep.subr.mxu0 0.0
  %1596 = vmatpush2.msra.mxu0 0.0
  %1597 = vmatprep.subr.mxu0 0.0
  %1598 = vmatpush2.msra.mxu0 0.0
  %1599 = vmatprep.subr.mxu0 0.0
  %1600 = vmatpush2.msra.mxu0 0.0
  %1601 = vmatprep.subr.mxu0 0.0
  %1602 = vmatpush2.msra.mxu0 0.0
  %1603 = vmatprep.subr.mxu0 0.0
  %1604 = vmatpush2.msra.mxu0 0.0
  %1605 = vmatprep.subr.mxu0 0.0
  %1606 = vmatpush2.msra.mxu0 0.0
  %1607 = vmatprep.subr.mxu0 0.0
  %1608 = vmatpush2.msra.mxu0 0.0
  %1609 = vmatprep.subr.mxu0 0.0
  %1610 = vmatpush2.msra.mxu0 0.0
  %1611 = vmatprep.subr.mxu0 0.0
  %1612 = vmatpush2.msra.mxu0 0.0
  %1613 = vmatprep.subr.mxu0 0.0
  %1614 = vmatpush2.msra.mxu0 0.0
  %1615 = vmatprep.subr.mxu0 0.0
  %1616 = vmatpush2.msra.mxu0 0.0
  %1617 = vmatprep.subr.mxu0 0.0
  %1618 = vmatpush2.msra.mxu0 0.0
  %1619 = vmatprep.subr.mxu0 0.0
  %1620 = vmatpush2.msra.mxu0 0.0
  %1621 = vmatprep.subr.mxu0 0.0
  %1622 = vmatpush2.msra.mxu0 0.0
  %1623 = vmatprep.mubr.f32.mxu0 0.0
  %1624 = vmatmul.mubr.f32.gmra.mxu0 %v1431
  %v1625 = vpop.f32.mrf.mxu0
  %v1626 = vadd.f32 0.0, %v1625
  %v1627 = vpop.f32.mrf.mxu0
  %1628 = vdwg.mxu0
  %v1629 = vadd.f32 %v1437, %v1555
  %v1630 = vxor.u32 %v1629, 2147483648
  %v1631 = vmul.f32 %v1630, 1.442695
  %v1632 = vpow.pop %v1631
  %v1633 = vadd.f32 %v1632, 1.0
  %v1634 = vrcp.pop %v1633
  %v1635 = vmul.f32 1.0, %v1634
  %v1636 = vadd.f32 %v1438, %v1557
  %v1637 = vxor.u32 %v1636, 2147483648
  %v1638 = vmul.f32 %v1637, 1.442695
  %v1639 = vpow.pop %v1638
  %v1640 = vadd.f32 %v1639, 1.0
  %v1641 = vrcp.pop %v1640
  %v1642 = vmul.f32 1.0, %v1641
  %v1643 = vadd.f32 %v1626, %v338
  %v1644 = vmul.f32 %v1635, %v1643
  %v1645 = vadd.f32 %v1439, %v1644
  %v1646 = vtanh.pop %v1645
  %v1647 = vsub.f32 1.0, %v1642
  %v1648 = vmul.f32 %v1647, %v1646
  %v1649 = vmul.f32 %v1642, %v1431
  %v1650 = vadd.f32 %v1648, %v1649
  %s1651 = scalar_lea.vmem [#allocation3], 40
  %1652 = vst [vmem:[%s1651] sm:$0xff] %v1650
  %s1653 = smul.u32 6, 3
  %s1654 = smul.addr %s1653, 8
  %s1655 = scalar_lea.vmem [#allocation2], %s1654
  %v1656 = vld [vmem:[%s1655] sm:$0xff]
  %v1657 = vld [vmem:[%s1655 + $0x8] sm:$0xff]
  %v1658 = vld [vmem:[%s1655 + $0x10] sm:$0xff]
  %v1659 = vld [vmem:[%s3] sm:$0xff]
  %v1660 = vld [vmem:[%s3 + $0x8] sm:$0xff]
  %v1661 = vld [vmem:[%s3 + $0x10] sm:$0xff]
  %v1662 = vld [vmem:[%s3 + $0x18] sm:$0xff]
  %v1663 = vld [vmem:[%s3 + $0x20] sm:$0xff]
  %v1664 = vld [vmem:[%s3 + $0x28] sm:$0xff]
  %v1665 = vld [vmem:[%s3 + $0x30] sm:$0xff]
  %v1666 = vld [vmem:[%s3 + $0x38] sm:$0xff]
  %v1667 = vld [vmem:[%s3 + $0x40] sm:$0xff]
  %v1668 = vld [vmem:[%s3 + $0x48] sm:$0xff]
  %v1669 = vld [vmem:[%s3 + $0x50] sm:$0xff]
  %v1670 = vld [vmem:[%s3 + $0x58] sm:$0xff]
  %v1671 = vld [vmem:[%s3 + $0x60] sm:$0xff]
  %v1672 = vld [vmem:[%s3 + $0x68] sm:$0xff]
  %v1673 = vld [vmem:[%s3 + $0x70] sm:$0xff]
  %v1674 = vld [vmem:[%s3 + $0x78] sm:$0xff]
  %v1675 = vld [vmem:[%s3 + $0x80] sm:$0xff]
  %v1676 = vld [vmem:[%s3 + $0x88] sm:$0xff]
  %v1677 = vld [vmem:[%s3 + $0x90] sm:$0xff]
  %v1678 = vld [vmem:[%s3 + $0x98] sm:$0xff]
  %v1679 = vld [vmem:[%s3 + $0xa0] sm:$0xff]
  %v1680 = vld [vmem:[%s3 + $0xa8] sm:$0xff]
  %v1681 = vld [vmem:[%s3 + $0xb0] sm:$0xff]
  %v1682 = vld [vmem:[%s3 + $0xb8] sm:$0xff]
  %v1683 = vld [vmem:[%s3 + $0xc0] sm:$0xff]
  %v1684 = vld [vmem:[%s3 + $0xc8] sm:$0xff]
  %v1685 = vld [vmem:[%s3 + $0xd0] sm:$0xff]
  %v1686 = vld [vmem:[%s3 + $0xd8] sm:$0xff]
  %v1687 = vld [vmem:[%s3 + $0xe0] sm:$0xff]
  %v1688 = vld [vmem:[%s3 + $0xe8] sm:$0xff]
  %v1689 = vld [vmem:[%s3 + $0xf0] sm:$0xff]
  %v1690 = vld [vmem:[%s3 + $0xf8] sm:$0xff]
  %v1691 = vld [vmem:[%s3 + $0x100] sm:$0xff]
  %v1692 = vld [vmem:[%s3 + $0x108] sm:$0xff]
  %v1693 = vld [vmem:[%s3 + $0x110] sm:$0xff]
  %v1694 = vld [vmem:[%s3 + $0x118] sm:$0xff]
  %v1695 = vld [vmem:[%s3 + $0x120] sm:$0xff]
  %v1696 = vld [vmem:[%s3 + $0x128] sm:$0xff]
  %v1697 = vld [vmem:[%s3 + $0x130] sm:$0xff]
  %v1698 = vld [vmem:[%s3 + $0x138] sm:$0xff]
  %v1699 = vld [vmem:[%s3 + $0x140] sm:$0xff]
  %v1700 = vld [vmem:[%s3 + $0x148] sm:$0xff]
  %v1701 = vld [vmem:[%s3 + $0x150] sm:$0xff]
  %v1702 = vld [vmem:[%s3 + $0x158] sm:$0xff]
  %v1703 = vld [vmem:[%s3 + $0x160] sm:$0xff]
  %v1704 = vld [vmem:[%s3 + $0x168] sm:$0xff]
  %v1705 = vld [vmem:[%s3 + $0x170] sm:$0xff]
  %v1706 = vld [vmem:[%s3 + $0x178] sm:$0xff]
  %1707 = vmatprep.subr.mxu0 %v1705
  %1708 = vmatpush1.msra.mxu0 %v1704
  %1709 = vmatprep.subr.mxu0 %v1702
  %1710 = vmatpush1.msra.mxu0 %v1701
  %1711 = vmatprep.subr.mxu0 %v1699
  %1712 = vmatpush1.msra.mxu0 %v1698
  %1713 = vmatprep.subr.mxu0 %v1696
  %1714 = vmatpush1.msra.mxu0 %v1695
  %1715 = vmatprep.subr.mxu0 %v1693
  %1716 = vmatpush1.msra.mxu0 %v1692
  %1717 = vmatprep.subr.mxu0 %v1690
  %1718 = vmatpush1.msra.mxu0 %v1689
  %1719 = vmatprep.subr.mxu0 %v1687
  %1720 = vmatpush1.msra.mxu0 %v1686
  %1721 = vmatprep.subr.mxu0 %v1684
  %1722 = vmatpush1.msra.mxu0 %v1683
  %1723 = vmatprep.subr.mxu0 %v1681
  %1724 = vmatpush1.msra.mxu0 %v1680
  %1725 = vmatprep.subr.mxu0 %v1678
  %1726 = vmatpush1.msra.mxu0 %v1677
  %1727 = vmatprep.subr.mxu0 %v1675
  %1728 = vmatpush1.msra.mxu0 %v1674
  %1729 = vmatprep.subr.mxu0 %v1672
  %1730 = vmatpush1.msra.mxu0 %v1671
  %1731 = vmatprep.subr.mxu0 %v1669
  %1732 = vmatpush1.msra.mxu0 %v1668
  %1733 = vmatprep.subr.mxu0 %v1666
  %1734 = vmatpush1.msra.mxu0 %v1665
  %1735 = vmatprep.subr.mxu0 %v1663
  %1736 = vmatpush1.msra.mxu0 %v1662
  %1737 = vmatprep.subr.mxu0 %v1660
  %1738 = vmatpush1.msra.mxu0 %v1659
  %1739 = vmatprep.subr.mxu0 0.0
  %1740 = vmatpush2.msra.mxu0 0.0
  %1741 = vmatprep.subr.mxu0 0.0
  %1742 = vmatpush2.msra.mxu0 0.0
  %1743 = vmatprep.subr.mxu0 0.0
  %1744 = vmatpush2.msra.mxu0 0.0
  %1745 = vmatprep.subr.mxu0 0.0
  %1746 = vmatpush2.msra.mxu0 0.0
  %1747 = vmatprep.subr.mxu0 0.0
  %1748 = vmatpush2.msra.mxu0 0.0
  %1749 = vmatprep.subr.mxu0 0.0
  %1750 = vmatpush2.msra.mxu0 0.0
  %1751 = vmatprep.subr.mxu0 0.0
  %1752 = vmatpush2.msra.mxu0 0.0
  %1753 = vmatprep.subr.mxu0 0.0
  %1754 = vmatpush2.msra.mxu0 0.0
  %1755 = vmatprep.subr.mxu0 0.0
  %1756 = vmatpush2.msra.mxu0 0.0
  %1757 = vmatprep.subr.mxu0 0.0
  %1758 = vmatpush2.msra.mxu0 0.0
  %1759 = vmatprep.subr.mxu0 0.0
  %1760 = vmatpush2.msra.mxu0 0.0
  %1761 = vmatprep.subr.mxu0 0.0
  %1762 = vmatpush2.msra.mxu0 0.0
  %1763 = vmatprep.subr.mxu0 0.0
  %1764 = vmatpush2.msra.mxu0 0.0
  %1765 = vmatprep.subr.mxu0 0.0
  %1766 = vmatpush2.msra.mxu0 0.0
  %1767 = vmatprep.subr.mxu0 0.0
  %1768 = vmatpush2.msra.mxu0 0.0
  %1769 = vmatprep.subr.mxu0 0.0
  %1770 = vmatpush2.msra.mxu0 0.0
  %1771 = vmatprep.mubr.f32.mxu0 0.0
  %1772 = vmatmul.mubr.f32.gmra.mxu0 %v1650
  %v1773 = vpop.f32.mrf.mxu0
  %v1774 = vadd.f32 0.0, %v1773
  %v1775 = vpop.f32.mrf.mxu0
  %v1776 = vadd.f32 0.0, %v1775
  %1777 = vdwg.mxu0
  %1778 = vmatprep.subr.mxu0 0.0
  %1779 = vmatpush1.msra.mxu0 %v1706
  %1780 = vmatprep.subr.mxu0 0.0
  %1781 = vmatpush1.msra.mxu0 %v1703
  %1782 = vmatprep.subr.mxu0 0.0
  %1783 = vmatpush1.msra.mxu0 %v1700
  %1784 = vmatprep.subr.mxu0 0.0
  %1785 = vmatpush1.msra.mxu0 %v1697
  %1786 = vmatprep.subr.mxu0 0.0
  %1787 = vmatpush1.msra.mxu0 %v1694
  %1788 = vmatprep.subr.mxu0 0.0
  %1789 = vmatpush1.msra.mxu0 %v1691
  %1790 = vmatprep.subr.mxu0 0.0
  %1791 = vmatpush1.msra.mxu0 %v1688
  %1792 = vmatprep.subr.mxu0 0.0
  %1793 = vmatpush1.msra.mxu0 %v1685
  %1794 = vmatprep.subr.mxu0 0.0
  %1795 = vmatpush1.msra.mxu0 %v1682
  %1796 = vmatprep.subr.mxu0 0.0
  %1797 = vmatpush1.msra.mxu0 %v1679
  %1798 = vmatprep.subr.mxu0 0.0
  %1799 = vmatpush1.msra.mxu0 %v1676
  %1800 = vmatprep.subr.mxu0 0.0
  %1801 = vmatpush1.msra.mxu0 %v1673
  %1802 = vmatprep.subr.mxu0 0.0
  %1803 = vmatpush1.msra.mxu0 %v1670
  %1804 = vmatprep.subr.mxu0 0.0
  %1805 = vmatpush1.msra.mxu0 %v1667
  %1806 = vmatprep.subr.mxu0 0.0
  %1807 = vmatpush1.msra.mxu0 %v1664
  %1808 = vmatprep.subr.mxu0 0.0
  %1809 = vmatpush1.msra.mxu0 %v1661
  %1810 = vmatprep.subr.mxu0 0.0
  %1811 = vmatpush2.msra.mxu0 0.0
  %1812 = vmatprep.subr.mxu0 0.0
  %1813 = vmatpush2.msra.mxu0 0.0
  %1814 = vmatprep.subr.mxu0 0.0
  %1815 = vmatpush2.msra.mxu0 0.0
  %1816 = vmatprep.subr.mxu0 0.0
  %1817 = vmatpush2.msra.mxu0 0.0
  %1818 = vmatprep.subr.mxu0 0.0
  %1819 = vmatpush2.msra.mxu0 0.0
  %1820 = vmatprep.subr.mxu0 0.0
  %1821 = vmatpush2.msra.mxu0 0.0
  %1822 = vmatprep.subr.mxu0 0.0
  %1823 = vmatpush2.msra.mxu0 0.0
  %1824 = vmatprep.subr.mxu0 0.0
  %1825 = vmatpush2.msra.mxu0 0.0
  %1826 = vmatprep.subr.mxu0 0.0
  %1827 = vmatpush2.msra.mxu0 0.0
  %1828 = vmatprep.subr.mxu0 0.0
  %1829 = vmatpush2.msra.mxu0 0.0
  %1830 = vmatprep.subr.mxu0 0.0
  %1831 = vmatpush2.msra.mxu0 0.0
  %1832 = vmatprep.subr.mxu0 0.0
  %1833 = vmatpush2.msra.mxu0 0.0
  %1834 = vmatprep.subr.mxu0 0.0
  %1835 = vmatpush2.msra.mxu0 0.0
  %1836 = vmatprep.subr.mxu0 0.0
  %1837 = vmatpush2.msra.mxu0 0.0
  %1838 = vmatprep.subr.mxu0 0.0
  %1839 = vmatpush2.msra.mxu0 0.0
  %1840 = vmatprep.subr.mxu0 0.0
  %1841 = vmatpush2.msra.mxu0 0.0
  %1842 = vmatprep.mubr.f32.mxu0 0.0
  %1843 = vmatmul.mubr.f32.gmra.mxu0 %v1650
  %v1844 = vpop.f32.mrf.mxu0
  %v1845 = vadd.f32 0.0, %v1844
  %v1846 = vpop.f32.mrf.mxu0
  %1847 = vdwg.mxu0
  %v1848 = vadd.f32 %v1656, %v1774
  %v1849 = vxor.u32 %v1848, 2147483648
  %v1850 = vmul.f32 %v1849, 1.442695
  %v1851 = vpow.pop %v1850
  %v1852 = vadd.f32 %v1851, 1.0
  %v1853 = vrcp.pop %v1852
  %v1854 = vmul.f32 1.0, %v1853
  %v1855 = vadd.f32 %v1657, %v1776
  %v1856 = vxor.u32 %v1855, 2147483648
  %v1857 = vmul.f32 %v1856, 1.442695
  %v1858 = vpow.pop %v1857
  %v1859 = vadd.f32 %v1858, 1.0
  %v1860 = vrcp.pop %v1859
  %v1861 = vmul.f32 1.0, %v1860
  %v1862 = vadd.f32 %v1845, %v338
  %v1863 = vmul.f32 %v1854, %v1862
  %v1864 = vadd.f32 %v1658, %v1863
  %v1865 = vtanh.pop %v1864
  %v1866 = vsub.f32 1.0, %v1861
  %v1867 = vmul.f32 %v1866, %v1865
  %v1868 = vmul.f32 %v1861, %v1650
  %v1869 = vadd.f32 %v1867, %v1868
  %s1870 = scalar_lea.vmem [#allocation3], 48
  %1871 = vst [vmem:[%s1870] sm:$0xff] %v1869
  %s1872 = smul.u32 7, 3
  %s1873 = smul.addr %s1872, 8
  %s1874 = scalar_lea.vmem [#allocation2], %s1873
  %v1875 = vld [vmem:[%s1874] sm:$0xff]
  %v1876 = vld [vmem:[%s1874 + $0x8] sm:$0xff]
  %v1877 = vld [vmem:[%s1874 + $0x10] sm:$0xff]
  %v1878 = vld [vmem:[%s3] sm:$0xff]
  %v1879 = vld [vmem:[%s3 + $0x8] sm:$0xff]
  %v1880 = vld [vmem:[%s3 + $0x10] sm:$0xff]
  %v1881 = vld [vmem:[%s3 + $0x18] sm:$0xff]
  %v1882 = vld [vmem:[%s3 + $0x20] sm:$0xff]
  %v1883 = vld [vmem:[%s3 + $0x28] sm:$0xff]
  %v1884 = vld [vmem:[%s3 + $0x30] sm:$0xff]
  %v1885 = vld [vmem:[%s3 + $0x38] sm:$0xff]
  %v1886 = vld [vmem:[%s3 + $0x40] sm:$0xff]
  %v1887 = vld [vmem:[%s3 + $0x48] sm:$0xff]
  %v1888 = vld [vmem:[%s3 + $0x50] sm:$0xff]
  %v1889 = vld [vmem:[%s3 + $0x58] sm:$0xff]
  %v1890 = vld [vmem:[%s3 + $0x60] sm:$0xff]
  %v1891 = vld [vmem:[%s3 + $0x68] sm:$0xff]
  %v1892 = vld [vmem:[%s3 + $0x70] sm:$0xff]
  %v1893 = vld [vmem:[%s3 + $0x78] sm:$0xff]
  %v1894 = vld [vmem:[%s3 + $0x80] sm:$0xff]
  %v1895 = vld [vmem:[%s3 + $0x88] sm:$0xff]
  %v1896 = vld [vmem:[%s3 + $0x90] sm:$0xff]
  %v1897 = vld [vmem:[%s3 + $0x98] sm:$0xff]
  %v1898 = vld [vmem:[%s3 + $0xa0] sm:$0xff]
  %v1899 = vld [vmem:[%s3 + $0xa8] sm:$0xff]
  %v1900 = vld [vmem:[%s3 + $0xb0] sm:$0xff]
  %v1901 = vld [vmem:[%s3 + $0xb8] sm:$0xff]
  %v1902 = vld [vmem:[%s3 + $0xc0] sm:$0xff]
  %v1903 = vld [vmem:[%s3 + $0xc8] sm:$0xff]
  %v1904 = vld [vmem:[%s3 + $0xd0] sm:$0xff]
  %v1905 = vld [vmem:[%s3 + $0xd8] sm:$0xff]
  %v1906 = vld [vmem:[%s3 + $0xe0] sm:$0xff]
  %v1907 = vld [vmem:[%s3 + $0xe8] sm:$0xff]
  %v1908 = vld [vmem:[%s3 + $0xf0] sm:$0xff]
  %v1909 = vld [vmem:[%s3 + $0xf8] sm:$0xff]
  %v1910 = vld [vmem:[%s3 + $0x100] sm:$0xff]
  %v1911 = vld [vmem:[%s3 + $0x108] sm:$0xff]
  %v1912 = vld [vmem:[%s3 + $0x110] sm:$0xff]
  %v1913 = vld [vmem:[%s3 + $0x118] sm:$0xff]
  %v1914 = vld [vmem:[%s3 + $0x120] sm:$0xff]
  %v1915 = vld [vmem:[%s3 + $0x128] sm:$0xff]
  %v1916 = vld [vmem:[%s3 + $0x130] sm:$0xff]
  %v1917 = vld [vmem:[%s3 + $0x138] sm:$0xff]
  %v1918 = vld [vmem:[%s3 + $0x140] sm:$0xff]
  %v1919 = vld [vmem:[%s3 + $0x148] sm:$0xff]
  %v1920 = vld [vmem:[%s3 + $0x150] sm:$0xff]
  %v1921 = vld [vmem:[%s3 + $0x158] sm:$0xff]
  %v1922 = vld [vmem:[%s3 + $0x160] sm:$0xff]
  %v1923 = vld [vmem:[%s3 + $0x168] sm:$0xff]
  %v1924 = vld [vmem:[%s3 + $0x170] sm:$0xff]
  %v1925 = vld [vmem:[%s3 + $0x178] sm:$0xff]
  %1926 = vmatprep.subr.mxu0 %v1924
  %1927 = vmatpush1.msra.mxu0 %v1923
  %1928 = vmatprep.subr.mxu0 %v1921
  %1929 = vmatpush1.msra.mxu0 %v1920
  %1930 = vmatprep.subr.mxu0 %v1918
  %1931 = vmatpush1.msra.mxu0 %v1917
  %1932 = vmatprep.subr.mxu0 %v1915
  %1933 = vmatpush1.msra.mxu0 %v1914
  %1934 = vmatprep.subr.mxu0 %v1912
  %1935 = vmatpush1.msra.mxu0 %v1911
  %1936 = vmatprep.subr.mxu0 %v1909
  %1937 = vmatpush1.msra.mxu0 %v1908
  %1938 = vmatprep.subr.mxu0 %v1906
  %1939 = vmatpush1.msra.mxu0 %v1905
  %1940 = vmatprep.subr.mxu0 %v1903
  %1941 = vmatpush1.msra.mxu0 %v1902
  %1942 = vmatprep.subr.mxu0 %v1900
  %1943 = vmatpush1.msra.mxu0 %v1899
  %1944 = vmatprep.subr.mxu0 %v1897
  %1945 = vmatpush1.msra.mxu0 %v1896
  %1946 = vmatprep.subr.mxu0 %v1894
  %1947 = vmatpush1.msra.mxu0 %v1893
  %1948 = vmatprep.subr.mxu0 %v1891
  %1949 = vmatpush1.msra.mxu0 %v1890
  %1950 = vmatprep.subr.mxu0 %v1888
  %1951 = vmatpush1.msra.mxu0 %v1887
  %1952 = vmatprep.subr.mxu0 %v1885
  %1953 = vmatpush1.msra.mxu0 %v1884
  %1954 = vmatprep.subr.mxu0 %v1882
  %1955 = vmatpush1.msra.mxu0 %v1881
  %1956 = vmatprep.subr.mxu0 %v1879
  %1957 = vmatpush1.msra.mxu0 %v1878
  %1958 = vmatprep.subr.mxu0 0.0
  %1959 = vmatpush2.msra.mxu0 0.0
  %1960 = vmatprep.subr.mxu0 0.0
  %1961 = vmatpush2.msra.mxu0 0.0
  %1962 = vmatprep.subr.mxu0 0.0
  %1963 = vmatpush2.msra.mxu0 0.0
  %1964 = vmatprep.subr.mxu0 0.0
  %1965 = vmatpush2.msra.mxu0 0.0
  %1966 = vmatprep.subr.mxu0 0.0
  %1967 = vmatpush2.msra.mxu0 0.0
  %1968 = vmatprep.subr.mxu0 0.0
  %1969 = vmatpush2.msra.mxu0 0.0
  %1970 = vmatprep.subr.mxu0 0.0
  %1971 = vmatpush2.msra.mxu0 0.0
  %1972 = vmatprep.subr.mxu0 0.0
  %1973 = vmatpush2.msra.mxu0 0.0
  %1974 = vmatprep.subr.mxu0 0.0
  %1975 = vmatpush2.msra.mxu0 0.0
  %1976 = vmatprep.subr.mxu0 0.0
  %1977 = vmatpush2.msra.mxu0 0.0
  %1978 = vmatprep.subr.mxu0 0.0
  %1979 = vmatpush2.msra.mxu0 0.0
  %1980 = vmatprep.subr.mxu0 0.0
  %1981 = vmatpush2.msra.mxu0 0.0
  %1982 = vmatprep.subr.mxu0 0.0
  %1983 = vmatpush2.msra.mxu0 0.0
  %1984 = vmatprep.subr.mxu0 0.0
  %1985 = vmatpush2.msra.mxu0 0.0
  %1986 = vmatprep.subr.mxu0 0.0
  %1987 = vmatpush2.msra.mxu0 0.0
  %1988 = vmatprep.subr.mxu0 0.0
  %1989 = vmatpush2.msra.mxu0 0.0
  %1990 = vmatprep.mubr.f32.mxu0 0.0
  %1991 = vmatmul.mubr.f32.gmra.mxu0 %v1869
  %v1992 = vpop.f32.mrf.mxu0
  %v1993 = vadd.f32 0.0, %v1992
  %v1994 = vpop.f32.mrf.mxu0
  %v1995 = vadd.f32 0.0, %v1994
  %1996 = vdwg.mxu0
  %1997 = vmatprep.subr.mxu0 0.0
  %1998 = vmatpush1.msra.mxu0 %v1925
  %1999 = vmatprep.subr.mxu0 0.0
  %2000 = vmatpush1.msra.mxu0 %v1922
  %2001 = vmatprep.subr.mxu0 0.0
  %2002 = vmatpush1.msra.mxu0 %v1919
  %2003 = vmatprep.subr.mxu0 0.0
  %2004 = vmatpush1.msra.mxu0 %v1916
  %2005 = vmatprep.subr.mxu0 0.0
  %2006 = vmatpush1.msra.mxu0 %v1913
  %2007 = vmatprep.subr.mxu0 0.0
  %2008 = vmatpush1.msra.mxu0 %v1910
  %2009 = vmatprep.subr.mxu0 0.0
  %2010 = vmatpush1.msra.mxu0 %v1907
  %2011 = vmatprep.subr.mxu0 0.0
  %2012 = vmatpush1.msra.mxu0 %v1904
  %2013 = vmatprep.subr.mxu0 0.0
  %2014 = vmatpush1.msra.mxu0 %v1901
  %2015 = vmatprep.subr.mxu0 0.0
  %2016 = vmatpush1.msra.mxu0 %v1898
  %2017 = vmatprep.subr.mxu0 0.0
  %2018 = vmatpush1.msra.mxu0 %v1895
  %2019 = vmatprep.subr.mxu0 0.0
  %2020 = vmatpush1.msra.mxu0 %v1892
  %2021 = vmatprep.subr.mxu0 0.0
  %2022 = vmatpush1.msra.mxu0 %v1889
  %2023 = vmatprep.subr.mxu0 0.0
  %2024 = vmatpush1.msra.mxu0 %v1886
  %2025 = vmatprep.subr.mxu0 0.0
  %2026 = vmatpush1.msra.mxu0 %v1883
  %2027 = vmatprep.subr.mxu0 0.0
  %2028 = vmatpush1.msra.mxu0 %v1880
  %2029 = vmatprep.subr.mxu0 0.0
  %2030 = vmatpush2.msra.mxu0 0.0
  %2031 = vmatprep.subr.mxu0 0.0
  %2032 = vmatpush2.msra.mxu0 0.0
  %2033 = vmatprep.subr.mxu0 0.0
  %2034 = vmatpush2.msra.mxu0 0.0
  %2035 = vmatprep.subr.mxu0 0.0
  %2036 = vmatpush2.msra.mxu0 0.0
  %2037 = vmatprep.subr.mxu0 0.0
  %2038 = vmatpush2.msra.mxu0 0.0
  %2039 = vmatprep.subr.mxu0 0.0
  %2040 = vmatpush2.msra.mxu0 0.0
  %2041 = vmatprep.subr.mxu0 0.0
  %2042 = vmatpush2.msra.mxu0 0.0
  %2043 = vmatprep.subr.mxu0 0.0
  %2044 = vmatpush2.msra.mxu0 0.0
  %2045 = vmatprep.subr.mxu0 0.0
  %2046 = vmatpush2.msra.mxu0 0.0
  %2047 = vmatprep.subr.mxu0 0.0
  %2048 = vmatpush2.msra.mxu0 0.0
  %2049 = vmatprep.subr.mxu0 0.0
  %2050 = vmatpush2.msra.mxu0 0.0
  %2051 = vmatprep.subr.mxu0 0.0
  %2052 = vmatpush2.msra.mxu0 0.0
  %2053 = vmatprep.subr.mxu0 0.0
  %2054 = vmatpush2.msra.mxu0 0.0
  %2055 = vmatprep.subr.mxu0 0.0
  %2056 = vmatpush2.msra.mxu0 0.0
  %2057 = vmatprep.subr.mxu0 0.0
  %2058 = vmatpush2.msra.mxu0 0.0
  %2059 = vmatprep.subr.mxu0 0.0
  %2060 = vmatpush2.msra.mxu0 0.0
  %2061 = vmatprep.mubr.f32.mxu0 0.0
  %2062 = vmatmul.mubr.f32.gmra.mxu0 %v1869
  %v2063 = vpop.f32.mrf.mxu0
  %v2064 = vadd.f32 0.0, %v2063
  %v2065 = vpop.f32.mrf.mxu0
  %2066 = vdwg.mxu0
  %v2067 = vadd.f32 %v1875, %v1993
  %v2068 = vxor.u32 %v2067, 2147483648
  %v2069 = vmul.f32 %v2068, 1.442695
  %v2070 = vpow.pop %v2069
  %v2071 = vadd.f32 %v2070, 1.0
  %v2072 = vrcp.pop %v2071
  %v2073 = vmul.f32 1.0, %v2072
  %v2074 = vadd.f32 %v1876, %v1995
  %v2075 = vxor.u32 %v2074, 2147483648
  %v2076 = vmul.f32 %v2075, 1.442695
  %v2077 = vpow.pop %v2076
  %v2078 = vadd.f32 %v2077, 1.0
  %v2079 = vrcp.pop %v2078
  %v2080 = vmul.f32 1.0, %v2079
  %v2081 = vadd.f32 %v2064, %v338
  %v2082 = vmul.f32 %v2073, %v2081
  %v2083 = vadd.f32 %v1877, %v2082
  %v2084 = vtanh.pop %v2083
  %v2085 = vsub.f32 1.0, %v2080
  %v2086 = vmul.f32 %v2085, %v2084
  %v2087 = vmul.f32 %v2080, %v1869
  %v2088 = vadd.f32 %v2086, %v2087
  %s2089 = scalar_lea.vmem [#allocation3], 56
  %2090 = vst [vmem:[%s2089] sm:$0xff] %v2088
  %v2091 = vld [vmem:[#allocation3] sm:$0xff]
  %v2092 = vld [vmem:[#allocation3 + $0x8] sm:$0xff]
  %v2093 = vld [vmem:[#allocation3 + $0x10] sm:$0xff]
  %v2094 = vld [vmem:[#allocation3 + $0x18] sm:$0xff]
  %v2095 = vld [vmem:[#allocation3 + $0x20] sm:$0xff]
  %v2096 = vld [vmem:[#allocation3 + $0x28] sm:$0xff]
  %v2097 = vld [vmem:[#allocation3 + $0x30] sm:$0xff]
  %v2098 = vld [vmem:[#allocation3 + $0x38] sm:$0xff]
  %v2099 = vld [vmem:[%s5] sm:$0xff]
  %v2100 = vld [vmem:[%s5 + $0x8] sm:$0xff]
  %v2101 = vld [vmem:[%s5 + $0x10] sm:$0xff]
  %v2102 = vld [vmem:[%s5 + $0x18] sm:$0xff]
  %v2103 = vld [vmem:[%s5 + $0x20] sm:$0xff]
  %v2104 = vld [vmem:[%s5 + $0x28] sm:$0xff]
  %v2105 = vld [vmem:[%s5 + $0x30] sm:$0xff]
  %v2106 = vld [vmem:[%s5 + $0x38] sm:$0xff]
  %v2107 = vld [vmem:[%s5 + $0x40] sm:$0xff]
  %v2108 = vld [vmem:[%s5 + $0x48] sm:$0xff]
  %v2109 = vld [vmem:[%s5 + $0x50] sm:$0xff]
  %v2110 = vld [vmem:[%s5 + $0x58] sm:$0xff]
  %v2111 = vld [vmem:[%s5 + $0x60] sm:$0xff]
  %v2112 = vld [vmem:[%s5 + $0x68] sm:$0xff]
  %v2113 = vld [vmem:[%s5 + $0x70] sm:$0xff]
  %v2114 = vld [vmem:[%s5 + $0x78] sm:$0xff]
  %v2115 = vld [vmem:[%s5 + $0x80] sm:$0xff]
  %v2116 = vld [vmem:[%s5 + $0x88] sm:$0xff]
  %v2117 = vld [vmem:[%s5 + $0x90] sm:$0xff]
  %v2118 = vld [vmem:[%s5 + $0x98] sm:$0xff]
  %v2119 = vld [vmem:[%s5 + $0xa0] sm:$0xff]
  %v2120 = vld [vmem:[%s5 + $0xa8] sm:$0xff]
  %v2121 = vld [vmem:[%s5 + $0xb0] sm:$0xff]
  %v2122 = vld [vmem:[%s5 + $0xb8] sm:$0xff]
  %v2123 = vld [vmem:[%s5 + $0xc0] sm:$0xff]
  %v2124 = vld [vmem:[%s5 + $0xc8] sm:$0xff]
  %v2125 = vld [vmem:[%s5 + $0xd0] sm:$0xff]
  %v2126 = vld [vmem:[%s5 + $0xd8] sm:$0xff]
  %v2127 = vld [vmem:[%s5 + $0xe0] sm:$0xff]
  %v2128 = vld [vmem:[%s5 + $0xe8] sm:$0xff]
  %v2129 = vld [vmem:[%s5 + $0xf0] sm:$0xff]
  %v2130 = vld [vmem:[%s5 + $0xf8] sm:$0xff]
  %v2131 = vld [vmem:[%s5 + $0x100] sm:$0xff]
  %v2132 = vld [vmem:[%s5 + $0x108] sm:$0xff]
  %v2133 = vld [vmem:[%s5 + $0x110] sm:$0xff]
  %v2134 = vld [vmem:[%s5 + $0x118] sm:$0xff]
  %v2135 = vld [vmem:[%s5 + $0x120] sm:$0xff]
  %v2136 = vld [vmem:[%s5 + $0x128] sm:$0xff]
  %v2137 = vld [vmem:[%s5 + $0x130] sm:$0xff]
  %v2138 = vld [vmem:[%s5 + $0x138] sm:$0xff]
  %v2139 = vld [vmem:[%s5 + $0x140] sm:$0xff]
  %v2140 = vld [vmem:[%s5 + $0x148] sm:$0xff]
  %v2141 = vld [vmem:[%s5 + $0x150] sm:$0xff]
  %v2142 = vld [vmem:[%s5 + $0x158] sm:$0xff]
  %v2143 = vld [vmem:[%s5 + $0x160] sm:$0xff]
  %v2144 = vld [vmem:[%s5 + $0x168] sm:$0xff]
  %v2145 = vld [vmem:[%s5 + $0x170] sm:$0xff]
  %v2146 = vld [vmem:[%s5 + $0x178] sm:$0xff]
  %v2147 = vld [vmem:[%s6] sm:$0x7]
  %v2149 = vlaneseq
  %v2150 = vshrl.u32 %v2149, 7
  %v2151 = vsub.s32 0, %v2150
  %v2152 = vrot.slane %v2147, %v2151
  %v2153 = vlaneseq
  %v2154 = vshrl.u32 %v2153, 7
  %v2155 = vsub.s32 1, %v2154
  %v2156 = vrot.slane %v2147, %v2155
  %v2157 = vlaneseq
  %v2158 = vshrl.u32 %v2157, 7
  %v2159 = vsub.s32 2, %v2158
  %v2160 = vrot.slane %v2147, %v2159
  %2164 = vmatprep.subr.mxu0 %v2145
  %2165 = vmatpush1.msra.mxu0 %v2144
  %2166 = vmatprep.subr.mxu0 %v2142
  %2167 = vmatpush1.msra.mxu0 %v2141
  %2168 = vmatprep.subr.mxu0 %v2139
  %2169 = vmatpush1.msra.mxu0 %v2138
  %2170 = vmatprep.subr.mxu0 %v2136
  %2171 = vmatpush1.msra.mxu0 %v2135
  %2172 = vmatprep.subr.mxu0 %v2133
  %2173 = vmatpush1.msra.mxu0 %v2132
  %2174 = vmatprep.subr.mxu0 %v2130
  %2175 = vmatpush1.msra.mxu0 %v2129
  %2176 = vmatprep.subr.mxu0 %v2127
  %2177 = vmatpush1.msra.mxu0 %v2126
  %2178 = vmatprep.subr.mxu0 %v2124
  %2179 = vmatpush1.msra.mxu0 %v2123
  %2180 = vmatprep.subr.mxu0 %v2121
  %2181 = vmatpush1.msra.mxu0 %v2120
  %2182 = vmatprep.subr.mxu0 %v2118
  %2183 = vmatpush1.msra.mxu0 %v2117
  %2184 = vmatprep.subr.mxu0 %v2115
  %2185 = vmatpush1.msra.mxu0 %v2114
  %2186 = vmatprep.subr.mxu0 %v2112
  %2187 = vmatpush1.msra.mxu0 %v2111
  %2188 = vmatprep.subr.mxu0 %v2109
  %2189 = vmatpush1.msra.mxu0 %v2108
  %2190 = vmatprep.subr.mxu0 %v2106
  %2191 = vmatpush1.msra.mxu0 %v2105
  %2192 = vmatprep.subr.mxu0 %v2103
  %2193 = vmatpush1.msra.mxu0 %v2102
  %2194 = vmatprep.subr.mxu0 %v2100
  %2195 = vmatpush1.msra.mxu0 %v2099
  %2196 = vmatprep.subr.mxu0 0.0
  %2197 = vmatpush2.msra.mxu0 0.0
  %2198 = vmatprep.subr.mxu0 0.0
  %2199 = vmatpush2.msra.mxu0 0.0
  %2200 = vmatprep.subr.mxu0 0.0
  %2201 = vmatpush2.msra.mxu0 0.0
  %2202 = vmatprep.subr.mxu0 0.0
  %2203 = vmatpush2.msra.mxu0 0.0
  %2204 = vmatprep.subr.mxu0 0.0
  %2205 = vmatpush2.msra.mxu0 0.0
  %2206 = vmatprep.subr.mxu0 0.0
  %2207 = vmatpush2.msra.mxu0 0.0
  %2208 = vmatprep.subr.mxu0 0.0
  %2209 = vmatpush2.msra.mxu0 0.0
  %2210 = vmatprep.subr.mxu0 0.0
  %2211 = vmatpush2.msra.mxu0 0.0
  %2212 = vmatprep.subr.mxu0 0.0
  %2213 = vmatpush2.msra.mxu0 0.0
  %2214 = vmatprep.subr.mxu0 0.0
  %2215 = vmatpush2.msra.mxu0 0.0
  %2216 = vmatprep.subr.mxu0 0.0
  %2217 = vmatpush2.msra.mxu0 0.0
  %2218 = vmatprep.subr.mxu0 0.0
  %2219 = vmatpush2.msra.mxu0 0.0
  %2220 = vmatprep.subr.mxu0 0.0
  %2221 = vmatpush2.msra.mxu0 0.0
  %2222 = vmatprep.subr.mxu0 0.0
  %2223 = vmatpush2.msra.mxu0 0.0
  %2224 = vmatprep.subr.mxu0 0.0
  %2225 = vmatpush2.msra.mxu0 0.0
  %2226 = vmatprep.subr.mxu0 0.0
  %2227 = vmatpush2.msra.mxu0 0.0
  %2228 = vmatprep.mubr.f32.mxu0 0.0
  %2229 = vmatmul.mubr.f32.gmra.mxu0 %v2091
  %v2230 = vpop.f32.mrf.mxu0
  %v2231 = vadd.f32 %v2152, %v2230
  %v2232 = vpop.f32.mrf.mxu0
  %v2233 = vadd.f32 %v2156, %v2232
  %2234 = vmatprep.mubr.f32.mxu0 0.0
  %2235 = vmatmul.mubr.f32.gmra.mxu0 %v2092
  %v2236 = vpop.f32.mrf.mxu0
  %v2237 = vadd.f32 %v2152, %v2236
  %v2238 = vpop.f32.mrf.mxu0
  %v2239 = vadd.f32 %v2156, %v2238
  %2240 = vmatprep.mubr.f32.mxu0 0.0
  %2241 = vmatmul.mubr.f32.gmra.mxu0 %v2093
  %v2242 = vpop.f32.mrf.mxu0
  %v2243 = vadd.f32 %v2152, %v2242
  %v2244 = vpop.f32.mrf.mxu0
  %v2245 = vadd.f32 %v2156, %v2244
  %2246 = vmatprep.mubr.f32.mxu0 0.0
  %2247 = vmatmul.mubr.f32.gmra.mxu0 %v2094
  %v2248 = vpop.f32.mrf.mxu0
  %v2249 = vadd.f32 %v2152, %v2248
  %v2250 = vpop.f32.mrf.mxu0
  %v2251 = vadd.f32 %v2156, %v2250
  %2252 = vmatprep.mubr.f32.mxu0 0.0
  %2253 = vmatmul.mubr.f32.gmra.mxu0 %v2095
  %v2254 = vpop.f32.mrf.mxu0
  %v2255 = vadd.f32 %v2152, %v2254
  %v2256 = vpop.f32.mrf.mxu0
  %v2257 = vadd.f32 %v2156, %v2256
  %2258 = vmatprep.mubr.f32.mxu0 0.0
  %2259 = vmatmul.mubr.f32.gmra.mxu0 %v2096
  %v2260 = vpop.f32.mrf.mxu0
  %v2261 = vadd.f32 %v2152, %v2260
  %v2262 = vpop.f32.mrf.mxu0
  %v2263 = vadd.f32 %v2156, %v2262
  %2264 = vmatprep.mubr.f32.mxu0 0.0
  %2265 = vmatmul.mubr.f32.gmra.mxu0 %v2097
  %v2266 = vpop.f32.mrf.mxu0
  %v2267 = vadd.f32 %v2152, %v2266
  %v2268 = vpop.f32.mrf.mxu0
  %v2269 = vadd.f32 %v2156, %v2268
  %2270 = vmatprep.mubr.f32.mxu0 0.0
  %2271 = vmatmul.mubr.f32.gmra.mxu0 %v2098
  %v2272 = vpop.f32.mrf.mxu0
  %v2273 = vadd.f32 %v2152, %v2272
  %v2274 = vpop.f32.mrf.mxu0
  %v2275 = vadd.f32 %v2156, %v2274
  %2276 = vdwg.mxu0
  %2277 = vmatprep.subr.mxu0 0.0
  %2278 = vmatpush1.msra.mxu0 %v2146
  %2279 = vmatprep.subr.mxu0 0.0
  %2280 = vmatpush1.msra.mxu0 %v2143
  %2281 = vmatprep.subr.mxu0 0.0
  %2282 = vmatpush1.msra.mxu0 %v2140
  %2283 = vmatprep.subr.mxu0 0.0
  %2284 = vmatpush1.msra.mxu0 %v2137
  %2285 = vmatprep.subr.mxu0 0.0
  %2286 = vmatpush1.msra.mxu0 %v2134
  %2287 = vmatprep.subr.mxu0 0.0
  %2288 = vmatpush1.msra.mxu0 %v2131
  %2289 = vmatprep.subr.mxu0 0.0
  %2290 = vmatpush1.msra.mxu0 %v2128
  %2291 = vmatprep.subr.mxu0 0.0
  %2292 = vmatpush1.msra.mxu0 %v2125
  %2293 = vmatprep.subr.mxu0 0.0
  %2294 = vmatpush1.msra.mxu0 %v2122
  %2295 = vmatprep.subr.mxu0 0.0
  %2296 = vmatpush1.msra.mxu0 %v2119
  %2297 = vmatprep.subr.mxu0 0.0
  %2298 = vmatpush1.msra.mxu0 %v2116
  %2299 = vmatprep.subr.mxu0 0.0
  %2300 = vmatpush1.msra.mxu0 %v2113
  %2301 = vmatprep.subr.mxu0 0.0
  %2302 = vmatpush1.msra.mxu0 %v2110
  %2303 = vmatprep.subr.mxu0 0.0
  %2304 = vmatpush1.msra.mxu0 %v2107
  %2305 = vmatprep.subr.mxu0 0.0
  %2306 = vmatpush1.msra.mxu0 %v2104
  %2307 = vmatprep.subr.mxu0 0.0
  %2308 = vmatpush1.msra.mxu0 %v2101
  %2309 = vmatprep.subr.mxu0 0.0
  %2310 = vmatpush2.msra.mxu0 0.0
  %2311 = vmatprep.subr.mxu0 0.0
  %2312 = vmatpush2.msra.mxu0 0.0
  %2313 = vmatprep.subr.mxu0 0.0
  %2314 = vmatpush2.msra.mxu0 0.0
  %2315 = vmatprep.subr.mxu0 0.0
  %2316 = vmatpush2.msra.mxu0 0.0
  %2317 = vmatprep.subr.mxu0 0.0
  %2318 = vmatpush2.msra.mxu0 0.0
  %2319 = vmatprep.subr.mxu0 0.0
  %2320 = vmatpush2.msra.mxu0 0.0
  %2321 = vmatprep.subr.mxu0 0.0
  %2322 = vmatpush2.msra.mxu0 0.0
  %2323 = vmatprep.subr.mxu0 0.0
  %2324 = vmatpush2.msra.mxu0 0.0
  %2325 = vmatprep.subr.mxu0 0.0
  %2326 = vmatpush2.msra.mxu0 0.0
  %2327 = vmatprep.subr.mxu0 0.0
  %2328 = vmatpush2.msra.mxu0 0.0
  %2329 = vmatprep.subr.mxu0 0.0
  %2330 = vmatpush2.msra.mxu0 0.0
  %2331 = vmatprep.subr.mxu0 0.0
  %2332 = vmatpush2.msra.mxu0 0.0
  %2333 = vmatprep.subr.mxu0 0.0
  %2334 = vmatpush2.msra.mxu0 0.0
  %2335 = vmatprep.subr.mxu0 0.0
  %2336 = vmatpush2.msra.mxu0 0.0
  %2337 = vmatprep.subr.mxu0 0.0
  %2338 = vmatpush2.msra.mxu0 0.0
  %2339 = vmatprep.subr.mxu0 0.0
  %2340 = vmatpush2.msra.mxu0 0.0
  %2341 = vmatprep.mubr.f32.mxu0 0.0
  %2342 = vmatmul.mubr.f32.gmra.mxu0 %v2091
  %v2343 = vpop.f32.mrf.mxu0
  %v2344 = vadd.f32 %v2160, %v2343
  %v2345 = vpop.f32.mrf.mxu0
  %2346 = vmatprep.mubr.f32.mxu0 0.0
  %2347 = vmatmul.mubr.f32.gmra.mxu0 %v2092
  %v2348 = vpop.f32.mrf.mxu0
  %v2349 = vadd.f32 %v2160, %v2348
  %v2350 = vpop.f32.mrf.mxu0
  %2351 = vmatprep.mubr.f32.mxu0 0.0
  %2352 = vmatmul.mubr.f32.gmra.mxu0 %v2093
  %v2353 = vpop.f32.mrf.mxu0
  %v2354 = vadd.f32 %v2160, %v2353
  %v2355 = vpop.f32.mrf.mxu0
  %2356 = vmatprep.mubr.f32.mxu0 0.0
  %2357 = vmatmul.mubr.f32.gmra.mxu0 %v2094
  %v2358 = vpop.f32.mrf.mxu0
  %v2359 = vadd.f32 %v2160, %v2358
  %v2360 = vpop.f32.mrf.mxu0
  %2361 = vmatprep.mubr.f32.mxu0 0.0
  %2362 = vmatmul.mubr.f32.gmra.mxu0 %v2095
  %v2363 = vpop.f32.mrf.mxu0
  %v2364 = vadd.f32 %v2160, %v2363
  %v2365 = vpop.f32.mrf.mxu0
  %2366 = vmatprep.mubr.f32.mxu0 0.0
  %2367 = vmatmul.mubr.f32.gmra.mxu0 %v2096
  %v2368 = vpop.f32.mrf.mxu0
  %v2369 = vadd.f32 %v2160, %v2368
  %v2370 = vpop.f32.mrf.mxu0
  %2371 = vmatprep.mubr.f32.mxu0 0.0
  %2372 = vmatmul.mubr.f32.gmra.mxu0 %v2097
  %v2373 = vpop.f32.mrf.mxu0
  %v2374 = vadd.f32 %v2160, %v2373
  %v2375 = vpop.f32.mrf.mxu0
  %2376 = vmatprep.mubr.f32.mxu0 0.0
  %2377 = vmatmul.mubr.f32.gmra.mxu0 %v2098
  %v2378 = vpop.f32.mrf.mxu0
  %v2379 = vadd.f32 %v2160, %v2378
  %v2380 = vpop.f32.mrf.mxu0
  %2381 = vdwg.mxu0
  %2382 = vst [vmem:[#allocation2] sm:$0xff] %v2231
  %2383 = vst [vmem:[#allocation2 + $0x8] sm:$0xff] %v2233
  %2384 = vst [vmem:[#allocation2 + $0x10] sm:$0xff] %v2344
  %2385 = vst [vmem:[#allocation2 + $0x18] sm:$0xff] %v2237
  %2386 = vst [vmem:[#allocation2 + $0x20] sm:$0xff] %v2239
  %2387 = vst [vmem:[#allocation2 + $0x28] sm:$0xff] %v2349
  %2388 = vst [vmem:[#allocation2 + $0x30] sm:$0xff] %v2243
  %2389 = vst [vmem:[#allocation2 + $0x38] sm:$0xff] %v2245
  %2390 = vst [vmem:[#allocation2 + $0x40] sm:$0xff] %v2354
  %2391 = vst [vmem:[#allocation2 + $0x48] sm:$0xff] %v2249
  %2392 = vst [vmem:[#allocation2 + $0x50] sm:$0xff] %v2251
  %2393 = vst [vmem:[#allocation2 + $0x58] sm:$0xff] %v2359
  %2394 = vst [vmem:[#allocation2 + $0x60] sm:$0xff] %v2255
  %2395 = vst [vmem:[#allocation2 + $0x68] sm:$0xff] %v2257
  %2396 = vst [vmem:[#allocation2 + $0x70] sm:$0xff] %v2364
  %2397 = vst [vmem:[#allocation2 + $0x78] sm:$0xff] %v2261
  %2398 = vst [vmem:[#allocation2 + $0x80] sm:$0xff] %v2263
  %2399 = vst [vmem:[#allocation2 + $0x88] sm:$0xff] %v2369
  %2400 = vst [vmem:[#allocation2 + $0x90] sm:$0xff] %v2267
  %2401 = vst [vmem:[#allocation2 + $0x98] sm:$0xff] %v2269
  %2402 = vst [vmem:[#allocation2 + $0xa0] sm:$0xff] %v2374
  %2403 = vst [vmem:[#allocation2 + $0xa8] sm:$0xff] %v2273
  %2404 = vst [vmem:[#allocation2 + $0xb0] sm:$0xff] %v2275
  %2405 = vst [vmem:[#allocation2 + $0xb8] sm:$0xff] %v2379
  %v2406 = vld [vmem:[%s8] sm:$0x1]
  %v2408 = vlaneseq
  %v2409 = vshrl.u32 %v2408, 7
  %v2410 = vsub.s32 0, %v2409
  %v2411 = vrot.slane %v2406, %v2410
  %v2413 = vld [vmem:[%s342] sm:$0xff]
  %v2414 = vld [vmem:[%s342 + $0x8] sm:$0xff]
  %v2415 = vld [vmem:[%s342 + $0x10] sm:$0xff]
  %v2416 = vld [vmem:[%s7] sm:$0xff]
  %v2417 = vld [vmem:[%s7 + $0x8] sm:$0xff]
  %v2418 = vld [vmem:[%s7 + $0x10] sm:$0xff]
  %v2419 = vld [vmem:[%s7 + $0x18] sm:$0xff]
  %v2420 = vld [vmem:[%s7 + $0x20] sm:$0xff]
  %v2421 = vld [vmem:[%s7 + $0x28] sm:$0xff]
  %v2422 = vld [vmem:[%s7 + $0x30] sm:$0xff]
  %v2423 = vld [vmem:[%s7 + $0x38] sm:$0xff]
  %v2424 = vld [vmem:[%s7 + $0x40] sm:$0xff]
  %v2425 = vld [vmem:[%s7 + $0x48] sm:$0xff]
  %v2426 = vld [vmem:[%s7 + $0x50] sm:$0xff]
  %v2427 = vld [vmem:[%s7 + $0x58] sm:$0xff]
  %v2428 = vld [vmem:[%s7 + $0x60] sm:$0xff]
  %v2429 = vld [vmem:[%s7 + $0x68] sm:$0xff]
  %v2430 = vld [vmem:[%s7 + $0x70] sm:$0xff]
  %v2431 = vld [vmem:[%s7 + $0x78] sm:$0xff]
  %v2432 = vld [vmem:[%s7 + $0x80] sm:$0xff]
  %v2433 = vld [vmem:[%s7 + $0x88] sm:$0xff]
  %v2434 = vld [vmem:[%s7 + $0x90] sm:$0xff]
  %v2435 = vld [vmem:[%s7 + $0x98] sm:$0xff]
  %v2436 = vld [vmem:[%s7 + $0xa0] sm:$0xff]
  %v2437 = vld [vmem:[%s7 + $0xa8] sm:$0xff]
  %v2438 = vld [vmem:[%s7 + $0xb0] sm:$0xff]
  %v2439 = vld [vmem:[%s7 + $0xb8] sm:$0xff]
  %v2440 = vld [vmem:[%s7 + $0xc0] sm:$0xff]
  %v2441 = vld [vmem:[%s7 + $0xc8] sm:$0xff]
  %v2442 = vld [vmem:[%s7 + $0xd0] sm:$0xff]
  %v2443 = vld [vmem:[%s7 + $0xd8] sm:$0xff]
  %v2444 = vld [vmem:[%s7 + $0xe0] sm:$0xff]
  %v2445 = vld [vmem:[%s7 + $0xe8] sm:$0xff]
  %v2446 = vld [vmem:[%s7 + $0xf0] sm:$0xff]
  %v2447 = vld [vmem:[%s7 + $0xf8] sm:$0xff]
  %v2448 = vld [vmem:[%s7 + $0x100] sm:$0xff]
  %v2449 = vld [vmem:[%s7 + $0x108] sm:$0xff]
  %v2450 = vld [vmem:[%s7 + $0x110] sm:$0xff]
  %v2451 = vld [vmem:[%s7 + $0x118] sm:$0xff]
  %v2452 = vld [vmem:[%s7 + $0x120] sm:$0xff]
  %v2453 = vld [vmem:[%s7 + $0x128] sm:$0xff]
  %v2454 = vld [vmem:[%s7 + $0x130] sm:$0xff]
  %v2455 = vld [vmem:[%s7 + $0x138] sm:$0xff]
  %v2456 = vld [vmem:[%s7 + $0x140] sm:$0xff]
  %v2457 = vld [vmem:[%s7 + $0x148] sm:$0xff]
  %v2458 = vld [vmem:[%s7 + $0x150] sm:$0xff]
  %v2459 = vld [vmem:[%s7 + $0x158] sm:$0xff]
  %v2460 = vld [vmem:[%s7 + $0x160] sm:$0xff]
  %v2461 = vld [vmem:[%s7 + $0x168] sm:$0xff]
  %v2462 = vld [vmem:[%s7 + $0x170] sm:$0xff]
  %v2463 = vld [vmem:[%s7 + $0x178] sm:$0xff]
  %2464 = vmatprep.subr.mxu0 %v2462
  %2465 = vmatpush1.msra.mxu0 %v2461
  %2466 = vmatprep.subr.mxu0 %v2459
  %2467 = vmatpush1.msra.mxu0 %v2458
  %2468 = vmatprep.subr.mxu0 %v2456
  %2469 = vmatpush1.msra.mxu0 %v2455
  %2470 = vmatprep.subr.mxu0 %v2453
  %2471 = vmatpush1.msra.mxu0 %v2452
  %2472 = vmatprep.subr.mxu0 %v2450
  %2473 = vmatpush1.msra.mxu0 %v2449
  %2474 = vmatprep.subr.mxu0 %v2447
  %2475 = vmatpush1.msra.mxu0 %v2446
  %2476 = vmatprep.subr.mxu0 %v2444
  %2477 = vmatpush1.msra.mxu0 %v2443
  %2478 = vmatprep.subr.mxu0 %v2441
  %2479 = vmatpush1.msra.mxu0 %v2440
  %2480 = vmatprep.subr.mxu0 %v2438
  %2481 = vmatpush1.msra.mxu0 %v2437
  %2482 = vmatprep.subr.mxu0 %v2435
  %2483 = vmatpush1.msra.mxu0 %v2434
  %2484 = vmatprep.subr.mxu0 %v2432
  %2485 = vmatpush1.msra.mxu0 %v2431
  %2486 = vmatprep.subr.mxu0 %v2429
  %2487 = vmatpush1.msra.mxu0 %v2428
  %2488 = vmatprep.subr.mxu0 %v2426
  %2489 = vmatpush1.msra.mxu0 %v2425
  %2490 = vmatprep.subr.mxu0 %v2423
  %2491 = vmatpush1.msra.mxu0 %v2422
  %2492 = vmatprep.subr.mxu0 %v2420
  %2493 = vmatpush1.msra.mxu0 %v2419
  %2494 = vmatprep.subr.mxu0 %v2417
  %2495 = vmatpush1.msra.mxu0 %v2416
  %2496 = vmatprep.subr.mxu0 0.0
  %2497 = vmatpush2.msra.mxu0 0.0
  %2498 = vmatprep.subr.mxu0 0.0
  %2499 = vmatpush2.msra.mxu0 0.0
  %2500 = vmatprep.subr.mxu0 0.0
  %2501 = vmatpush2.msra.mxu0 0.0
  %2502 = vmatprep.subr.mxu0 0.0
  %2503 = vmatpush2.msra.mxu0 0.0
  %2504 = vmatprep.subr.mxu0 0.0
  %2505 = vmatpush2.msra.mxu0 0.0
  %2506 = vmatprep.subr.mxu0 0.0
  %2507 = vmatpush2.msra.mxu0 0.0
  %2508 = vmatprep.subr.mxu0 0.0
  %2509 = vmatpush2.msra.mxu0 0.0
  %2510 = vmatprep.subr.mxu0 0.0
  %2511 = vmatpush2.msra.mxu0 0.0
  %2512 = vmatprep.subr.mxu0 0.0
  %2513 = vmatpush2.msra.mxu0 0.0
  %2514 = vmatprep.subr.mxu0 0.0
  %2515 = vmatpush2.msra.mxu0 0.0
  %2516 = vmatprep.subr.mxu0 0.0
  %2517 = vmatpush2.msra.mxu0 0.0
  %2518 = vmatprep.subr.mxu0 0.0
  %2519 = vmatpush2.msra.mxu0 0.0
  %2520 = vmatprep.subr.mxu0 0.0
  %2521 = vmatpush2.msra.mxu0 0.0
  %2522 = vmatprep.subr.mxu0 0.0
  %2523 = vmatpush2.msra.mxu0 0.0
  %2524 = vmatprep.subr.mxu0 0.0
  %2525 = vmatpush2.msra.mxu0 0.0
  %2526 = vmatprep.subr.mxu0 0.0
  %2527 = vmatpush2.msra.mxu0 0.0
  %2528 = vmatprep.mubr.f32.mxu0 0.0
  %2529 = vmatmul.mubr.f32.gmra.mxu0 0.0
  %v2530 = vpop.f32.mrf.mxu0
  %v2531 = vadd.f32 0.0, %v2530
  %v2532 = vpop.f32.mrf.mxu0
  %v2533 = vadd.f32 0.0, %v2532
  %2534 = vdwg.mxu0
  %2535 = vmatprep.subr.mxu0 0.0
  %2536 = vmatpush1.msra.mxu0 %v2463
  %2537 = vmatprep.subr.mxu0 0.0
  %2538 = vmatpush1.msra.mxu0 %v2460
  %2539 = vmatprep.subr.mxu0 0.0
  %2540 = vmatpush1.msra.mxu0 %v2457
  %2541 = vmatprep.subr.mxu0 0.0
  %2542 = vmatpush1.msra.mxu0 %v2454
  %2543 = vmatprep.subr.mxu0 0.0
  %2544 = vmatpush1.msra.mxu0 %v2451
  %2545 = vmatprep.subr.mxu0 0.0
  %2546 = vmatpush1.msra.mxu0 %v2448
  %2547 = vmatprep.subr.mxu0 0.0
  %2548 = vmatpush1.msra.mxu0 %v2445
  %2549 = vmatprep.subr.mxu0 0.0
  %2550 = vmatpush1.msra.mxu0 %v2442
  %2551 = vmatprep.subr.mxu0 0.0
  %2552 = vmatpush1.msra.mxu0 %v2439
  %2553 = vmatprep.subr.mxu0 0.0
  %2554 = vmatpush1.msra.mxu0 %v2436
  %2555 = vmatprep.subr.mxu0 0.0
  %2556 = vmatpush1.msra.mxu0 %v2433
  %2557 = vmatprep.subr.mxu0 0.0
  %2558 = vmatpush1.msra.mxu0 %v2430
  %2559 = vmatprep.subr.mxu0 0.0
  %2560 = vmatpush1.msra.mxu0 %v2427
  %2561 = vmatprep.subr.mxu0 0.0
  %2562 = vmatpush1.msra.mxu0 %v2424
  %2563 = vmatprep.subr.mxu0 0.0
  %2564 = vmatpush1.msra.mxu0 %v2421
  %2565 = vmatprep.subr.mxu0 0.0
  %2566 = vmatpush1.msra.mxu0 %v2418
  %2567 = vmatprep.subr.mxu0 0.0
  %2568 = vmatpush2.msra.mxu0 0.0
  %2569 = vmatprep.subr.mxu0 0.0
  %2570 = vmatpush2.msra.mxu0 0.0
  %2571 = vmatprep.subr.mxu0 0.0
  %2572 = vmatpush2.msra.mxu0 0.0
  %2573 = vmatprep.subr.mxu0 0.0
  %2574 = vmatpush2.msra.mxu0 0.0
  %2575 = vmatprep.subr.mxu0 0.0
  %2576 = vmatpush2.msra.mxu0 0.0
  %2577 = vmatprep.subr.mxu0 0.0
  %2578 = vmatpush2.msra.mxu0 0.0
  %2579 = vmatprep.subr.mxu0 0.0
  %2580 = vmatpush2.msra.mxu0 0.0
  %2581 = vmatprep.subr.mxu0 0.0
  %2582 = vmatpush2.msra.mxu0 0.0
  %2583 = vmatprep.subr.mxu0 0.0
  %2584 = vmatpush2.msra.mxu0 0.0
  %2585 = vmatprep.subr.mxu0 0.0
  %2586 = vmatpush2.msra.mxu0 0.0
  %2587 = vmatprep.subr.mxu0 0.0
  %2588 = vmatpush2.msra.mxu0 0.0
  %2589 = vmatprep.subr.mxu0 0.0
  %2590 = vmatpush2.msra.mxu0 0.0
  %2591 = vmatprep.subr.mxu0 0.0
  %2592 = vmatpush2.msra.mxu0 0.0
  %2593 = vmatprep.subr.mxu0 0.0
  %2594 = vmatpush2.msra.mxu0 0.0
  %2595 = vmatprep.subr.mxu0 0.0
  %2596 = vmatpush2.msra.mxu0 0.0
  %2597 = vmatprep.subr.mxu0 0.0
  %2598 = vmatpush2.msra.mxu0 0.0
  %2599 = vmatprep.mubr.f32.mxu0 0.0
  %2600 = vmatmul.mubr.f32.gmra.mxu0 0.0
  %v2601 = vpop.f32.mrf.mxu0
  %v2602 = vadd.f32 0.0, %v2601
  %v2603 = vpop.f32.mrf.mxu0
  %2604 = vdwg.mxu0
  %v2605 = vadd.f32 %v2413, %v2531
  %v2606 = vxor.u32 %v2605, 2147483648
  %v2607 = vmul.f32 %v2606, 1.442695
  %v2608 = vpow.pop %v2607
  %v2609 = vadd.f32 %v2608, 1.0
  %v2610 = vrcp.pop %v2609
  %v2611 = vmul.f32 1.0, %v2610
  %v2612 = vadd.f32 %v2414, %v2533
  %v2613 = vxor.u32 %v2612, 2147483648
  %v2614 = vmul.f32 %v2613, 1.442695
  %v2615 = vpow.pop %v2614
  %v2616 = vadd.f32 %v2615, 1.0
  %v2617 = vrcp.pop %v2616
  %v2618 = vmul.f32 1.0, %v2617
  %v2619 = vadd.f32 %v2602, %v2411
  %v2620 = vmul.f32 %v2611, %v2619
  %v2621 = vadd.f32 %v2415, %v2620
  %v2622 = vtanh.pop %v2621
  %v2623 = vsub.f32 1.0, %v2618
  %v2624 = vmul.f32 %v2623, %v2622
  %v2625 = vmul.f32 %v2618, 0.0
  %v2626 = vadd.f32 %v2624, %v2625
  %2627 = vst [vmem:[#allocation3] sm:$0xff] %v2626
  %v2628 = vld [vmem:[%s560] sm:$0xff]
  %v2629 = vld [vmem:[%s560 + $0x8] sm:$0xff]
  %v2630 = vld [vmem:[%s560 + $0x10] sm:$0xff]
  %v2631 = vld [vmem:[%s7] sm:$0xff]
  %v2632 = vld [vmem:[%s7 + $0x8] sm:$0xff]
  %v2633 = vld [vmem:[%s7 + $0x10] sm:$0xff]
  %v2634 = vld [vmem:[%s7 + $0x18] sm:$0xff]
  %v2635 = vld [vmem:[%s7 + $0x20] sm:$0xff]
  %v2636 = vld [vmem:[%s7 + $0x28] sm:$0xff]
  %v2637 = vld [vmem:[%s7 + $0x30] sm:$0xff]
  %v2638 = vld [vmem:[%s7 + $0x38] sm:$0xff]
  %v2639 = vld [vmem:[%s7 + $0x40] sm:$0xff]
  %v2640 = vld [vmem:[%s7 + $0x48] sm:$0xff]
  %v2641 = vld [vmem:[%s7 + $0x50] sm:$0xff]
  %v2642 = vld [vmem:[%s7 + $0x58] sm:$0xff]
  %v2643 = vld [vmem:[%s7 + $0x60] sm:$0xff]
  %v2644 = vld [vmem:[%s7 + $0x68] sm:$0xff]
  %v2645 = vld [vmem:[%s7 + $0x70] sm:$0xff]
  %v2646 = vld [vmem:[%s7 + $0x78] sm:$0xff]
  %v2647 = vld [vmem:[%s7 + $0x80] sm:$0xff]
  %v2648 = vld [vmem:[%s7 + $0x88] sm:$0xff]
  %v2649 = vld [vmem:[%s7 + $0x90] sm:$0xff]
  %v2650 = vld [vmem:[%s7 + $0x98] sm:$0xff]
  %v2651 = vld [vmem:[%s7 + $0xa0] sm:$0xff]
  %v2652 = vld [vmem:[%s7 + $0xa8] sm:$0xff]
  %v2653 = vld [vmem:[%s7 + $0xb0] sm:$0xff]
  %v2654 = vld [vmem:[%s7 + $0xb8] sm:$0xff]
  %v2655 = vld [vmem:[%s7 + $0xc0] sm:$0xff]
  %v2656 = vld [vmem:[%s7 + $0xc8] sm:$0xff]
  %v2657 = vld [vmem:[%s7 + $0xd0] sm:$0xff]
  %v2658 = vld [vmem:[%s7 + $0xd8] sm:$0xff]
  %v2659 = vld [vmem:[%s7 + $0xe0] sm:$0xff]
  %v2660 = vld [vmem:[%s7 + $0xe8] sm:$0xff]
  %v2661 = vld [vmem:[%s7 + $0xf0] sm:$0xff]
  %v2662 = vld [vmem:[%s7 + $0xf8] sm:$0xff]
  %v2663 = vld [vmem:[%s7 + $0x100] sm:$0xff]
  %v2664 = vld [vmem:[%s7 + $0x108] sm:$0xff]
  %v2665 = vld [vmem:[%s7 + $0x110] sm:$0xff]
  %v2666 = vld [vmem:[%s7 + $0x118] sm:$0xff]
  %v2667 = vld [vmem:[%s7 + $0x120] sm:$0xff]
  %v2668 = vld [vmem:[%s7 + $0x128] sm:$0xff]
  %v2669 = vld [vmem:[%s7 + $0x130] sm:$0xff]
  %v2670 = vld [vmem:[%s7 + $0x138] sm:$0xff]
  %v2671 = vld [vmem:[%s7 + $0x140] sm:$0xff]
  %v2672 = vld [vmem:[%s7 + $0x148] sm:$0xff]
  %v2673 = vld [vmem:[%s7 + $0x150] sm:$0xff]
  %v2674 = vld [vmem:[%s7 + $0x158] sm:$0xff]
  %v2675 = vld [vmem:[%s7 + $0x160] sm:$0xff]
  %v2676 = vld [vmem:[%s7 + $0x168] sm:$0xff]
  %v2677 = vld [vmem:[%s7 + $0x170] sm:$0xff]
  %v2678 = vld [vmem:[%s7 + $0x178] sm:$0xff]
  %2679 = vmatprep.subr.mxu0 %v2677
  %2680 = vmatpush1.msra.mxu0 %v2676
  %2681 = vmatprep.subr.mxu0 %v2674
  %2682 = vmatpush1.msra.mxu0 %v2673
  %2683 = vmatprep.subr.mxu0 %v2671
  %2684 = vmatpush1.msra.mxu0 %v2670
  %2685 = vmatprep.subr.mxu0 %v2668
  %2686 = vmatpush1.msra.mxu0 %v2667
  %2687 = vmatprep.subr.mxu0 %v2665
  %2688 = vmatpush1.msra.mxu0 %v2664
  %2689 = vmatprep.subr.mxu0 %v2662
  %2690 = vmatpush1.msra.mxu0 %v2661
  %2691 = vmatprep.subr.mxu0 %v2659
  %2692 = vmatpush1.msra.mxu0 %v2658
  %2693 = vmatprep.subr.mxu0 %v2656
  %2694 = vmatpush1.msra.mxu0 %v2655
  %2695 = vmatprep.subr.mxu0 %v2653
  %2696 = vmatpush1.msra.mxu0 %v2652
  %2697 = vmatprep.subr.mxu0 %v2650
  %2698 = vmatpush1.msra.mxu0 %v2649
  %2699 = vmatprep.subr.mxu0 %v2647
  %2700 = vmatpush1.msra.mxu0 %v2646
  %2701 = vmatprep.subr.mxu0 %v2644
  %2702 = vmatpush1.msra.mxu0 %v2643
  %2703 = vmatprep.subr.mxu0 %v2641
  %2704 = vmatpush1.msra.mxu0 %v2640
  %2705 = vmatprep.subr.mxu0 %v2638
  %2706 = vmatpush1.msra.mxu0 %v2637
  %2707 = vmatprep.subr.mxu0 %v2635
  %2708 = vmatpush1.msra.mxu0 %v2634
  %2709 = vmatprep.subr.mxu0 %v2632
  %2710 = vmatpush1.msra.mxu0 %v2631
  %2711 = vmatprep.subr.mxu0 0.0
  %2712 = vmatpush2.msra.mxu0 0.0
  %2713 = vmatprep.subr.mxu0 0.0
  %2714 = vmatpush2.msra.mxu0 0.0
  %2715 = vmatprep.subr.mxu0 0.0
  %2716 = vmatpush2.msra.mxu0 0.0
  %2717 = vmatprep.subr.mxu0 0.0
  %2718 = vmatpush2.msra.mxu0 0.0
  %2719 = vmatprep.subr.mxu0 0.0
  %2720 = vmatpush2.msra.mxu0 0.0
  %2721 = vmatprep.subr.mxu0 0.0
  %2722 = vmatpush2.msra.mxu0 0.0
  %2723 = vmatprep.subr.mxu0 0.0
  %2724 = vmatpush2.msra.mxu0 0.0
  %2725 = vmatprep.subr.mxu0 0.0
  %2726 = vmatpush2.msra.mxu0 0.0
  %2727 = vmatprep.subr.mxu0 0.0
  %2728 = vmatpush2.msra.mxu0 0.0
  %2729 = vmatprep.subr.mxu0 0.0
  %2730 = vmatpush2.msra.mxu0 0.0
  %2731 = vmatprep.subr.mxu0 0.0
  %2732 = vmatpush2.msra.mxu0 0.0
  %2733 = vmatprep.subr.mxu0 0.0
  %2734 = vmatpush2.msra.mxu0 0.0
  %2735 = vmatprep.subr.mxu0 0.0
  %2736 = vmatpush2.msra.mxu0 0.0
  %2737 = vmatprep.subr.mxu0 0.0
  %2738 = vmatpush2.msra.mxu0 0.0
  %2739 = vmatprep.subr.mxu0 0.0
  %2740 = vmatpush2.msra.mxu0 0.0
  %2741 = vmatprep.subr.mxu0 0.0
  %2742 = vmatpush2.msra.mxu0 0.0
  %2743 = vmatprep.mubr.f32.mxu0 0.0
  %2744 = vmatmul.mubr.f32.gmra.mxu0 %v2626
  %v2745 = vpop.f32.mrf.mxu0
  %v2746 = vadd.f32 0.0, %v2745
  %v2747 = vpop.f32.mrf.mxu0
  %v2748 = vadd.f32 0.0, %v2747
  %2749 = vdwg.mxu0
  %2750 = vmatprep.subr.mxu0 0.0
  %2751 = vmatpush1.msra.mxu0 %v2678
  %2752 = vmatprep.subr.mxu0 0.0
  %2753 = vmatpush1.msra.mxu0 %v2675
  %2754 = vmatprep.subr.mxu0 0.0
  %2755 = vmatpush1.msra.mxu0 %v2672
  %2756 = vmatprep.subr.mxu0 0.0
  %2757 = vmatpush1.msra.mxu0 %v2669
  %2758 = vmatprep.subr.mxu0 0.0
  %2759 = vmatpush1.msra.mxu0 %v2666
  %2760 = vmatprep.subr.mxu0 0.0
  %2761 = vmatpush1.msra.mxu0 %v2663
  %2762 = vmatprep.subr.mxu0 0.0
  %2763 = vmatpush1.msra.mxu0 %v2660
  %2764 = vmatprep.subr.mxu0 0.0
  %2765 = vmatpush1.msra.mxu0 %v2657
  %2766 = vmatprep.subr.mxu0 0.0
  %2767 = vmatpush1.msra.mxu0 %v2654
  %2768 = vmatprep.subr.mxu0 0.0
  %2769 = vmatpush1.msra.mxu0 %v2651
  %2770 = vmatprep.subr.mxu0 0.0
  %2771 = vmatpush1.msra.mxu0 %v2648
  %2772 = vmatprep.subr.mxu0 0.0
  %2773 = vmatpush1.msra.mxu0 %v2645
  %2774 = vmatprep.subr.mxu0 0.0
  %2775 = vmatpush1.msra.mxu0 %v2642
  %2776 = vmatprep.subr.mxu0 0.0
  %2777 = vmatpush1.msra.mxu0 %v2639
  %2778 = vmatprep.subr.mxu0 0.0
  %2779 = vmatpush1.msra.mxu0 %v2636
  %2780 = vmatprep.subr.mxu0 0.0
  %2781 = vmatpush1.msra.mxu0 %v2633
  %2782 = vmatprep.subr.mxu0 0.0
  %2783 = vmatpush2.msra.mxu0 0.0
  %2784 = vmatprep.subr.mxu0 0.0
  %2785 = vmatpush2.msra.mxu0 0.0
  %2786 = vmatprep.subr.mxu0 0.0
  %2787 = vmatpush2.msra.mxu0 0.0
  %2788 = vmatprep.subr.mxu0 0.0
  %2789 = vmatpush2.msra.mxu0 0.0
  %2790 = vmatprep.subr.mxu0 0.0
  %2791 = vmatpush2.msra.mxu0 0.0
  %2792 = vmatprep.subr.mxu0 0.0
  %2793 = vmatpush2.msra.mxu0 0.0
  %2794 = vmatprep.subr.mxu0 0.0
  %2795 = vmatpush2.msra.mxu0 0.0
  %2796 = vmatprep.subr.mxu0 0.0
  %2797 = vmatpush2.msra.mxu0 0.0
  %2798 = vmatprep.subr.mxu0 0.0
  %2799 = vmatpush2.msra.mxu0 0.0
  %2800 = vmatprep.subr.mxu0 0.0
  %2801 = vmatpush2.msra.mxu0 0.0
  %2802 = vmatprep.subr.mxu0 0.0
  %2803 = vmatpush2.msra.mxu0 0.0
  %2804 = vmatprep.subr.mxu0 0.0
  %2805 = vmatpush2.msra.mxu0 0.0
  %2806 = vmatprep.subr.mxu0 0.0
  %2807 = vmatpush2.msra.mxu0 0.0
  %2808 = vmatprep.subr.mxu0 0.0
  %2809 = vmatpush2.msra.mxu0 0.0
  %2810 = vmatprep.subr.mxu0 0.0
  %2811 = vmatpush2.msra.mxu0 0.0
  %2812 = vmatprep.subr.mxu0 0.0
  %2813 = vmatpush2.msra.mxu0 0.0
  %2814 = vmatprep.mubr.f32.mxu0 0.0
  %2815 = vmatmul.mubr.f32.gmra.mxu0 %v2626
  %v2816 = vpop.f32.mrf.mxu0
  %v2817 = vadd.f32 0.0, %v2816
  %v2818 = vpop.f32.mrf.mxu0
  %2819 = vdwg.mxu0
  %v2820 = vadd.f32 %v2628, %v2746
  %v2821 = vxor.u32 %v2820, 2147483648
  %v2822 = vmul.f32 %v2821, 1.442695
  %v2823 = vpow.pop %v2822
  %v2824 = vadd.f32 %v2823, 1.0
  %v2825 = vrcp.pop %v2824
  %v2826 = vmul.f32 1.0, %v2825
  %v2827 = vadd.f32 %v2629, %v2748
  %v2828 = vxor.u32 %v2827, 2147483648
  %v2829 = vmul.f32 %v2828, 1.442695
  %v2830 = vpow.pop %v2829
  %v2831 = vadd.f32 %v2830, 1.0
  %v2832 = vrcp.pop %v2831
  %v2833 = vmul.f32 1.0, %v2832
  %v2834 = vadd.f32 %v2817, %v2411
  %v2835 = vmul.f32 %v2826, %v2834
  %v2836 = vadd.f32 %v2630, %v2835
  %v2837 = vtanh.pop %v2836
  %v2838 = vsub.f32 1.0, %v2833
  %v2839 = vmul.f32 %v2838, %v2837
  %v2840 = vmul.f32 %v2833, %v2626
  %v2841 = vadd.f32 %v2839, %v2840
  %2842 = vst [vmem:[%s775] sm:$0xff] %v2841
  %v2843 = vld [vmem:[%s779] sm:$0xff]
  %v2844 = vld [vmem:[%s779 + $0x8] sm:$0xff]
  %v2845 = vld [vmem:[%s779 + $0x10] sm:$0xff]
  %v2846 = vld [vmem:[%s7] sm:$0xff]
  %v2847 = vld [vmem:[%s7 + $0x8] sm:$0xff]
  %v2848 = vld [vmem:[%s7 + $0x10] sm:$0xff]
  %v2849 = vld [vmem:[%s7 + $0x18] sm:$0xff]
  %v2850 = vld [vmem:[%s7 + $0x20] sm:$0xff]
  %v2851 = vld [vmem:[%s7 + $0x28] sm:$0xff]
  %v2852 = vld [vmem:[%s7 + $0x30] sm:$0xff]
  %v2853 = vld [vmem:[%s7 + $0x38] sm:$0xff]
  %v2854 = vld [vmem:[%s7 + $0x40] sm:$0xff]
  %v2855 = vld [vmem:[%s7 + $0x48] sm:$0xff]
  %v2856 = vld [vmem:[%s7 + $0x50] sm:$0xff]
  %v2857 = vld [vmem:[%s7 + $0x58] sm:$0xff]
  %v2858 = vld [vmem:[%s7 + $0x60] sm:$0xff]
  %v2859 = vld [vmem:[%s7 + $0x68] sm:$0xff]
  %v2860 = vld [vmem:[%s7 + $0x70] sm:$0xff]
  %v2861 = vld [vmem:[%s7 + $0x78] sm:$0xff]
  %v2862 = vld [vmem:[%s7 + $0x80] sm:$0xff]
  %v2863 = vld [vmem:[%s7 + $0x88] sm:$0xff]
  %v2864 = vld [vmem:[%s7 + $0x90] sm:$0xff]
  %v2865 = vld [vmem:[%s7 + $0x98] sm:$0xff]
  %v2866 = vld [vmem:[%s7 + $0xa0] sm:$0xff]
  %v2867 = vld [vmem:[%s7 + $0xa8] sm:$0xff]
  %v2868 = vld [vmem:[%s7 + $0xb0] sm:$0xff]
  %v2869 = vld [vmem:[%s7 + $0xb8] sm:$0xff]
  %v2870 = vld [vmem:[%s7 + $0xc0] sm:$0xff]
  %v2871 = vld [vmem:[%s7 + $0xc8] sm:$0xff]
  %v2872 = vld [vmem:[%s7 + $0xd0] sm:$0xff]
  %v2873 = vld [vmem:[%s7 + $0xd8] sm:$0xff]
  %v2874 = vld [vmem:[%s7 + $0xe0] sm:$0xff]
  %v2875 = vld [vmem:[%s7 + $0xe8] sm:$0xff]
  %v2876 = vld [vmem:[%s7 + $0xf0] sm:$0xff]
  %v2877 = vld [vmem:[%s7 + $0xf8] sm:$0xff]
  %v2878 = vld [vmem:[%s7 + $0x100] sm:$0xff]
  %v2879 = vld [vmem:[%s7 + $0x108] sm:$0xff]
  %v2880 = vld [vmem:[%s7 + $0x110] sm:$0xff]
  %v2881 = vld [vmem:[%s7 + $0x118] sm:$0xff]
  %v2882 = vld [vmem:[%s7 + $0x120] sm:$0xff]
  %v2883 = vld [vmem:[%s7 + $0x128] sm:$0xff]
  %v2884 = vld [vmem:[%s7 + $0x130] sm:$0xff]
  %v2885 = vld [vmem:[%s7 + $0x138] sm:$0xff]
  %v2886 = vld [vmem:[%s7 + $0x140] sm:$0xff]
  %v2887 = vld [vmem:[%s7 + $0x148] sm:$0xff]
  %v2888 = vld [vmem:[%s7 + $0x150] sm:$0xff]
  %v2889 = vld [vmem:[%s7 + $0x158] sm:$0xff]
  %v2890 = vld [vmem:[%s7 + $0x160] sm:$0xff]
  %v2891 = vld [vmem:[%s7 + $0x168] sm:$0xff]
  %v2892 = vld [vmem:[%s7 + $0x170] sm:$0xff]
  %v2893 = vld [vmem:[%s7 + $0x178] sm:$0xff]
  %2894 = vmatprep.subr.mxu0 %v2892
  %2895 = vmatpush1.msra.mxu0 %v2891
  %2896 = vmatprep.subr.mxu0 %v2889
  %2897 = vmatpush1.msra.mxu0 %v2888
  %2898 = vmatprep.subr.mxu0 %v2886
  %2899 = vmatpush1.msra.mxu0 %v2885
  %2900 = vmatprep.subr.mxu0 %v2883
  %2901 = vmatpush1.msra.mxu0 %v2882
  %2902 = vmatprep.subr.mxu0 %v2880
  %2903 = vmatpush1.msra.mxu0 %v2879
  %2904 = vmatprep.subr.mxu0 %v2877
  %2905 = vmatpush1.msra.mxu0 %v2876
  %2906 = vmatprep.subr.mxu0 %v2874
  %2907 = vmatpush1.msra.mxu0 %v2873
  %2908 = vmatprep.subr.mxu0 %v2871
  %2909 = vmatpush1.msra.mxu0 %v2870
  %2910 = vmatprep.subr.mxu0 %v2868
  %2911 = vmatpush1.msra.mxu0 %v2867
  %2912 = vmatprep.subr.mxu0 %v2865
  %2913 = vmatpush1.msra.mxu0 %v2864
  %2914 = vmatprep.subr.mxu0 %v2862
  %2915 = vmatpush1.msra.mxu0 %v2861
  %2916 = vmatprep.subr.mxu0 %v2859
  %2917 = vmatpush1.msra.mxu0 %v2858
  %2918 = vmatprep.subr.mxu0 %v2856
  %2919 = vmatpush1.msra.mxu0 %v2855
  %2920 = vmatprep.subr.mxu0 %v2853
  %2921 = vmatpush1.msra.mxu0 %v2852
  %2922 = vmatprep.subr.mxu0 %v2850
  %2923 = vmatpush1.msra.mxu0 %v2849
  %2924 = vmatprep.subr.mxu0 %v2847
  %2925 = vmatpush1.msra.mxu0 %v2846
  %2926 = vmatprep.subr.mxu0 0.0
  %2927 = vmatpush2.msra.mxu0 0.0
  %2928 = vmatprep.subr.mxu0 0.0
  %2929 = vmatpush2.msra.mxu0 0.0
  %2930 = vmatprep.subr.mxu0 0.0
  %2931 = vmatpush2.msra.mxu0 0.0
  %2932 = vmatprep.subr.mxu0 0.0
  %2933 = vmatpush2.msra.mxu0 0.0
  %2934 = vmatprep.subr.mxu0 0.0
  %2935 = vmatpush2.msra.mxu0 0.0
  %2936 = vmatprep.subr.mxu0 0.0
  %2937 = vmatpush2.msra.mxu0 0.0
  %2938 = vmatprep.subr.mxu0 0.0
  %2939 = vmatpush2.msra.mxu0 0.0
  %2940 = vmatprep.subr.mxu0 0.0
  %2941 = vmatpush2.msra.mxu0 0.0
  %2942 = vmatprep.subr.mxu0 0.0
  %2943 = vmatpush2.msra.mxu0 0.0
  %2944 = vmatprep.subr.mxu0 0.0
  %2945 = vmatpush2.msra.mxu0 0.0
  %2946 = vmatprep.subr.mxu0 0.0
  %2947 = vmatpush2.msra.mxu0 0.0
  %2948 = vmatprep.subr.mxu0 0.0
  %2949 = vmatpush2.msra.mxu0 0.0
  %2950 = vmatprep.subr.mxu0 0.0
  %2951 = vmatpush2.msra.mxu0 0.0
  %2952 = vmatprep.subr.mxu0 0.0
  %2953 = vmatpush2.msra.mxu0 0.0
  %2954 = vmatprep.subr.mxu0 0.0
  %2955 = vmatpush2.msra.mxu0 0.0
  %2956 = vmatprep.subr.mxu0 0.0
  %2957 = vmatpush2.msra.mxu0 0.0
  %2958 = vmatprep.mubr.f32.mxu0 0.0
  %2959 = vmatmul.mubr.f32.gmra.mxu0 %v2841
  %v2960 = vpop.f32.mrf.mxu0
  %v2961 = vadd.f32 0.0, %v2960
  %v2962 = vpop.f32.mrf.mxu0
  %v2963 = vadd.f32 0.0, %v2962
  %2964 = vdwg.mxu0
  %2965 = vmatprep.subr.mxu0 0.0
  %2966 = vmatpush1.msra.mxu0 %v2893
  %2967 = vmatprep.subr.mxu0 0.0
  %2968 = vmatpush1.msra.mxu0 %v2890
  %2969 = vmatprep.subr.mxu0 0.0
  %2970 = vmatpush1.msra.mxu0 %v2887
  %2971 = vmatprep.subr.mxu0 0.0
  %2972 = vmatpush1.msra.mxu0 %v2884
  %2973 = vmatprep.subr.mxu0 0.0
  %2974 = vmatpush1.msra.mxu0 %v2881
  %2975 = vmatprep.subr.mxu0 0.0
  %2976 = vmatpush1.msra.mxu0 %v2878
  %2977 = vmatprep.subr.mxu0 0.0
  %2978 = vmatpush1.msra.mxu0 %v2875
  %2979 = vmatprep.subr.mxu0 0.0
  %2980 = vmatpush1.msra.mxu0 %v2872
  %2981 = vmatprep.subr.mxu0 0.0
  %2982 = vmatpush1.msra.mxu0 %v2869
  %2983 = vmatprep.subr.mxu0 0.0
  %2984 = vmatpush1.msra.mxu0 %v2866
  %2985 = vmatprep.subr.mxu0 0.0
  %2986 = vmatpush1.msra.mxu0 %v2863
  %2987 = vmatprep.subr.mxu0 0.0
  %2988 = vmatpush1.msra.mxu0 %v2860
  %2989 = vmatprep.subr.mxu0 0.0
  %2990 = vmatpush1.msra.mxu0 %v2857
  %2991 = vmatprep.subr.mxu0 0.0
  %2992 = vmatpush1.msra.mxu0 %v2854
  %2993 = vmatprep.subr.mxu0 0.0
  %2994 = vmatpush1.msra.mxu0 %v2851
  %2995 = vmatprep.subr.mxu0 0.0
  %2996 = vmatpush1.msra.mxu0 %v2848
  %2997 = vmatprep.subr.mxu0 0.0
  %2998 = vmatpush2.msra.mxu0 0.0
  %2999 = vmatprep.subr.mxu0 0.0
  %3000 = vmatpush2.msra.mxu0 0.0
  %3001 = vmatprep.subr.mxu0 0.0
  %3002 = vmatpush2.msra.mxu0 0.0
  %3003 = vmatprep.subr.mxu0 0.0
  %3004 = vmatpush2.msra.mxu0 0.0
  %3005 = vmatprep.subr.mxu0 0.0
  %3006 = vmatpush2.msra.mxu0 0.0
  %3007 = vmatprep.subr.mxu0 0.0
  %3008 = vmatpush2.msra.mxu0 0.0
  %3009 = vmatprep.subr.mxu0 0.0
  %3010 = vmatpush2.msra.mxu0 0.0
  %3011 = vmatprep.subr.mxu0 0.0
  %3012 = vmatpush2.msra.mxu0 0.0
  %3013 = vmatprep.subr.mxu0 0.0
  %3014 = vmatpush2.msra.mxu0 0.0
  %3015 = vmatprep.subr.mxu0 0.0
  %3016 = vmatpush2.msra.mxu0 0.0
  %3017 = vmatprep.subr.mxu0 0.0
  %3018 = vmatpush2.msra.mxu0 0.0
  %3019 = vmatprep.subr.mxu0 0.0
  %3020 = vmatpush2.msra.mxu0 0.0
  %3021 = vmatprep.subr.mxu0 0.0
  %3022 = vmatpush2.msra.mxu0 0.0
  %3023 = vmatprep.subr.mxu0 0.0
  %3024 = vmatpush2.msra.mxu0 0.0
  %3025 = vmatprep.subr.mxu0 0.0
  %3026 = vmatpush2.msra.mxu0 0.0
  %3027 = vmatprep.subr.mxu0 0.0
  %3028 = vmatpush2.msra.mxu0 0.0
  %3029 = vmatprep.mubr.f32.mxu0 0.0
  %3030 = vmatmul.mubr.f32.gmra.mxu0 %v2841
  %v3031 = vpop.f32.mrf.mxu0
  %v3032 = vadd.f32 0.0, %v3031
  %v3033 = vpop.f32.mrf.mxu0
  %3034 = vdwg.mxu0
  %v3035 = vadd.f32 %v2843, %v2961
  %v3036 = vxor.u32 %v3035, 2147483648
  %v3037 = vmul.f32 %v3036, 1.442695
  %v3038 = vpow.pop %v3037
  %v3039 = vadd.f32 %v3038, 1.0
  %v3040 = vrcp.pop %v3039
  %v3041 = vmul.f32 1.0, %v3040
  %v3042 = vadd.f32 %v2844, %v2963
  %v3043 = vxor.u32 %v3042, 2147483648
  %v3044 = vmul.f32 %v3043, 1.442695
  %v3045 = vpow.pop %v3044
  %v3046 = vadd.f32 %v3045, 1.0
  %v3047 = vrcp.pop %v3046
  %v3048 = vmul.f32 1.0, %v3047
  %v3049 = vadd.f32 %v3032, %v2411
  %v3050 = vmul.f32 %v3041, %v3049
  %v3051 = vadd.f32 %v2845, %v3050
  %v3052 = vtanh.pop %v3051
  %v3053 = vsub.f32 1.0, %v3048
  %v3054 = vmul.f32 %v3053, %v3052
  %v3055 = vmul.f32 %v3048, %v2841
  %v3056 = vadd.f32 %v3054, %v3055
  %3057 = vst [vmem:[%s994] sm:$0xff] %v3056
  %v3058 = vld [vmem:[%s998] sm:$0xff]
  %v3059 = vld [vmem:[%s998 + $0x8] sm:$0xff]
  %v3060 = vld [vmem:[%s998 + $0x10] sm:$0xff]
  %v3061 = vld [vmem:[%s7] sm:$0xff]
  %v3062 = vld [vmem:[%s7 + $0x8] sm:$0xff]
  %v3063 = vld [vmem:[%s7 + $0x10] sm:$0xff]
  %v3064 = vld [vmem:[%s7 + $0x18] sm:$0xff]
  %v3065 = vld [vmem:[%s7 + $0x20] sm:$0xff]
  %v3066 = vld [vmem:[%s7 + $0x28] sm:$0xff]
  %v3067 = vld [vmem:[%s7 + $0x30] sm:$0xff]
  %v3068 = vld [vmem:[%s7 + $0x38] sm:$0xff]
  %v3069 = vld [vmem:[%s7 + $0x40] sm:$0xff]
  %v3070 = vld [vmem:[%s7 + $0x48] sm:$0xff]
  %v3071 = vld [vmem:[%s7 + $0x50] sm:$0xff]
  %v3072 = vld [vmem:[%s7 + $0x58] sm:$0xff]
  %v3073 = vld [vmem:[%s7 + $0x60] sm:$0xff]
  %v3074 = vld [vmem:[%s7 + $0x68] sm:$0xff]
  %v3075 = vld [vmem:[%s7 + $0x70] sm:$0xff]
  %v3076 = vld [vmem:[%s7 + $0x78] sm:$0xff]
  %v3077 = vld [vmem:[%s7 + $0x80] sm:$0xff]
  %v3078 = vld [vmem:[%s7 + $0x88] sm:$0xff]
  %v3079 = vld [vmem:[%s7 + $0x90] sm:$0xff]
  %v3080 = vld [vmem:[%s7 + $0x98] sm:$0xff]
  %v3081 = vld [vmem:[%s7 + $0xa0] sm:$0xff]
  %v3082 = vld [vmem:[%s7 + $0xa8] sm:$0xff]
  %v3083 = vld [vmem:[%s7 + $0xb0] sm:$0xff]
  %v3084 = vld [vmem:[%s7 + $0xb8] sm:$0xff]
  %v3085 = vld [vmem:[%s7 + $0xc0] sm:$0xff]
  %v3086 = vld [vmem:[%s7 + $0xc8] sm:$0xff]
  %v3087 = vld [vmem:[%s7 + $0xd0] sm:$0xff]
  %v3088 = vld [vmem:[%s7 + $0xd8] sm:$0xff]
  %v3089 = vld [vmem:[%s7 + $0xe0] sm:$0xff]
  %v3090 = vld [vmem:[%s7 + $0xe8] sm:$0xff]
  %v3091 = vld [vmem:[%s7 + $0xf0] sm:$0xff]
  %v3092 = vld [vmem:[%s7 + $0xf8] sm:$0xff]
  %v3093 = vld [vmem:[%s7 + $0x100] sm:$0xff]
  %v3094 = vld [vmem:[%s7 + $0x108] sm:$0xff]
  %v3095 = vld [vmem:[%s7 + $0x110] sm:$0xff]
  %v3096 = vld [vmem:[%s7 + $0x118] sm:$0xff]
  %v3097 = vld [vmem:[%s7 + $0x120] sm:$0xff]
  %v3098 = vld [vmem:[%s7 + $0x128] sm:$0xff]
  %v3099 = vld [vmem:[%s7 + $0x130] sm:$0xff]
  %v3100 = vld [vmem:[%s7 + $0x138] sm:$0xff]
  %v3101 = vld [vmem:[%s7 + $0x140] sm:$0xff]
  %v3102 = vld [vmem:[%s7 + $0x148] sm:$0xff]
  %v3103 = vld [vmem:[%s7 + $0x150] sm:$0xff]
  %v3104 = vld [vmem:[%s7 + $0x158] sm:$0xff]
  %v3105 = vld [vmem:[%s7 + $0x160] sm:$0xff]
  %v3106 = vld [vmem:[%s7 + $0x168] sm:$0xff]
  %v3107 = vld [vmem:[%s7 + $0x170] sm:$0xff]
  %v3108 = vld [vmem:[%s7 + $0x178] sm:$0xff]
  %3109 = vmatprep.subr.mxu0 %v3107
  %3110 = vmatpush1.msra.mxu0 %v3106
  %3111 = vmatprep.subr.mxu0 %v3104
  %3112 = vmatpush1.msra.mxu0 %v3103
  %3113 = vmatprep.subr.mxu0 %v3101
  %3114 = vmatpush1.msra.mxu0 %v3100
  %3115 = vmatprep.subr.mxu0 %v3098
  %3116 = vmatpush1.msra.mxu0 %v3097
  %3117 = vmatprep.subr.mxu0 %v3095
  %3118 = vmatpush1.msra.mxu0 %v3094
  %3119 = vmatprep.subr.mxu0 %v3092
  %3120 = vmatpush1.msra.mxu0 %v3091
  %3121 = vmatprep.subr.mxu0 %v3089
  %3122 = vmatpush1.msra.mxu0 %v3088
  %3123 = vmatprep.subr.mxu0 %v3086
  %3124 = vmatpush1.msra.mxu0 %v3085
  %3125 = vmatprep.subr.mxu0 %v3083
  %3126 = vmatpush1.msra.mxu0 %v3082
  %3127 = vmatprep.subr.mxu0 %v3080
  %3128 = vmatpush1.msra.mxu0 %v3079
  %3129 = vmatprep.subr.mxu0 %v3077
  %3130 = vmatpush1.msra.mxu0 %v3076
  %3131 = vmatprep.subr.mxu0 %v3074
  %3132 = vmatpush1.msra.mxu0 %v3073
  %3133 = vmatprep.subr.mxu0 %v3071
  %3134 = vmatpush1.msra.mxu0 %v3070
  %3135 = vmatprep.subr.mxu0 %v3068
  %3136 = vmatpush1.msra.mxu0 %v3067
  %3137 = vmatprep.subr.mxu0 %v3065
  %3138 = vmatpush1.msra.mxu0 %v3064
  %3139 = vmatprep.subr.mxu0 %v3062
  %3140 = vmatpush1.msra.mxu0 %v3061
  %3141 = vmatprep.subr.mxu0 0.0
  %3142 = vmatpush2.msra.mxu0 0.0
  %3143 = vmatprep.subr.mxu0 0.0
  %3144 = vmatpush2.msra.mxu0 0.0
  %3145 = vmatprep.subr.mxu0 0.0
  %3146 = vmatpush2.msra.mxu0 0.0
  %3147 = vmatprep.subr.mxu0 0.0
  %3148 = vmatpush2.msra.mxu0 0.0
  %3149 = vmatprep.subr.mxu0 0.0
  %3150 = vmatpush2.msra.mxu0 0.0
  %3151 = vmatprep.subr.mxu0 0.0
  %3152 = vmatpush2.msra.mxu0 0.0
  %3153 = vmatprep.subr.mxu0 0.0
  %3154 = vmatpush2.msra.mxu0 0.0
  %3155 = vmatprep.subr.mxu0 0.0
  %3156 = vmatpush2.msra.mxu0 0.0
  %3157 = vmatprep.subr.mxu0 0.0
  %3158 = vmatpush2.msra.mxu0 0.0
  %3159 = vmatprep.subr.mxu0 0.0
  %3160 = vmatpush2.msra.mxu0 0.0
  %3161 = vmatprep.subr.mxu0 0.0
  %3162 = vmatpush2.msra.mxu0 0.0
  %3163 = vmatprep.subr.mxu0 0.0
  %3164 = vmatpush2.msra.mxu0 0.0
  %3165 = vmatprep.subr.mxu0 0.0
  %3166 = vmatpush2.msra.mxu0 0.0
  %3167 = vmatprep.subr.mxu0 0.0
  %3168 = vmatpush2.msra.mxu0 0.0
  %3169 = vmatprep.subr.mxu0 0.0
  %3170 = vmatpush2.msra.mxu0 0.0
  %3171 = vmatprep.subr.mxu0 0.0
  %3172 = vmatpush2.msra.mxu0 0.0
  %3173 = vmatprep.mubr.f32.mxu0 0.0
  %3174 = vmatmul.mubr.f32.gmra.mxu0 %v3056
  %v3175 = vpop.f32.mrf.mxu0
  %v3176 = vadd.f32 0.0, %v3175
  %v3177 = vpop.f32.mrf.mxu0
  %v3178 = vadd.f32 0.0, %v3177
  %3179 = vdwg.mxu0
  %3180 = vmatprep.subr.mxu0 0.0
  %3181 = vmatpush1.msra.mxu0 %v3108
  %3182 = vmatprep.subr.mxu0 0.0
  %3183 = vmatpush1.msra.mxu0 %v3105
  %3184 = vmatprep.subr.mxu0 0.0
  %3185 = vmatpush1.msra.mxu0 %v3102
  %3186 = vmatprep.subr.mxu0 0.0
  %3187 = vmatpush1.msra.mxu0 %v3099
  %3188 = vmatprep.subr.mxu0 0.0
  %3189 = vmatpush1.msra.mxu0 %v3096
  %3190 = vmatprep.subr.mxu0 0.0
  %3191 = vmatpush1.msra.mxu0 %v3093
  %3192 = vmatprep.subr.mxu0 0.0
  %3193 = vmatpush1.msra.mxu0 %v3090
  %3194 = vmatprep.subr.mxu0 0.0
  %3195 = vmatpush1.msra.mxu0 %v3087
  %3196 = vmatprep.subr.mxu0 0.0
  %3197 = vmatpush1.msra.mxu0 %v3084
  %3198 = vmatprep.subr.mxu0 0.0
  %3199 = vmatpush1.msra.mxu0 %v3081
  %3200 = vmatprep.subr.mxu0 0.0
  %3201 = vmatpush1.msra.mxu0 %v3078
  %3202 = vmatprep.subr.mxu0 0.0
  %3203 = vmatpush1.msra.mxu0 %v3075
  %3204 = vmatprep.subr.mxu0 0.0
  %3205 = vmatpush1.msra.mxu0 %v3072
  %3206 = vmatprep.subr.mxu0 0.0
  %3207 = vmatpush1.msra.mxu0 %v3069
  %3208 = vmatprep.subr.mxu0 0.0
  %3209 = vmatpush1.msra.mxu0 %v3066
  %3210 = vmatprep.subr.mxu0 0.0
  %3211 = vmatpush1.msra.mxu0 %v3063
  %3212 = vmatprep.subr.mxu0 0.0
  %3213 = vmatpush2.msra.mxu0 0.0
  %3214 = vmatprep.subr.mxu0 0.0
  %3215 = vmatpush2.msra.mxu0 0.0
  %3216 = vmatprep.subr.mxu0 0.0
  %3217 = vmatpush2.msra.mxu0 0.0
  %3218 = vmatprep.subr.mxu0 0.0
  %3219 = vmatpush2.msra.mxu0 0.0
  %3220 = vmatprep.subr.mxu0 0.0
  %3221 = vmatpush2.msra.mxu0 0.0
  %3222 = vmatprep.subr.mxu0 0.0
  %3223 = vmatpush2.msra.mxu0 0.0
  %3224 = vmatprep.subr.mxu0 0.0
  %3225 = vmatpush2.msra.mxu0 0.0
  %3226 = vmatprep.subr.mxu0 0.0
  %3227 = vmatpush2.msra.mxu0 0.0
  %3228 = vmatprep.subr.mxu0 0.0
  %3229 = vmatpush2.msra.mxu0 0.0
  %3230 = vmatprep.subr.mxu0 0.0
  %3231 = vmatpush2.msra.mxu0 0.0
  %3232 = vmatprep.subr.mxu0 0.0
  %3233 = vmatpush2.msra.mxu0 0.0
  %3234 = vmatprep.subr.mxu0 0.0
  %3235 = vmatpush2.msra.mxu0 0.0
  %3236 = vmatprep.subr.mxu0 0.0
  %3237 = vmatpush2.msra.mxu0 0.0
  %3238 = vmatprep.subr.mxu0 0.0
  %3239 = vmatpush2.msra.mxu0 0.0
  %3240 = vmatprep.subr.mxu0 0.0
  %3241 = vmatpush2.msra.mxu0 0.0
  %3242 = vmatprep.subr.mxu0 0.0
  %3243 = vmatpush2.msra.mxu0 0.0
  %3244 = vmatprep.mubr.f32.mxu0 0.0
  %3245 = vmatmul.mubr.f32.gmra.mxu0 %v3056
  %v3246 = vpop.f32.mrf.mxu0
  %v3247 = vadd.f32 0.0, %v3246
  %v3248 = vpop.f32.mrf.mxu0
  %3249 = vdwg.mxu0
  %v3250 = vadd.f32 %v3058, %v3176
  %v3251 = vxor.u32 %v3250, 2147483648
  %v3252 = vmul.f32 %v3251, 1.442695
  %v3253 = vpow.pop %v3252
  %v3254 = vadd.f32 %v3253, 1.0
  %v3255 = vrcp.pop %v3254
  %v3256 = vmul.f32 1.0, %v3255
  %v3257 = vadd.f32 %v3059, %v3178
  %v3258 = vxor.u32 %v3257, 2147483648
  %v3259 = vmul.f32 %v3258, 1.442695
  %v3260 = vpow.pop %v3259
  %v3261 = vadd.f32 %v3260, 1.0
  %v3262 = vrcp.pop %v3261
  %v3263 = vmul.f32 1.0, %v3262
  %v3264 = vadd.f32 %v3247, %v2411
  %v3265 = vmul.f32 %v3256, %v3264
  %v3266 = vadd.f32 %v3060, %v3265
  %v3267 = vtanh.pop %v3266
  %v3268 = vsub.f32 1.0, %v3263
  %v3269 = vmul.f32 %v3268, %v3267
  %v3270 = vmul.f32 %v3263, %v3056
  %v3271 = vadd.f32 %v3269, %v3270
  %3272 = vst [vmem:[%s1213] sm:$0xff] %v3271
  %v3273 = vld [vmem:[%s1217] sm:$0xff]
  %v3274 = vld [vmem:[%s1217 + $0x8] sm:$0xff]
  %v3275 = vld [vmem:[%s1217 + $0x10] sm:$0xff]
  %v3276 = vld [vmem:[%s7] sm:$0xff]
  %v3277 = vld [vmem:[%s7 + $0x8] sm:$0xff]
  %v3278 = vld [vmem:[%s7 + $0x10] sm:$0xff]
  %v3279 = vld [vmem:[%s7 + $0x18] sm:$0xff]
  %v3280 = vld [vmem:[%s7 + $0x20] sm:$0xff]
  %v3281 = vld [vmem:[%s7 + $0x28] sm:$0xff]
  %v3282 = vld [vmem:[%s7 + $0x30] sm:$0xff]
  %v3283 = vld [vmem:[%s7 + $0x38] sm:$0xff]
  %v3284 = vld [vmem:[%s7 + $0x40] sm:$0xff]
  %v3285 = vld [vmem:[%s7 + $0x48] sm:$0xff]
  %v3286 = vld [vmem:[%s7 + $0x50] sm:$0xff]
  %v3287 = vld [vmem:[%s7 + $0x58] sm:$0xff]
  %v3288 = vld [vmem:[%s7 + $0x60] sm:$0xff]
  %v3289 = vld [vmem:[%s7 + $0x68] sm:$0xff]
  %v3290 = vld [vmem:[%s7 + $0x70] sm:$0xff]
  %v3291 = vld [vmem:[%s7 + $0x78] sm:$0xff]
  %v3292 = vld [vmem:[%s7 + $0x80] sm:$0xff]
  %v3293 = vld [vmem:[%s7 + $0x88] sm:$0xff]
  %v3294 = vld [vmem:[%s7 + $0x90] sm:$0xff]
  %v3295 = vld [vmem:[%s7 + $0x98] sm:$0xff]
  %v3296 = vld [vmem:[%s7 + $0xa0] sm:$0xff]
  %v3297 = vld [vmem:[%s7 + $0xa8] sm:$0xff]
  %v3298 = vld [vmem:[%s7 + $0xb0] sm:$0xff]
  %v3299 = vld [vmem:[%s7 + $0xb8] sm:$0xff]
  %v3300 = vld [vmem:[%s7 + $0xc0] sm:$0xff]
  %v3301 = vld [vmem:[%s7 + $0xc8] sm:$0xff]
  %v3302 = vld [vmem:[%s7 + $0xd0] sm:$0xff]
  %v3303 = vld [vmem:[%s7 + $0xd8] sm:$0xff]
  %v3304 = vld [vmem:[%s7 + $0xe0] sm:$0xff]
  %v3305 = vld [vmem:[%s7 + $0xe8] sm:$0xff]
  %v3306 = vld [vmem:[%s7 + $0xf0] sm:$0xff]
  %v3307 = vld [vmem:[%s7 + $0xf8] sm:$0xff]
  %v3308 = vld [vmem:[%s7 + $0x100] sm:$0xff]
  %v3309 = vld [vmem:[%s7 + $0x108] sm:$0xff]
  %v3310 = vld [vmem:[%s7 + $0x110] sm:$0xff]
  %v3311 = vld [vmem:[%s7 + $0x118] sm:$0xff]
  %v3312 = vld [vmem:[%s7 + $0x120] sm:$0xff]
  %v3313 = vld [vmem:[%s7 + $0x128] sm:$0xff]
  %v3314 = vld [vmem:[%s7 + $0x130] sm:$0xff]
  %v3315 = vld [vmem:[%s7 + $0x138] sm:$0xff]
  %v3316 = vld [vmem:[%s7 + $0x140] sm:$0xff]
  %v3317 = vld [vmem:[%s7 + $0x148] sm:$0xff]
  %v3318 = vld [vmem:[%s7 + $0x150] sm:$0xff]
  %v3319 = vld [vmem:[%s7 + $0x158] sm:$0xff]
  %v3320 = vld [vmem:[%s7 + $0x160] sm:$0xff]
  %v3321 = vld [vmem:[%s7 + $0x168] sm:$0xff]
  %v3322 = vld [vmem:[%s7 + $0x170] sm:$0xff]
  %v3323 = vld [vmem:[%s7 + $0x178] sm:$0xff]
  %3324 = vmatprep.subr.mxu0 %v3322
  %3325 = vmatpush1.msra.mxu0 %v3321
  %3326 = vmatprep.subr.mxu0 %v3319
  %3327 = vmatpush1.msra.mxu0 %v3318
  %3328 = vmatprep.subr.mxu0 %v3316
  %3329 = vmatpush1.msra.mxu0 %v3315
  %3330 = vmatprep.subr.mxu0 %v3313
  %3331 = vmatpush1.msra.mxu0 %v3312
  %3332 = vmatprep.subr.mxu0 %v3310
  %3333 = vmatpush1.msra.mxu0 %v3309
  %3334 = vmatprep.subr.mxu0 %v3307
  %3335 = vmatpush1.msra.mxu0 %v3306
  %3336 = vmatprep.subr.mxu0 %v3304
  %3337 = vmatpush1.msra.mxu0 %v3303
  %3338 = vmatprep.subr.mxu0 %v3301
  %3339 = vmatpush1.msra.mxu0 %v3300
  %3340 = vmatprep.subr.mxu0 %v3298
  %3341 = vmatpush1.msra.mxu0 %v3297
  %3342 = vmatprep.subr.mxu0 %v3295
  %3343 = vmatpush1.msra.mxu0 %v3294
  %3344 = vmatprep.subr.mxu0 %v3292
  %3345 = vmatpush1.msra.mxu0 %v3291
  %3346 = vmatprep.subr.mxu0 %v3289
  %3347 = vmatpush1.msra.mxu0 %v3288
  %3348 = vmatprep.subr.mxu0 %v3286
  %3349 = vmatpush1.msra.mxu0 %v3285
  %3350 = vmatprep.subr.mxu0 %v3283
  %3351 = vmatpush1.msra.mxu0 %v3282
  %3352 = vmatprep.subr.mxu0 %v3280
  %3353 = vmatpush1.msra.mxu0 %v3279
  %3354 = vmatprep.subr.mxu0 %v3277
  %3355 = vmatpush1.msra.mxu0 %v3276
  %3356 = vmatprep.subr.mxu0 0.0
  %3357 = vmatpush2.msra.mxu0 0.0
  %3358 = vmatprep.subr.mxu0 0.0
  %3359 = vmatpush2.msra.mxu0 0.0
  %3360 = vmatprep.subr.mxu0 0.0
  %3361 = vmatpush2.msra.mxu0 0.0
  %3362 = vmatprep.subr.mxu0 0.0
  %3363 = vmatpush2.msra.mxu0 0.0
  %3364 = vmatprep.subr.mxu0 0.0
  %3365 = vmatpush2.msra.mxu0 0.0
  %3366 = vmatprep.subr.mxu0 0.0
  %3367 = vmatpush2.msra.mxu0 0.0
  %3368 = vmatprep.subr.mxu0 0.0
  %3369 = vmatpush2.msra.mxu0 0.0
  %3370 = vmatprep.subr.mxu0 0.0
  %3371 = vmatpush2.msra.mxu0 0.0
  %3372 = vmatprep.subr.mxu0 0.0
  %3373 = vmatpush2.msra.mxu0 0.0
  %3374 = vmatprep.subr.mxu0 0.0
  %3375 = vmatpush2.msra.mxu0 0.0
  %3376 = vmatprep.subr.mxu0 0.0
  %3377 = vmatpush2.msra.mxu0 0.0
  %3378 = vmatprep.subr.mxu0 0.0
  %3379 = vmatpush2.msra.mxu0 0.0
  %3380 = vmatprep.subr.mxu0 0.0
  %3381 = vmatpush2.msra.mxu0 0.0
  %3382 = vmatprep.subr.mxu0 0.0
  %3383 = vmatpush2.msra.mxu0 0.0
  %3384 = vmatprep.subr.mxu0 0.0
  %3385 = vmatpush2.msra.mxu0 0.0
  %3386 = vmatprep.subr.mxu0 0.0
  %3387 = vmatpush2.msra.mxu0 0.0
  %3388 = vmatprep.mubr.f32.mxu0 0.0
  %3389 = vmatmul.mubr.f32.gmra.mxu0 %v3271
  %v3390 = vpop.f32.mrf.mxu0
  %v3391 = vadd.f32 0.0, %v3390
  %v3392 = vpop.f32.mrf.mxu0
  %v3393 = vadd.f32 0.0, %v3392
  %3394 = vdwg.mxu0
  %3395 = vmatprep.subr.mxu0 0.0
  %3396 = vmatpush1.msra.mxu0 %v3323
  %3397 = vmatprep.subr.mxu0 0.0
  %3398 = vmatpush1.msra.mxu0 %v3320
  %3399 = vmatprep.subr.mxu0 0.0
  %3400 = vmatpush1.msra.mxu0 %v3317
  %3401 = vmatprep.subr.mxu0 0.0
  %3402 = vmatpush1.msra.mxu0 %v3314
  %3403 = vmatprep.subr.mxu0 0.0
  %3404 = vmatpush1.msra.mxu0 %v3311
  %3405 = vmatprep.subr.mxu0 0.0
  %3406 = vmatpush1.msra.mxu0 %v3308
  %3407 = vmatprep.subr.mxu0 0.0
  %3408 = vmatpush1.msra.mxu0 %v3305
  %3409 = vmatprep.subr.mxu0 0.0
  %3410 = vmatpush1.msra.mxu0 %v3302
  %3411 = vmatprep.subr.mxu0 0.0
  %3412 = vmatpush1.msra.mxu0 %v3299
  %3413 = vmatprep.subr.mxu0 0.0
  %3414 = vmatpush1.msra.mxu0 %v3296
  %3415 = vmatprep.subr.mxu0 0.0
  %3416 = vmatpush1.msra.mxu0 %v3293
  %3417 = vmatprep.subr.mxu0 0.0
  %3418 = vmatpush1.msra.mxu0 %v3290
  %3419 = vmatprep.subr.mxu0 0.0
  %3420 = vmatpush1.msra.mxu0 %v3287
  %3421 = vmatprep.subr.mxu0 0.0
  %3422 = vmatpush1.msra.mxu0 %v3284
  %3423 = vmatprep.subr.mxu0 0.0
  %3424 = vmatpush1.msra.mxu0 %v3281
  %3425 = vmatprep.subr.mxu0 0.0
  %3426 = vmatpush1.msra.mxu0 %v3278
  %3427 = vmatprep.subr.mxu0 0.0
  %3428 = vmatpush2.msra.mxu0 0.0
  %3429 = vmatprep.subr.mxu0 0.0
  %3430 = vmatpush2.msra.mxu0 0.0
  %3431 = vmatprep.subr.mxu0 0.0
  %3432 = vmatpush2.msra.mxu0 0.0
  %3433 = vmatprep.subr.mxu0 0.0
  %3434 = vmatpush2.msra.mxu0 0.0
  %3435 = vmatprep.subr.mxu0 0.0
  %3436 = vmatpush2.msra.mxu0 0.0
  %3437 = vmatprep.subr.mxu0 0.0
  %3438 = vmatpush2.msra.mxu0 0.0
  %3439 = vmatprep.subr.mxu0 0.0
  %3440 = vmatpush2.msra.mxu0 0.0
  %3441 = vmatprep.subr.mxu0 0.0
  %3442 = vmatpush2.msra.mxu0 0.0
  %3443 = vmatprep.subr.mxu0 0.0
  %3444 = vmatpush2.msra.mxu0 0.0
  %3445 = vmatprep.subr.mxu0 0.0
  %3446 = vmatpush2.msra.mxu0 0.0
  %3447 = vmatprep.subr.mxu0 0.0
  %3448 = vmatpush2.msra.mxu0 0.0
  %3449 = vmatprep.subr.mxu0 0.0
  %3450 = vmatpush2.msra.mxu0 0.0
  %3451 = vmatprep.subr.mxu0 0.0
  %3452 = vmatpush2.msra.mxu0 0.0
  %3453 = vmatprep.subr.mxu0 0.0
  %3454 = vmatpush2.msra.mxu0 0.0
  %3455 = vmatprep.subr.mxu0 0.0
  %3456 = vmatpush2.msra.mxu0 0.0
  %3457 = vmatprep.subr.mxu0 0.0
  %3458 = vmatpush2.msra.mxu0 0.0
  %3459 = vmatprep.mubr.f32.mxu0 0.0
  %3460 = vmatmul.mubr.f32.gmra.mxu0 %v3271
  %v3461 = vpop.f32.mrf.mxu0
  %v3462 = vadd.f32 0.0, %v3461
  %v3463 = vpop.f32.mrf.mxu0
  %3464 = vdwg.mxu0
  %v3465 = vadd.f32 %v3273, %v3391
  %v3466 = vxor.u32 %v3465, 2147483648
  %v3467 = vmul.f32 %v3466, 1.442695
  %v3468 = vpow.pop %v3467
  %v3469 = vadd.f32 %v3468, 1.0
  %v3470 = vrcp.pop %v3469
  %v3471 = vmul.f32 1.0, %v3470
  %v3472 = vadd.f32 %v3274, %v3393
  %v3473 = vxor.u32 %v3472, 2147483648
  %v3474 = vmul.f32 %v3473, 1.442695
  %v3475 = vpow.pop %v3474
  %v3476 = vadd.f32 %v3475, 1.0
  %v3477 = vrcp.pop %v3476
  %v3478 = vmul.f32 1.0, %v3477
  %v3479 = vadd.f32 %v3462, %v2411
  %v3480 = vmul.f32 %v3471, %v3479
  %v3481 = vadd.f32 %v3275, %v3480
  %v3482 = vtanh.pop %v3481
  %v3483 = vsub.f32 1.0, %v3478
  %v3484 = vmul.f32 %v3483, %v3482
  %v3485 = vmul.f32 %v3478, %v3271
  %v3486 = vadd.f32 %v3484, %v3485
  %3487 = vst [vmem:[%s1432] sm:$0xff] %v3486
  %v3488 = vld [vmem:[%s1436] sm:$0xff]
  %v3489 = vld [vmem:[%s1436 + $0x8] sm:$0xff]
  %v3490 = vld [vmem:[%s1436 + $0x10] sm:$0xff]
  %v3491 = vld [vmem:[%s7] sm:$0xff]
  %v3492 = vld [vmem:[%s7 + $0x8] sm:$0xff]
  %v3493 = vld [vmem:[%s7 + $0x10] sm:$0xff]
  %v3494 = vld [vmem:[%s7 + $0x18] sm:$0xff]
  %v3495 = vld [vmem:[%s7 + $0x20] sm:$0xff]
  %v3496 = vld [vmem:[%s7 + $0x28] sm:$0xff]
  %v3497 = vld [vmem:[%s7 + $0x30] sm:$0xff]
  %v3498 = vld [vmem:[%s7 + $0x38] sm:$0xff]
  %v3499 = vld [vmem:[%s7 + $0x40] sm:$0xff]
  %v3500 = vld [vmem:[%s7 + $0x48] sm:$0xff]
  %v3501 = vld [vmem:[%s7 + $0x50] sm:$0xff]
  %v3502 = vld [vmem:[%s7 + $0x58] sm:$0xff]
  %v3503 = vld [vmem:[%s7 + $0x60] sm:$0xff]
  %v3504 = vld [vmem:[%s7 + $0x68] sm:$0xff]
  %v3505 = vld [vmem:[%s7 + $0x70] sm:$0xff]
  %v3506 = vld [vmem:[%s7 + $0x78] sm:$0xff]
  %v3507 = vld [vmem:[%s7 + $0x80] sm:$0xff]
  %v3508 = vld [vmem:[%s7 + $0x88] sm:$0xff]
  %v3509 = vld [vmem:[%s7 + $0x90] sm:$0xff]
  %v3510 = vld [vmem:[%s7 + $0x98] sm:$0xff]
  %v3511 = vld [vmem:[%s7 + $0xa0] sm:$0xff]
  %v3512 = vld [vmem:[%s7 + $0xa8] sm:$0xff]
  %v3513 = vld [vmem:[%s7 + $0xb0] sm:$0xff]
  %v3514 = vld [vmem:[%s7 + $0xb8] sm:$0xff]
  %v3515 = vld [vmem:[%s7 + $0xc0] sm:$0xff]
  %v3516 = vld [vmem:[%s7 + $0xc8] sm:$0xff]
  %v3517 = vld [vmem:[%s7 + $0xd0] sm:$0xff]
  %v3518 = vld [vmem:[%s7 + $0xd8] sm:$0xff]
  %v3519 = vld [vmem:[%s7 + $0xe0] sm:$0xff]
  %v3520 = vld [vmem:[%s7 + $0xe8] sm:$0xff]
  %v3521 = vld [vmem:[%s7 + $0xf0] sm:$0xff]
  %v3522 = vld [vmem:[%s7 + $0xf8] sm:$0xff]
  %v3523 = vld [vmem:[%s7 + $0x100] sm:$0xff]
  %v3524 = vld [vmem:[%s7 + $0x108] sm:$0xff]
  %v3525 = vld [vmem:[%s7 + $0x110] sm:$0xff]
  %v3526 = vld [vmem:[%s7 + $0x118] sm:$0xff]
  %v3527 = vld [vmem:[%s7 + $0x120] sm:$0xff]
  %v3528 = vld [vmem:[%s7 + $0x128] sm:$0xff]
  %v3529 = vld [vmem:[%s7 + $0x130] sm:$0xff]
  %v3530 = vld [vmem:[%s7 + $0x138] sm:$0xff]
  %v3531 = vld [vmem:[%s7 + $0x140] sm:$0xff]
  %v3532 = vld [vmem:[%s7 + $0x148] sm:$0xff]
  %v3533 = vld [vmem:[%s7 + $0x150] sm:$0xff]
  %v3534 = vld [vmem:[%s7 + $0x158] sm:$0xff]
  %v3535 = vld [vmem:[%s7 + $0x160] sm:$0xff]
  %v3536 = vld [vmem:[%s7 + $0x168] sm:$0xff]
  %v3537 = vld [vmem:[%s7 + $0x170] sm:$0xff]
  %v3538 = vld [vmem:[%s7 + $0x178] sm:$0xff]
  %3539 = vmatprep.subr.mxu0 %v3537
  %3540 = vmatpush1.msra.mxu0 %v3536
  %3541 = vmatprep.subr.mxu0 %v3534
  %3542 = vmatpush1.msra.mxu0 %v3533
  %3543 = vmatprep.subr.mxu0 %v3531
  %3544 = vmatpush1.msra.mxu0 %v3530
  %3545 = vmatprep.subr.mxu0 %v3528
  %3546 = vmatpush1.msra.mxu0 %v3527
  %3547 = vmatprep.subr.mxu0 %v3525
  %3548 = vmatpush1.msra.mxu0 %v3524
  %3549 = vmatprep.subr.mxu0 %v3522
  %3550 = vmatpush1.msra.mxu0 %v3521
  %3551 = vmatprep.subr.mxu0 %v3519
  %3552 = vmatpush1.msra.mxu0 %v3518
  %3553 = vmatprep.subr.mxu0 %v3516
  %3554 = vmatpush1.msra.mxu0 %v3515
  %3555 = vmatprep.subr.mxu0 %v3513
  %3556 = vmatpush1.msra.mxu0 %v3512
  %3557 = vmatprep.subr.mxu0 %v3510
  %3558 = vmatpush1.msra.mxu0 %v3509
  %3559 = vmatprep.subr.mxu0 %v3507
  %3560 = vmatpush1.msra.mxu0 %v3506
  %3561 = vmatprep.subr.mxu0 %v3504
  %3562 = vmatpush1.msra.mxu0 %v3503
  %3563 = vmatprep.subr.mxu0 %v3501
  %3564 = vmatpush1.msra.mxu0 %v3500
  %3565 = vmatprep.subr.mxu0 %v3498
  %3566 = vmatpush1.msra.mxu0 %v3497
  %3567 = vmatprep.subr.mxu0 %v3495
  %3568 = vmatpush1.msra.mxu0 %v3494
  %3569 = vmatprep.subr.mxu0 %v3492
  %3570 = vmatpush1.msra.mxu0 %v3491
  %3571 = vmatprep.subr.mxu0 0.0
  %3572 = vmatpush2.msra.mxu0 0.0
  %3573 = vmatprep.subr.mxu0 0.0
  %3574 = vmatpush2.msra.mxu0 0.0
  %3575 = vmatprep.subr.mxu0 0.0
  %3576 = vmatpush2.msra.mxu0 0.0
  %3577 = vmatprep.subr.mxu0 0.0
  %3578 = vmatpush2.msra.mxu0 0.0
  %3579 = vmatprep.subr.mxu0 0.0
  %3580 = vmatpush2.msra.mxu0 0.0
  %3581 = vmatprep.subr.mxu0 0.0
  %3582 = vmatpush2.msra.mxu0 0.0
  %3583 = vmatprep.subr.mxu0 0.0
  %3584 = vmatpush2.msra.mxu0 0.0
  %3585 = vmatprep.subr.mxu0 0.0
  %3586 = vmatpush2.msra.mxu0 0.0
  %3587 = vmatprep.subr.mxu0 0.0
  %3588 = vmatpush2.msra.mxu0 0.0
  %3589 = vmatprep.subr.mxu0 0.0
  %3590 = vmatpush2.msra.mxu0 0.0
  %3591 = vmatprep.subr.mxu0 0.0
  %3592 = vmatpush2.msra.mxu0 0.0
  %3593 = vmatprep.subr.mxu0 0.0
  %3594 = vmatpush2.msra.mxu0 0.0
  %3595 = vmatprep.subr.mxu0 0.0
  %3596 = vmatpush2.msra.mxu0 0.0
  %3597 = vmatprep.subr.mxu0 0.0
  %3598 = vmatpush2.msra.mxu0 0.0
  %3599 = vmatprep.subr.mxu0 0.0
  %3600 = vmatpush2.msra.mxu0 0.0
  %3601 = vmatprep.subr.mxu0 0.0
  %3602 = vmatpush2.msra.mxu0 0.0
  %3603 = vmatprep.mubr.f32.mxu0 0.0
  %3604 = vmatmul.mubr.f32.gmra.mxu0 %v3486
  %v3605 = vpop.f32.mrf.mxu0
  %v3606 = vadd.f32 0.0, %v3605
  %v3607 = vpop.f32.mrf.mxu0
  %v3608 = vadd.f32 0.0, %v3607
  %3609 = vdwg.mxu0
  %3610 = vmatprep.subr.mxu0 0.0
  %3611 = vmatpush1.msra.mxu0 %v3538
  %3612 = vmatprep.subr.mxu0 0.0
  %3613 = vmatpush1.msra.mxu0 %v3535
  %3614 = vmatprep.subr.mxu0 0.0
  %3615 = vmatpush1.msra.mxu0 %v3532
  %3616 = vmatprep.subr.mxu0 0.0
  %3617 = vmatpush1.msra.mxu0 %v3529
  %3618 = vmatprep.subr.mxu0 0.0
  %3619 = vmatpush1.msra.mxu0 %v3526
  %3620 = vmatprep.subr.mxu0 0.0
  %3621 = vmatpush1.msra.mxu0 %v3523
  %3622 = vmatprep.subr.mxu0 0.0
  %3623 = vmatpush1.msra.mxu0 %v3520
  %3624 = vmatprep.subr.mxu0 0.0
  %3625 = vmatpush1.msra.mxu0 %v3517
  %3626 = vmatprep.subr.mxu0 0.0
  %3627 = vmatpush1.msra.mxu0 %v3514
  %3628 = vmatprep.subr.mxu0 0.0
  %3629 = vmatpush1.msra.mxu0 %v3511
  %3630 = vmatprep.subr.mxu0 0.0
  %3631 = vmatpush1.msra.mxu0 %v3508
  %3632 = vmatprep.subr.mxu0 0.0
  %3633 = vmatpush1.msra.mxu0 %v3505
  %3634 = vmatprep.subr.mxu0 0.0
  %3635 = vmatpush1.msra.mxu0 %v3502
  %3636 = vmatprep.subr.mxu0 0.0
  %3637 = vmatpush1.msra.mxu0 %v3499
  %3638 = vmatprep.subr.mxu0 0.0
  %3639 = vmatpush1.msra.mxu0 %v3496
  %3640 = vmatprep.subr.mxu0 0.0
  %3641 = vmatpush1.msra.mxu0 %v3493
  %3642 = vmatprep.subr.mxu0 0.0
  %3643 = vmatpush2.msra.mxu0 0.0
  %3644 = vmatprep.subr.mxu0 0.0
  %3645 = vmatpush2.msra.mxu0 0.0
  %3646 = vmatprep.subr.mxu0 0.0
  %3647 = vmatpush2.msra.mxu0 0.0
  %3648 = vmatprep.subr.mxu0 0.0
  %3649 = vmatpush2.msra.mxu0 0.0
  %3650 = vmatprep.subr.mxu0 0.0
  %3651 = vmatpush2.msra.mxu0 0.0
  %3652 = vmatprep.subr.mxu0 0.0
  %3653 = vmatpush2.msra.mxu0 0.0
  %3654 = vmatprep.subr.mxu0 0.0
  %3655 = vmatpush2.msra.mxu0 0.0
  %3656 = vmatprep.subr.mxu0 0.0
  %3657 = vmatpush2.msra.mxu0 0.0
  %3658 = vmatprep.subr.mxu0 0.0
  %3659 = vmatpush2.msra.mxu0 0.0
  %3660 = vmatprep.subr.mxu0 0.0
  %3661 = vmatpush2.msra.mxu0 0.0
  %3662 = vmatprep.subr.mxu0 0.0
  %3663 = vmatpush2.msra.mxu0 0.0
  %3664 = vmatprep.subr.mxu0 0.0
  %3665 = vmatpush2.msra.mxu0 0.0
  %3666 = vmatprep.subr.mxu0 0.0
  %3667 = vmatpush2.msra.mxu0 0.0
  %3668 = vmatprep.subr.mxu0 0.0
  %3669 = vmatpush2.msra.mxu0 0.0
  %3670 = vmatprep.subr.mxu0 0.0
  %3671 = vmatpush2.msra.mxu0 0.0
  %3672 = vmatprep.subr.mxu0 0.0
  %3673 = vmatpush2.msra.mxu0 0.0
  %3674 = vmatprep.mubr.f32.mxu0 0.0
  %3675 = vmatmul.mubr.f32.gmra.mxu0 %v3486
  %v3676 = vpop.f32.mrf.mxu0
  %v3677 = vadd.f32 0.0, %v3676
  %v3678 = vpop.f32.mrf.mxu0
  %3679 = vdwg.mxu0
  %v3680 = vadd.f32 %v3488, %v3606
  %v3681 = vxor.u32 %v3680, 2147483648
  %v3682 = vmul.f32 %v3681, 1.442695
  %v3683 = vpow.pop %v3682
  %v3684 = vadd.f32 %v3683, 1.0
  %v3685 = vrcp.pop %v3684
  %v3686 = vmul.f32 1.0, %v3685
  %v3687 = vadd.f32 %v3489, %v3608
  %v3688 = vxor.u32 %v3687, 2147483648
  %v3689 = vmul.f32 %v3688, 1.442695
  %v3690 = vpow.pop %v3689
  %v3691 = vadd.f32 %v3690, 1.0
  %v3692 = vrcp.pop %v3691
  %v3693 = vmul.f32 1.0, %v3692
  %v3694 = vadd.f32 %v3677, %v2411
  %v3695 = vmul.f32 %v3686, %v3694
  %v3696 = vadd.f32 %v3490, %v3695
  %v3697 = vtanh.pop %v3696
  %v3698 = vsub.f32 1.0, %v3693
  %v3699 = vmul.f32 %v3698, %v3697
  %v3700 = vmul.f32 %v3693, %v3486
  %v3701 = vadd.f32 %v3699, %v3700
  %3702 = vst [vmem:[%s1651] sm:$0xff] %v3701
  %v3703 = vld [vmem:[%s1655] sm:$0xff]
  %v3704 = vld [vmem:[%s1655 + $0x8] sm:$0xff]
  %v3705 = vld [vmem:[%s1655 + $0x10] sm:$0xff]
  %v3706 = vld [vmem:[%s7] sm:$0xff]
  %v3707 = vld [vmem:[%s7 + $0x8] sm:$0xff]
  %v3708 = vld [vmem:[%s7 + $0x10] sm:$0xff]
  %v3709 = vld [vmem:[%s7 + $0x18] sm:$0xff]
  %v3710 = vld [vmem:[%s7 + $0x20] sm:$0xff]
  %v3711 = vld [vmem:[%s7 + $0x28] sm:$0xff]
  %v3712 = vld [vmem:[%s7 + $0x30] sm:$0xff]
  %v3713 = vld [vmem:[%s7 + $0x38] sm:$0xff]
  %v3714 = vld [vmem:[%s7 + $0x40] sm:$0xff]
  %v3715 = vld [vmem:[%s7 + $0x48] sm:$0xff]
  %v3716 = vld [vmem:[%s7 + $0x50] sm:$0xff]
  %v3717 = vld [vmem:[%s7 + $0x58] sm:$0xff]
  %v3718 = vld [vmem:[%s7 + $0x60] sm:$0xff]
  %v3719 = vld [vmem:[%s7 + $0x68] sm:$0xff]
  %v3720 = vld [vmem:[%s7 + $0x70] sm:$0xff]
  %v3721 = vld [vmem:[%s7 + $0x78] sm:$0xff]
  %v3722 = vld [vmem:[%s7 + $0x80] sm:$0xff]
  %v3723 = vld [vmem:[%s7 + $0x88] sm:$0xff]
  %v3724 = vld [vmem:[%s7 + $0x90] sm:$0xff]
  %v3725 = vld [vmem:[%s7 + $0x98] sm:$0xff]
  %v3726 = vld [vmem:[%s7 + $0xa0] sm:$0xff]
  %v3727 = vld [vmem:[%s7 + $0xa8] sm:$0xff]
  %v3728 = vld [vmem:[%s7 + $0xb0] sm:$0xff]
  %v3729 = vld [vmem:[%s7 + $0xb8] sm:$0xff]
  %v3730 = vld [vmem:[%s7 + $0xc0] sm:$0xff]
  %v3731 = vld [vmem:[%s7 + $0xc8] sm:$0xff]
  %v3732 = vld [vmem:[%s7 + $0xd0] sm:$0xff]
  %v3733 = vld [vmem:[%s7 + $0xd8] sm:$0xff]
  %v3734 = vld [vmem:[%s7 + $0xe0] sm:$0xff]
  %v3735 = vld [vmem:[%s7 + $0xe8] sm:$0xff]
  %v3736 = vld [vmem:[%s7 + $0xf0] sm:$0xff]
  %v3737 = vld [vmem:[%s7 + $0xf8] sm:$0xff]
  %v3738 = vld [vmem:[%s7 + $0x100] sm:$0xff]
  %v3739 = vld [vmem:[%s7 + $0x108] sm:$0xff]
  %v3740 = vld [vmem:[%s7 + $0x110] sm:$0xff]
  %v3741 = vld [vmem:[%s7 + $0x118] sm:$0xff]
  %v3742 = vld [vmem:[%s7 + $0x120] sm:$0xff]
  %v3743 = vld [vmem:[%s7 + $0x128] sm:$0xff]
  %v3744 = vld [vmem:[%s7 + $0x130] sm:$0xff]
  %v3745 = vld [vmem:[%s7 + $0x138] sm:$0xff]
  %v3746 = vld [vmem:[%s7 + $0x140] sm:$0xff]
  %v3747 = vld [vmem:[%s7 + $0x148] sm:$0xff]
  %v3748 = vld [vmem:[%s7 + $0x150] sm:$0xff]
  %v3749 = vld [vmem:[%s7 + $0x158] sm:$0xff]
  %v3750 = vld [vmem:[%s7 + $0x160] sm:$0xff]
  %v3751 = vld [vmem:[%s7 + $0x168] sm:$0xff]
  %v3752 = vld [vmem:[%s7 + $0x170] sm:$0xff]
  %v3753 = vld [vmem:[%s7 + $0x178] sm:$0xff]
  %3754 = vmatprep.subr.mxu0 %v3752
  %3755 = vmatpush1.msra.mxu0 %v3751
  %3756 = vmatprep.subr.mxu0 %v3749
  %3757 = vmatpush1.msra.mxu0 %v3748
  %3758 = vmatprep.subr.mxu0 %v3746
  %3759 = vmatpush1.msra.mxu0 %v3745
  %3760 = vmatprep.subr.mxu0 %v3743
  %3761 = vmatpush1.msra.mxu0 %v3742
  %3762 = vmatprep.subr.mxu0 %v3740
  %3763 = vmatpush1.msra.mxu0 %v3739
  %3764 = vmatprep.subr.mxu0 %v3737
  %3765 = vmatpush1.msra.mxu0 %v3736
  %3766 = vmatprep.subr.mxu0 %v3734
  %3767 = vmatpush1.msra.mxu0 %v3733
  %3768 = vmatprep.subr.mxu0 %v3731
  %3769 = vmatpush1.msra.mxu0 %v3730
  %3770 = vmatprep.subr.mxu0 %v3728
  %3771 = vmatpush1.msra.mxu0 %v3727
  %3772 = vmatprep.subr.mxu0 %v3725
  %3773 = vmatpush1.msra.mxu0 %v3724
  %3774 = vmatprep.subr.mxu0 %v3722
  %3775 = vmatpush1.msra.mxu0 %v3721
  %3776 = vmatprep.subr.mxu0 %v3719
  %3777 = vmatpush1.msra.mxu0 %v3718
  %3778 = vmatprep.subr.mxu0 %v3716
  %3779 = vmatpush1.msra.mxu0 %v3715
  %3780 = vmatprep.subr.mxu0 %v3713
  %3781 = vmatpush1.msra.mxu0 %v3712
  %3782 = vmatprep.subr.mxu0 %v3710
  %3783 = vmatpush1.msra.mxu0 %v3709
  %3784 = vmatprep.subr.mxu0 %v3707
  %3785 = vmatpush1.msra.mxu0 %v3706
  %3786 = vmatprep.subr.mxu0 0.0
  %3787 = vmatpush2.msra.mxu0 0.0
  %3788 = vmatprep.subr.mxu0 0.0
  %3789 = vmatpush2.msra.mxu0 0.0
  %3790 = vmatprep.subr.mxu0 0.0
  %3791 = vmatpush2.msra.mxu0 0.0
  %3792 = vmatprep.subr.mxu0 0.0
  %3793 = vmatpush2.msra.mxu0 0.0
  %3794 = vmatprep.subr.mxu0 0.0
  %3795 = vmatpush2.msra.mxu0 0.0
  %3796 = vmatprep.subr.mxu0 0.0
  %3797 = vmatpush2.msra.mxu0 0.0
  %3798 = vmatprep.subr.mxu0 0.0
  %3799 = vmatpush2.msra.mxu0 0.0
  %3800 = vmatprep.subr.mxu0 0.0
  %3801 = vmatpush2.msra.mxu0 0.0
  %3802 = vmatprep.subr.mxu0 0.0
  %3803 = vmatpush2.msra.mxu0 0.0
  %3804 = vmatprep.subr.mxu0 0.0
  %3805 = vmatpush2.msra.mxu0 0.0
  %3806 = vmatprep.subr.mxu0 0.0
  %3807 = vmatpush2.msra.mxu0 0.0
  %3808 = vmatprep.subr.mxu0 0.0
  %3809 = vmatpush2.msra.mxu0 0.0
  %3810 = vmatprep.subr.mxu0 0.0
  %3811 = vmatpush2.msra.mxu0 0.0
  %3812 = vmatprep.subr.mxu0 0.0
  %3813 = vmatpush2.msra.mxu0 0.0
  %3814 = vmatprep.subr.mxu0 0.0
  %3815 = vmatpush2.msra.mxu0 0.0
  %3816 = vmatprep.subr.mxu0 0.0
  %3817 = vmatpush2.msra.mxu0 0.0
  %3818 = vmatprep.mubr.f32.mxu0 0.0
  %3819 = vmatmul.mubr.f32.gmra.mxu0 %v3701
  %v3820 = vpop.f32.mrf.mxu0
  %v3821 = vadd.f32 0.0, %v3820
  %v3822 = vpop.f32.mrf.mxu0
  %v3823 = vadd.f32 0.0, %v3822
  %3824 = vdwg.mxu0
  %3825 = vmatprep.subr.mxu0 0.0
  %3826 = vmatpush1.msra.mxu0 %v3753
  %3827 = vmatprep.subr.mxu0 0.0
  %3828 = vmatpush1.msra.mxu0 %v3750
  %3829 = vmatprep.subr.mxu0 0.0
  %3830 = vmatpush1.msra.mxu0 %v3747
  %3831 = vmatprep.subr.mxu0 0.0
  %3832 = vmatpush1.msra.mxu0 %v3744
  %3833 = vmatprep.subr.mxu0 0.0
  %3834 = vmatpush1.msra.mxu0 %v3741
  %3835 = vmatprep.subr.mxu0 0.0
  %3836 = vmatpush1.msra.mxu0 %v3738
  %3837 = vmatprep.subr.mxu0 0.0
  %3838 = vmatpush1.msra.mxu0 %v3735
  %3839 = vmatprep.subr.mxu0 0.0
  %3840 = vmatpush1.msra.mxu0 %v3732
  %3841 = vmatprep.subr.mxu0 0.0
  %3842 = vmatpush1.msra.mxu0 %v3729
  %3843 = vmatprep.subr.mxu0 0.0
  %3844 = vmatpush1.msra.mxu0 %v3726
  %3845 = vmatprep.subr.mxu0 0.0
  %3846 = vmatpush1.msra.mxu0 %v3723
  %3847 = vmatprep.subr.mxu0 0.0
  %3848 = vmatpush1.msra.mxu0 %v3720
  %3849 = vmatprep.subr.mxu0 0.0
  %3850 = vmatpush1.msra.mxu0 %v3717
  %3851 = vmatprep.subr.mxu0 0.0
  %3852 = vmatpush1.msra.mxu0 %v3714
  %3853 = vmatprep.subr.mxu0 0.0
  %3854 = vmatpush1.msra.mxu0 %v3711
  %3855 = vmatprep.subr.mxu0 0.0
  %3856 = vmatpush1.msra.mxu0 %v3708
  %3857 = vmatprep.subr.mxu0 0.0
  %3858 = vmatpush2.msra.mxu0 0.0
  %3859 = vmatprep.subr.mxu0 0.0
  %3860 = vmatpush2.msra.mxu0 0.0
  %3861 = vmatprep.subr.mxu0 0.0
  %3862 = vmatpush2.msra.mxu0 0.0
  %3863 = vmatprep.subr.mxu0 0.0
  %3864 = vmatpush2.msra.mxu0 0.0
  %3865 = vmatprep.subr.mxu0 0.0
  %3866 = vmatpush2.msra.mxu0 0.0
  %3867 = vmatprep.subr.mxu0 0.0
  %3868 = vmatpush2.msra.mxu0 0.0
  %3869 = vmatprep.subr.mxu0 0.0
  %3870 = vmatpush2.msra.mxu0 0.0
  %3871 = vmatprep.subr.mxu0 0.0
  %3872 = vmatpush2.msra.mxu0 0.0
  %3873 = vmatprep.subr.mxu0 0.0
  %3874 = vmatpush2.msra.mxu0 0.0
  %3875 = vmatprep.subr.mxu0 0.0
  %3876 = vmatpush2.msra.mxu0 0.0
  %3877 = vmatprep.subr.mxu0 0.0
  %3878 = vmatpush2.msra.mxu0 0.0
  %3879 = vmatprep.subr.mxu0 0.0
  %3880 = vmatpush2.msra.mxu0 0.0
  %3881 = vmatprep.subr.mxu0 0.0
  %3882 = vmatpush2.msra.mxu0 0.0
  %3883 = vmatprep.subr.mxu0 0.0
  %3884 = vmatpush2.msra.mxu0 0.0
  %3885 = vmatprep.subr.mxu0 0.0
  %3886 = vmatpush2.msra.mxu0 0.0
  %3887 = vmatprep.subr.mxu0 0.0
  %3888 = vmatpush2.msra.mxu0 0.0
  %3889 = vmatprep.mubr.f32.mxu0 0.0
  %3890 = vmatmul.mubr.f32.gmra.mxu0 %v3701
  %v3891 = vpop.f32.mrf.mxu0
  %v3892 = vadd.f32 0.0, %v3891
  %v3893 = vpop.f32.mrf.mxu0
  %3894 = vdwg.mxu0
  %v3895 = vadd.f32 %v3703, %v3821
  %v3896 = vxor.u32 %v3895, 2147483648
  %v3897 = vmul.f32 %v3896, 1.442695
  %v3898 = vpow.pop %v3897
  %v3899 = vadd.f32 %v3898, 1.0
  %v3900 = vrcp.pop %v3899
  %v3901 = vmul.f32 1.0, %v3900
  %v3902 = vadd.f32 %v3704, %v3823
  %v3903 = vxor.u32 %v3902, 2147483648
  %v3904 = vmul.f32 %v3903, 1.442695
  %v3905 = vpow.pop %v3904
  %v3906 = vadd.f32 %v3905, 1.0
  %v3907 = vrcp.pop %v3906
  %v3908 = vmul.f32 1.0, %v3907
  %v3909 = vadd.f32 %v3892, %v2411
  %v3910 = vmul.f32 %v3901, %v3909
  %v3911 = vadd.f32 %v3705, %v3910
  %v3912 = vtanh.pop %v3911
  %v3913 = vsub.f32 1.0, %v3908
  %v3914 = vmul.f32 %v3913, %v3912
  %v3915 = vmul.f32 %v3908, %v3701
  %v3916 = vadd.f32 %v3914, %v3915
  %3917 = vst [vmem:[%s1870] sm:$0xff] %v3916
  %v3918 = vld [vmem:[%s1874] sm:$0xff]
  %v3919 = vld [vmem:[%s1874 + $0x8] sm:$0xff]
  %v3920 = vld [vmem:[%s1874 + $0x10] sm:$0xff]
  %v3921 = vld [vmem:[%s7] sm:$0xff]
  %v3922 = vld [vmem:[%s7 + $0x8] sm:$0xff]
  %v3923 = vld [vmem:[%s7 + $0x10] sm:$0xff]
  %v3924 = vld [vmem:[%s7 + $0x18] sm:$0xff]
  %v3925 = vld [vmem:[%s7 + $0x20] sm:$0xff]
  %v3926 = vld [vmem:[%s7 + $0x28] sm:$0xff]
  %v3927 = vld [vmem:[%s7 + $0x30] sm:$0xff]
  %v3928 = vld [vmem:[%s7 + $0x38] sm:$0xff]
  %v3929 = vld [vmem:[%s7 + $0x40] sm:$0xff]
  %v3930 = vld [vmem:[%s7 + $0x48] sm:$0xff]
  %v3931 = vld [vmem:[%s7 + $0x50] sm:$0xff]
  %v3932 = vld [vmem:[%s7 + $0x58] sm:$0xff]
  %v3933 = vld [vmem:[%s7 + $0x60] sm:$0xff]
  %v3934 = vld [vmem:[%s7 + $0x68] sm:$0xff]
  %v3935 = vld [vmem:[%s7 + $0x70] sm:$0xff]
  %v3936 = vld [vmem:[%s7 + $0x78] sm:$0xff]
  %v3937 = vld [vmem:[%s7 + $0x80] sm:$0xff]
  %v3938 = vld [vmem:[%s7 + $0x88] sm:$0xff]
  %v3939 = vld [vmem:[%s7 + $0x90] sm:$0xff]
  %v3940 = vld [vmem:[%s7 + $0x98] sm:$0xff]
  %v3941 = vld [vmem:[%s7 + $0xa0] sm:$0xff]
  %v3942 = vld [vmem:[%s7 + $0xa8] sm:$0xff]
  %v3943 = vld [vmem:[%s7 + $0xb0] sm:$0xff]
  %v3944 = vld [vmem:[%s7 + $0xb8] sm:$0xff]
  %v3945 = vld [vmem:[%s7 + $0xc0] sm:$0xff]
  %v3946 = vld [vmem:[%s7 + $0xc8] sm:$0xff]
  %v3947 = vld [vmem:[%s7 + $0xd0] sm:$0xff]
  %v3948 = vld [vmem:[%s7 + $0xd8] sm:$0xff]
  %v3949 = vld [vmem:[%s7 + $0xe0] sm:$0xff]
  %v3950 = vld [vmem:[%s7 + $0xe8] sm:$0xff]
  %v3951 = vld [vmem:[%s7 + $0xf0] sm:$0xff]
  %v3952 = vld [vmem:[%s7 + $0xf8] sm:$0xff]
  %v3953 = vld [vmem:[%s7 + $0x100] sm:$0xff]
  %v3954 = vld [vmem:[%s7 + $0x108] sm:$0xff]
  %v3955 = vld [vmem:[%s7 + $0x110] sm:$0xff]
  %v3956 = vld [vmem:[%s7 + $0x118] sm:$0xff]
  %v3957 = vld [vmem:[%s7 + $0x120] sm:$0xff]
  %v3958 = vld [vmem:[%s7 + $0x128] sm:$0xff]
  %v3959 = vld [vmem:[%s7 + $0x130] sm:$0xff]
  %v3960 = vld [vmem:[%s7 + $0x138] sm:$0xff]
  %v3961 = vld [vmem:[%s7 + $0x140] sm:$0xff]
  %v3962 = vld [vmem:[%s7 + $0x148] sm:$0xff]
  %v3963 = vld [vmem:[%s7 + $0x150] sm:$0xff]
  %v3964 = vld [vmem:[%s7 + $0x158] sm:$0xff]
  %v3965 = vld [vmem:[%s7 + $0x160] sm:$0xff]
  %v3966 = vld [vmem:[%s7 + $0x168] sm:$0xff]
  %v3967 = vld [vmem:[%s7 + $0x170] sm:$0xff]
  %v3968 = vld [vmem:[%s7 + $0x178] sm:$0xff]
  %3969 = vmatprep.subr.mxu0 %v3967
  %3970 = vmatpush1.msra.mxu0 %v3966
  %3971 = vmatprep.subr.mxu0 %v3964
  %3972 = vmatpush1.msra.mxu0 %v3963
  %3973 = vmatprep.subr.mxu0 %v3961
  %3974 = vmatpush1.msra.mxu0 %v3960
  %3975 = vmatprep.subr.mxu0 %v3958
  %3976 = vmatpush1.msra.mxu0 %v3957
  %3977 = vmatprep.subr.mxu0 %v3955
  %3978 = vmatpush1.msra.mxu0 %v3954
  %3979 = vmatprep.subr.mxu0 %v3952
  %3980 = vmatpush1.msra.mxu0 %v3951
  %3981 = vmatprep.subr.mxu0 %v3949
  %3982 = vmatpush1.msra.mxu0 %v3948
  %3983 = vmatprep.subr.mxu0 %v3946
  %3984 = vmatpush1.msra.mxu0 %v3945
  %3985 = vmatprep.subr.mxu0 %v3943
  %3986 = vmatpush1.msra.mxu0 %v3942
  %3987 = vmatprep.subr.mxu0 %v3940
  %3988 = vmatpush1.msra.mxu0 %v3939
  %3989 = vmatprep.subr.mxu0 %v3937
  %3990 = vmatpush1.msra.mxu0 %v3936
  %3991 = vmatprep.subr.mxu0 %v3934
  %3992 = vmatpush1.msra.mxu0 %v3933
  %3993 = vmatprep.subr.mxu0 %v3931
  %3994 = vmatpush1.msra.mxu0 %v3930
  %3995 = vmatprep.subr.mxu0 %v3928
  %3996 = vmatpush1.msra.mxu0 %v3927
  %3997 = vmatprep.subr.mxu0 %v3925
  %3998 = vmatpush1.msra.mxu0 %v3924
  %3999 = vmatprep.subr.mxu0 %v3922
  %4000 = vmatpush1.msra.mxu0 %v3921
  %4001 = vmatprep.subr.mxu0 0.0
  %4002 = vmatpush2.msra.mxu0 0.0
  %4003 = vmatprep.subr.mxu0 0.0
  %4004 = vmatpush2.msra.mxu0 0.0
  %4005 = vmatprep.subr.mxu0 0.0
  %4006 = vmatpush2.msra.mxu0 0.0
  %4007 = vmatprep.subr.mxu0 0.0
  %4008 = vmatpush2.msra.mxu0 0.0
  %4009 = vmatprep.subr.mxu0 0.0
  %4010 = vmatpush2.msra.mxu0 0.0
  %4011 = vmatprep.subr.mxu0 0.0
  %4012 = vmatpush2.msra.mxu0 0.0
  %4013 = vmatprep.subr.mxu0 0.0
  %4014 = vmatpush2.msra.mxu0 0.0
  %4015 = vmatprep.subr.mxu0 0.0
  %4016 = vmatpush2.msra.mxu0 0.0
  %4017 = vmatprep.subr.mxu0 0.0
  %4018 = vmatpush2.msra.mxu0 0.0
  %4019 = vmatprep.subr.mxu0 0.0
  %4020 = vmatpush2.msra.mxu0 0.0
  %4021 = vmatprep.subr.mxu0 0.0
  %4022 = vmatpush2.msra.mxu0 0.0
  %4023 = vmatprep.subr.mxu0 0.0
  %4024 = vmatpush2.msra.mxu0 0.0
  %4025 = vmatprep.subr.mxu0 0.0
  %4026 = vmatpush2.msra.mxu0 0.0
  %4027 = vmatprep.subr.mxu0 0.0
  %4028 = vmatpush2.msra.mxu0 0.0
  %4029 = vmatprep.subr.mxu0 0.0
  %4030 = vmatpush2.msra.mxu0 0.0
  %4031 = vmatprep.subr.mxu0 0.0
  %4032 = vmatpush2.msra.mxu0 0.0
  %4033 = vmatprep.mubr.f32.mxu0 0.0
  %4034 = vmatmul.mubr.f32.gmra.mxu0 %v3916
  %v4035 = vpop.f32.mrf.mxu0
  %v4036 = vadd.f32 0.0, %v4035
  %v4037 = vpop.f32.mrf.mxu0
  %v4038 = vadd.f32 0.0, %v4037
  %4039 = vdwg.mxu0
  %4040 = vmatprep.subr.mxu0 0.0
  %4041 = vmatpush1.msra.mxu0 %v3968
  %4042 = vmatprep.subr.mxu0 0.0
  %4043 = vmatpush1.msra.mxu0 %v3965
  %4044 = vmatprep.subr.mxu0 0.0
  %4045 = vmatpush1.msra.mxu0 %v3962
  %4046 = vmatprep.subr.mxu0 0.0
  %4047 = vmatpush1.msra.mxu0 %v3959
  %4048 = vmatprep.subr.mxu0 0.0
  %4049 = vmatpush1.msra.mxu0 %v3956
  %4050 = vmatprep.subr.mxu0 0.0
  %4051 = vmatpush1.msra.mxu0 %v3953
  %4052 = vmatprep.subr.mxu0 0.0
  %4053 = vmatpush1.msra.mxu0 %v3950
  %4054 = vmatprep.subr.mxu0 0.0
  %4055 = vmatpush1.msra.mxu0 %v3947
  %4056 = vmatprep.subr.mxu0 0.0
  %4057 = vmatpush1.msra.mxu0 %v3944
  %4058 = vmatprep.subr.mxu0 0.0
  %4059 = vmatpush1.msra.mxu0 %v3941
  %4060 = vmatprep.subr.mxu0 0.0
  %4061 = vmatpush1.msra.mxu0 %v3938
  %4062 = vmatprep.subr.mxu0 0.0
  %4063 = vmatpush1.msra.mxu0 %v3935
  %4064 = vmatprep.subr.mxu0 0.0
  %4065 = vmatpush1.msra.mxu0 %v3932
  %4066 = vmatprep.subr.mxu0 0.0
  %4067 = vmatpush1.msra.mxu0 %v3929
  %4068 = vmatprep.subr.mxu0 0.0
  %4069 = vmatpush1.msra.mxu0 %v3926
  %4070 = vmatprep.subr.mxu0 0.0
  %4071 = vmatpush1.msra.mxu0 %v3923
  %4072 = vmatprep.subr.mxu0 0.0
  %4073 = vmatpush2.msra.mxu0 0.0
  %4074 = vmatprep.subr.mxu0 0.0
  %4075 = vmatpush2.msra.mxu0 0.0
  %4076 = vmatprep.subr.mxu0 0.0
  %4077 = vmatpush2.msra.mxu0 0.0
  %4078 = vmatprep.subr.mxu0 0.0
  %4079 = vmatpush2.msra.mxu0 0.0
  %4080 = vmatprep.subr.mxu0 0.0
  %4081 = vmatpush2.msra.mxu0 0.0
  %4082 = vmatprep.subr.mxu0 0.0
  %4083 = vmatpush2.msra.mxu0 0.0
  %4084 = vmatprep.subr.mxu0 0.0
  %4085 = vmatpush2.msra.mxu0 0.0
  %4086 = vmatprep.subr.mxu0 0.0
  %4087 = vmatpush2.msra.mxu0 0.0
  %4088 = vmatprep.subr.mxu0 0.0
  %4089 = vmatpush2.msra.mxu0 0.0
  %4090 = vmatprep.subr.mxu0 0.0
  %4091 = vmatpush2.msra.mxu0 0.0
  %4092 = vmatprep.subr.mxu0 0.0
  %4093 = vmatpush2.msra.mxu0 0.0
  %4094 = vmatprep.subr.mxu0 0.0
  %4095 = vmatpush2.msra.mxu0 0.0
  %4096 = vmatprep.subr.mxu0 0.0
  %4097 = vmatpush2.msra.mxu0 0.0
  %4098 = vmatprep.subr.mxu0 0.0
  %4099 = vmatpush2.msra.mxu0 0.0
  %4100 = vmatprep.subr.mxu0 0.0
  %4101 = vmatpush2.msra.mxu0 0.0
  %4102 = vmatprep.subr.mxu0 0.0
  %4103 = vmatpush2.msra.mxu0 0.0
  %4104 = vmatprep.mubr.f32.mxu0 0.0
  %4105 = vmatmul.mubr.f32.gmra.mxu0 %v3916
  %v4106 = vpop.f32.mrf.mxu0
  %v4107 = vadd.f32 0.0, %v4106
  %v4108 = vpop.f32.mrf.mxu0
  %4109 = vdwg.mxu0
  %v4110 = vadd.f32 %v3918, %v4036
  %v4111 = vxor.u32 %v4110, 2147483648
  %v4112 = vmul.f32 %v4111, 1.442695
  %v4113 = vpow.pop %v4112
  %v4114 = vadd.f32 %v4113, 1.0
  %v4115 = vrcp.pop %v4114
  %v4116 = vmul.f32 1.0, %v4115
  %v4117 = vadd.f32 %v3919, %v4038
  %v4118 = vxor.u32 %v4117, 2147483648
  %v4119 = vmul.f32 %v4118, 1.442695
  %v4120 = vpow.pop %v4119
  %v4121 = vadd.f32 %v4120, 1.0
  %v4122 = vrcp.pop %v4121
  %v4123 = vmul.f32 1.0, %v4122
  %v4124 = vadd.f32 %v4107, %v2411
  %v4125 = vmul.f32 %v4116, %v4124
  %v4126 = vadd.f32 %v3920, %v4125
  %v4127 = vtanh.pop %v4126
  %v4128 = vsub.f32 1.0, %v4123
  %v4129 = vmul.f32 %v4128, %v4127
  %v4130 = vmul.f32 %v4123, %v3916
  %v4131 = vadd.f32 %v4129, %v4130
  %4132 = vst [vmem:[%s2089] sm:$0xff] %v4131
  %v4133 = vld [vmem:[#allocation3] sm:$0xff]
  %v4134 = vld [vmem:[#allocation3 + $0x8] sm:$0xff]
  %v4135 = vld [vmem:[#allocation3 + $0x10] sm:$0xff]
  %v4136 = vld [vmem:[#allocation3 + $0x18] sm:$0xff]
  %v4137 = vld [vmem:[#allocation3 + $0x20] sm:$0xff]
  %v4138 = vld [vmem:[#allocation3 + $0x28] sm:$0xff]
  %v4139 = vld [vmem:[#allocation3 + $0x30] sm:$0xff]
  %v4140 = vld [vmem:[#allocation3 + $0x38] sm:$0xff]
  %v4141 = vld [vmem:[%s9] sm:$0xff]
  %v4142 = vld [vmem:[%s9 + $0x8] sm:$0xff]
  %v4143 = vld [vmem:[%s9 + $0x10] sm:$0xff]
  %v4144 = vld [vmem:[%s9 + $0x18] sm:$0xff]
  %v4145 = vld [vmem:[%s9 + $0x20] sm:$0xff]
  %v4146 = vld [vmem:[%s9 + $0x28] sm:$0xff]
  %v4147 = vld [vmem:[%s9 + $0x30] sm:$0xff]
  %v4148 = vld [vmem:[%s9 + $0x38] sm:$0xff]
  %v4149 = vld [vmem:[%s9 + $0x40] sm:$0xff]
  %v4150 = vld [vmem:[%s9 + $0x48] sm:$0xff]
  %v4151 = vld [vmem:[%s9 + $0x50] sm:$0xff]
  %v4152 = vld [vmem:[%s9 + $0x58] sm:$0xff]
  %v4153 = vld [vmem:[%s9 + $0x60] sm:$0xff]
  %v4154 = vld [vmem:[%s9 + $0x68] sm:$0xff]
  %v4155 = vld [vmem:[%s9 + $0x70] sm:$0xff]
  %v4156 = vld [vmem:[%s9 + $0x78] sm:$0xff]
  %v4157 = vld [vmem:[%s10] sm:$0x1]
  %v4159 = vlaneseq
  %v4160 = vshrl.u32 %v4159, 7
  %v4161 = vsub.s32 0, %v4160
  %v4162 = vrot.slane %v4157, %v4161
  %4164 = vmatprep.subr.mxu0 0.0
  %4165 = vmatpush1.msra.mxu0 %v4156
  %4166 = vmatprep.subr.mxu0 0.0
  %4167 = vmatpush1.msra.mxu0 %v4155
  %4168 = vmatprep.subr.mxu0 0.0
  %4169 = vmatpush1.msra.mxu0 %v4154
  %4170 = vmatprep.subr.mxu0 0.0
  %4171 = vmatpush1.msra.mxu0 %v4153
  %4172 = vmatprep.subr.mxu0 0.0
  %4173 = vmatpush1.msra.mxu0 %v4152
  %4174 = vmatprep.subr.mxu0 0.0
  %4175 = vmatpush1.msra.mxu0 %v4151
  %4176 = vmatprep.subr.mxu0 0.0
  %4177 = vmatpush1.msra.mxu0 %v4150
  %4178 = vmatprep.subr.mxu0 0.0
  %4179 = vmatpush1.msra.mxu0 %v4149
  %4180 = vmatprep.subr.mxu0 0.0
  %4181 = vmatpush1.msra.mxu0 %v4148
  %4182 = vmatprep.subr.mxu0 0.0
  %4183 = vmatpush1.msra.mxu0 %v4147
  %4184 = vmatprep.subr.mxu0 0.0
  %4185 = vmatpush1.msra.mxu0 %v4146
  %4186 = vmatprep.subr.mxu0 0.0
  %4187 = vmatpush1.msra.mxu0 %v4145
  %4188 = vmatprep.subr.mxu0 0.0
  %4189 = vmatpush1.msra.mxu0 %v4144
  %4190 = vmatprep.subr.mxu0 0.0
  %4191 = vmatpush1.msra.mxu0 %v4143
  %4192 = vmatprep.subr.mxu0 0.0
  %4193 = vmatpush1.msra.mxu0 %v4142
  %4194 = vmatprep.subr.mxu0 0.0
  %4195 = vmatpush1.msra.mxu0 %v4141
  %4196 = vmatprep.subr.mxu0 0.0
  %4197 = vmatpush2.msra.mxu0 0.0
  %4198 = vmatprep.subr.mxu0 0.0
  %4199 = vmatpush2.msra.mxu0 0.0
  %4200 = vmatprep.subr.mxu0 0.0
  %4201 = vmatpush2.msra.mxu0 0.0
  %4202 = vmatprep.subr.mxu0 0.0
  %4203 = vmatpush2.msra.mxu0 0.0
  %4204 = vmatprep.subr.mxu0 0.0
  %4205 = vmatpush2.msra.mxu0 0.0
  %4206 = vmatprep.subr.mxu0 0.0
  %4207 = vmatpush2.msra.mxu0 0.0
  %4208 = vmatprep.subr.mxu0 0.0
  %4209 = vmatpush2.msra.mxu0 0.0
  %4210 = vmatprep.subr.mxu0 0.0
  %4211 = vmatpush2.msra.mxu0 0.0
  %4212 = vmatprep.subr.mxu0 0.0
  %4213 = vmatpush2.msra.mxu0 0.0
  %4214 = vmatprep.subr.mxu0 0.0
  %4215 = vmatpush2.msra.mxu0 0.0
  %4216 = vmatprep.subr.mxu0 0.0
  %4217 = vmatpush2.msra.mxu0 0.0
  %4218 = vmatprep.subr.mxu0 0.0
  %4219 = vmatpush2.msra.mxu0 0.0
  %4220 = vmatprep.subr.mxu0 0.0
  %4221 = vmatpush2.msra.mxu0 0.0
  %4222 = vmatprep.subr.mxu0 0.0
  %4223 = vmatpush2.msra.mxu0 0.0
  %4224 = vmatprep.subr.mxu0 0.0
  %4225 = vmatpush2.msra.mxu0 0.0
  %4226 = vmatprep.subr.mxu0 0.0
  %4227 = vmatpush2.msra.mxu0 0.0
  %4228 = vmatprep.mubr.f32.mxu0 0.0
  %4229 = vmatmul.mubr.f32.gmra.mxu0 %v4133
  %v4230 = vpop.f32.mrf.mxu0
  %v4231 = vadd.f32 %v4162, %v4230
  %v4232 = vpop.f32.mrf.mxu0
  %4233 = vmatprep.mubr.f32.mxu0 0.0
  %4234 = vmatmul.mubr.f32.gmra.mxu0 %v4134
  %v4235 = vpop.f32.mrf.mxu0
  %v4236 = vadd.f32 %v4162, %v4235
  %v4237 = vpop.f32.mrf.mxu0
  %4238 = vmatprep.mubr.f32.mxu0 0.0
  %4239 = vmatmul.mubr.f32.gmra.mxu0 %v4135
  %v4240 = vpop.f32.mrf.mxu0
  %v4241 = vadd.f32 %v4162, %v4240
  %v4242 = vpop.f32.mrf.mxu0
  %4243 = vmatprep.mubr.f32.mxu0 0.0
  %4244 = vmatmul.mubr.f32.gmra.mxu0 %v4136
  %v4245 = vpop.f32.mrf.mxu0
  %v4246 = vadd.f32 %v4162, %v4245
  %v4247 = vpop.f32.mrf.mxu0
  %4248 = vmatprep.mubr.f32.mxu0 0.0
  %4249 = vmatmul.mubr.f32.gmra.mxu0 %v4137
  %v4250 = vpop.f32.mrf.mxu0
  %v4251 = vadd.f32 %v4162, %v4250
  %v4252 = vpop.f32.mrf.mxu0
  %4253 = vmatprep.mubr.f32.mxu0 0.0
  %4254 = vmatmul.mubr.f32.gmra.mxu0 %v4138
  %v4255 = vpop.f32.mrf.mxu0
  %v4256 = vadd.f32 %v4162, %v4255
  %v4257 = vpop.f32.mrf.mxu0
  %4258 = vmatprep.mubr.f32.mxu0 0.0
  %4259 = vmatmul.mubr.f32.gmra.mxu0 %v4139
  %v4260 = vpop.f32.mrf.mxu0
  %v4261 = vadd.f32 %v4162, %v4260
  %v4262 = vpop.f32.mrf.mxu0
  %4263 = vmatprep.mubr.f32.mxu0 0.0
  %4264 = vmatmul.mubr.f32.gmra.mxu0 %v4140
  %v4265 = vpop.f32.mrf.mxu0
  %v4266 = vadd.f32 %v4162, %v4265
  %v4267 = vpop.f32.mrf.mxu0
  %4268 = vdwg.mxu0
  %4269 = vst [vmem:[%s11] sm:$0xff] %v4231
  %4270 = vst [vmem:[%s11 + $0x8] sm:$0xff] %v4236
  %4271 = vst [vmem:[%s11 + $0x10] sm:$0xff] %v4241
  %4272 = vst [vmem:[%s11 + $0x18] sm:$0xff] %v4246
  %4273 = vst [vmem:[%s11 + $0x20] sm:$0xff] %v4251
  %4274 = vst [vmem:[%s11 + $0x28] sm:$0xff] %v4256
  %4275 = vst [vmem:[%s11 + $0x30] sm:$0xff] %v4261
  %4276 = vst [vmem:[%s11 + $0x38] sm:$0xff] %v4266
  // Predicated region
  $region46: #{gru_forward_pallas.1} parent=0 // pred_check
    _
  $region47: #{gru_forward_pallas.1} parent=0 // pred_check_branch
    %4278 = sbr.rel (0) target = $region49
  $region48: #{gru_forward_pallas.1} parent=0 // pred_region
    _
  $region49: #{gru_forward_pallas.1} parent=0 // pred_fallthru
    _
  // Predicated region
  $region50: #{gru_forward_pallas.1} parent=0 // pred_check
    _
  $region51: #{gru_forward_pallas.1} parent=0 // pred_check_branch
    %4280 = sbr.rel (0) target = $region53
  $region52: #{gru_forward_pallas.1} parent=0 // pred_region
    _
  $region53: #{gru_forward_pallas.1} parent=0 // pred_fallthru
    _

</llo_original>
